<compile_context>
chip_gen: v5e
topology: v5e:2x2
jax: 0.10.0
libtpu: 0.0.40
codegen_flags: <defaults>
</compile_context>

<pallas_src>
import functools
import math

import jax
import jax.numpy as jnp
from jax.experimental import pallas as pl
from jax.experimental.pallas import tpu as pltpu

_NEG_INF = -1e30
_LN_EPS = 1e-5


def _layer_norm(z, gamma, beta):
    """Fused single-pass LayerNorm (biased variance, eps inside rsqrt)."""
    c = z.shape[-1]
    s1 = jnp.sum(z, axis=-1, keepdims=True)
    s2 = jnp.sum(z * z, axis=-1, keepdims=True)
    mu = s1 * (1.0 / c)
    var = jnp.maximum(s2 * (1.0 / c) - mu * mu, 0.0)
    return (z - mu) * jax.lax.rsqrt(var + _LN_EPS) * gamma + beta


def _transformer_block_kernel(x_ref, g1_ref, bt1_ref,
                              wqkv_ref, wu_ref, bu_ref,
                              g2_ref, bt2_ref,
                              wf1_ref, bf1_ref, wf2_ref, bf2_ref,
                              o_ref,
                              k_scr, v_scr, m_scr, l_scr, acc_scr,
                              *, heads, bf16_exp):
    qi = pl.program_id(1)                    # query-tile index (inner axis)
    blk = x_ref.shape[1]
    C = x_ref.shape[2]
    H = heads
    S = C // H

    x = x_ref[0]                             # (blk, C) fp32, pre-LN rows

    # ---- LayerNorm 1 (fp32 stats) + ONE fused lane-dense QKV matmul ----
    xn16 = _layer_norm(x, g1_ref[0], bt1_ref[0]).astype(jnp.bfloat16)
    qkv = jnp.dot(xn16, wqkv_ref[...],
                  preferred_element_type=jnp.float32)            # (blk, 3C)

    # Head-major views (lane slices done ONCE per tile, outside the KV loop).
    # 1/sqrt(S) is already folded into the Q columns of wqkv (wrapper).
    q = jnp.swapaxes(qkv[:, :C].astype(jnp.bfloat16)
                     .reshape(blk, H, S), 0, 1)                  # (H, blk, S)
    k_scr[qi] = jnp.swapaxes(qkv[:, C:2 * C].astype(jnp.bfloat16)
                             .reshape(blk, H, S), 0, 1)
    v_scr[qi] = jnp.swapaxes(qkv[:, 2 * C:].astype(jnp.bfloat16)
                             .reshape(blk, H, S), 0, 1)

    # ---- flash-style causal attention over the cached K/V tiles ----
    m_scr[...] = jnp.full(m_scr.shape, _NEG_INF, jnp.float32)
    l_scr[...] = jnp.zeros(l_scr.shape, jnp.float32)
    acc_scr[...] = jnp.zeros(acc_scr.shape, jnp.float32)

    def attn_step(s, v_t):
        m_prev = m_scr[...]
        m_new = jnp.maximum(m_prev, jnp.max(s, axis=-1, keepdims=True))
        alpha = jnp.exp(m_prev - m_new)
        if bf16_exp:
            # v6e/v7x: bf16 EUP roughly doubles exp throughput; l-sum stays fp32.
            p = jnp.exp((s - m_new).astype(jnp.bfloat16))
            p_sum = jnp.sum(p, axis=-1, keepdims=True, dtype=jnp.float32)
        else:
            p = jnp.exp(s - m_new)
            p_sum = jnp.sum(p, axis=-1, keepdims=True)
        l_scr[...] = alpha * l_scr[...] + p_sum
        acc_scr[...] = alpha * acc_scr[...] + jnp.einsum(
            "hqk,hkd->hqd", p.astype(jnp.bfloat16), v_t,
            preferred_element_type=jnp.float32)
        m_scr[...] = m_new
        # TODO(synk): attention-weight dropout omitted (inference / identity).

    # Off-diagonal KV tiles (j < qi): fully visible, no causal mask needed.
    @pl.loop(0, qi)
    def _kv_step(j):
        s = jnp.einsum("hqd,hkd->hqk", q, k_scr[j],
                       preferred_element_type=jnp.float32)
        attn_step(s, v_scr[j])

    # Diagonal tile (j == qi): peeled, intra-tile causal mask applied here only.
    row_ids = jax.lax.broadcasted_iota(jnp.int32, (blk, blk), 0)
    col_ids = jax.lax.broadcasted_iota(jnp.int32, (blk, blk), 1)
    s_diag = jnp.einsum("hqd,hkd->hqk", q, k_scr[qi],
                        preferred_element_type=jnp.float32)
    s_diag = jnp.where((col_ids <= row_ids)[None, :, :], s_diag, _NEG_INF)
    attn_step(s_diag, v_scr[qi])

    o16 = (acc_scr[...] *
           pl.reciprocal(l_scr[...], approx=True)).astype(jnp.bfloat16)

    # ---- unify heads: lane-concat to (blk, C), ONE (blk,C)x(C,C) matmul ----
    o_cat = jnp.swapaxes(o16, 0, 1).reshape(blk, C)   # head-major, bf16
    attn = jnp.dot(o_cat, wu_ref[...],
                   preferred_element_type=jnp.float32) + bu_ref[0]

    x1 = x + attn                            # residual 1 (fp32)

    # ---- LayerNorm 2 + feed-forward (bf16 matmuls, fp32 accumulation) ----
    # TODO(synk): on v7x with very large F, tile the FFN over F with pl.loop.
    xn2_16 = _layer_norm(x1, g2_ref[0], bt2_ref[0]).astype(jnp.bfloat16)
    h1 = jnp.dot(xn2_16, wf1_ref[...],
                 preferred_element_type=jnp.float32) + bf1_ref[0]
    h1 = jnp.maximum(h1, 0.0).astype(jnp.bfloat16)
    ff = jnp.dot(h1, wf2_ref[...],
                 preferred_element_type=jnp.float32) + bf2_ref[0]
    # TODO(synk): feed-forward output dropout omitted (inference / identity).

    o_ref[0] = x1 + ff                       # residual 2 (fp32)


def transformer_block(x, params, heads, *, q_block=None):
    """x: (B, T, C) fp32.  params: fp32 weights stored in x @ W layout."""
    B, T, C = x.shape
    H = heads
    S = C // H
    F = params["wf1"].shape[1]

    if q_block is None:
        # TODO(synk): sweep upward (512) on v6e for long sequences.
        q_block = min(T, 256)
    if T % q_block != 0 or (q_block % 8 != 0 and q_block != T):
        q_block = T
    blk = q_block
    nq = T // blk

    # Fused, lane-dense QKV weight (C, 3C), 1/sqrt(S) folded into Q columns;
    # bf16 casts done once outside the kernel.  Wu stays 2-D (C, C) -- the
    # head-major lane-concat inside the kernel matches its input layout.
    inv_sqrt_s = 1.0 / math.sqrt(S)
    wqkv = jnp.concatenate(
        [params["wq"] * inv_sqrt_s, params["wk"], params["wv"]],
        axis=1).astype(jnp.bfloat16)
    wu = params["wu"].astype(jnp.bfloat16)
    wf1 = params["wf1"].astype(jnp.bfloat16)
    wf2 = params["wf2"].astype(jnp.bfloat16)

    # bf16 exp in the softmax inner loop only where the EUP supports it.
    try:
        kind = jax.devices()[0].device_kind.lower()
    except Exception:
        kind = ""
    bf16_exp = ("v6" in kind) or ("v7" in kind)

    kernel = functools.partial(_transformer_block_kernel,
                               heads=H, bf16_exp=bf16_exp)

    args = (x,
            params["g1"], params["bt1"],
            wqkv, wu, params["bu"],
            params["g2"], params["bt2"],
            wf1, params["bf1"], wf2, params["bf2"])

    def build(single_buffer_weights):
        if single_buffer_weights:
            def const_spec(shape):
                return pl.BlockSpec(shape, lambda b, qi: (0,) * len(shape),
                                    pipeline_mode=pl.Buffered(1))
        else:
            def const_spec(shape):
                return pl.BlockSpec(shape, lambda b, qi: (0,) * len(shape))

        # VMEM residency estimate (bytes): bf16 weights (single or double
        # buffered), fp32 x/out blocks (double-buffered), scratch, plus large
        # transients (fp32 scores, fp32 qkv, FFN h1, attn).  Capped at 56 MiB
        # to keep headroom below v7x's 64 MiB physical VMEM.
        wbuf = 1 if single_buffer_weights else 2
        w_bytes = wbuf * 2 * (3 * C * C + C * C + C * F + F * C)
        io_bytes = 2 * 2 * blk * C * 4
        kv_bytes = 2 * nq * blk * C * 2
        scr_bytes = kv_bytes + (2 * H * blk + blk * C) * 4
        transient = (2 * H * blk * blk * 4 + blk * 3 * C * 4
                     + blk * F * 4 + blk * C * 4)
        est = w_bytes + io_bytes + scr_bytes + transient + (2 << 20)
        vmem_limit = int(min(56 << 20, max(est, 16 << 20)))
        # TODO(synk): for long T / large C on v7x, stream the K/V cache (and
        # Wff1/Wff2) from HBM scratch with manual double-buffered DMA instead
        # of keeping the full-sequence cache resident in VMEM.

        return pl.pallas_call(
            kernel,
            out_shape=jax.ShapeDtypeStruct((B, T, C), jnp.float32),
            grid_spec=pltpu.PrefetchScalarGridSpec(
                num_scalar_prefetch=0,
                grid=(B, nq),
                in_specs=[
                    pl.BlockSpec((1, blk, C), lambda b, qi: (b, qi, 0)),  # x
                    const_spec((1, C)), const_spec((1, C)),          # LN1 g,b
                    const_spec((C, 3 * C)),                          # Wqkv
                    const_spec((C, C)), const_spec((1, C)),          # Wu, bu
                    const_spec((1, C)), const_spec((1, C)),          # LN2 g,b
                    const_spec((C, F)), const_spec((1, F)),          # Wff1, b
                    const_spec((F, C)), const_spec((1, C)),          # Wff2, b
                ],
                out_specs=pl.BlockSpec((1, blk, C), lambda b, qi: (b, qi, 0)),
                scratch_shapes=[
                    pltpu.VMEM((nq, H, blk, S), jnp.bfloat16),   # K cache
                    pltpu.VMEM((nq, H, blk, S), jnp.bfloat16),   # V cache
                    pltpu.VMEM((H, blk, 1), jnp.float32),        # running max
                    pltpu.VMEM((H, blk, 1), jnp.float32),        # running sum
                    pltpu.VMEM((H, blk, S), jnp.float32),        # output accum
                ]),
            compiler_params=pltpu.CompilerParams(
                # qi MUST stay "arbitrary": the causal K/V cache reuse relies
                # on sequential b-outer / qi-inner execution per core.
                dimension_semantics=("parallel", "arbitrary"),
                vmem_limit_bytes=vmem_limit),
        )

    try:
        return build(True)(*args)
    except Exception:
        # TODO(synk): pipeline_mode=pl.Buffered(1) rejected on this JAX/TPU
        # combination; fall back to default double-buffered constant weights.
        return build(False)(*args)


def transformer_block_ref(x, params, heads):
    """Pure-JAX fp32 reference mirroring the PyTorch forward (eval mode)."""
    B, T, C = x.shape
    S = C // heads
    eps = 1e-5

    def ln(z, g, b):
        mu = jnp.mean(z, axis=-1, keepdims=True)
        var = jnp.mean((z - mu) ** 2, axis=-1, keepdims=True)
        return (z - mu) / jnp.sqrt(var + eps) * g + b

    xn = ln(x, params["g1"][0], params["bt1"][0])
    q = xn @ params["wq"]
    k = xn @ params["wk"]
    v = xn @ params["wv"]
    q = q.reshape(B, T, heads, S).transpose(0, 2, 1, 3)
    k = k.reshape(B, T, heads, S).transpose(0, 2, 1, 3)
    v = v.reshape(B, T, heads, S).transpose(0, 2, 1, 3)
    dot = jnp.einsum("bhts,bhus->bhtu", q, k) / math.sqrt(S)
    mask = jnp.triu(jnp.ones((T, T)), k=1) == 1
    dot = jnp.where(mask, -jnp.inf, dot)
    p = jax.nn.softmax(dot, axis=-1)
    out = jnp.einsum("bhtu,bhus->bhts", p, v)
    out = out.transpose(0, 2, 1, 3).reshape(B, T, C)
    attn = out @ params["wu"] + params["bu"][0]
    x1 = x + attn
    xn2 = ln(x1, params["g2"][0], params["bt2"][0])
    h1 = jnp.maximum(xn2 @ params["wf1"] + params["bf1"][0], 0.0)
    ff = h1 @ params["wf2"] + params["bf2"][0]
    return x1 + ff


def init_params(key, emb_size):
    C = emb_size
    F = 4 * C
    ks = jax.random.split(key, 8)
    scale = 0.02
    # nn.Linear stores (out, in) and computes x @ W.T; weights here are stored
    # already transposed so the kernel computes x @ W.
    return {
        "g1": jnp.ones((1, C), jnp.float32),
        "bt1": jnp.zeros((1, C), jnp.float32),
        "wq": scale * jax.random.normal(ks[0], (C, C), jnp.float32),
        "wk": scale * jax.random.normal(ks[1], (C, C), jnp.float32),
        "wv": scale * jax.random.normal(ks[2], (C, C), jnp.float32),
        "wu": scale * jax.random.normal(ks[3], (C, C), jnp.float32),
        "bu": scale * jax.random.normal(ks[4], (1, C), jnp.float32),
        "g2": jnp.ones((1, C), jnp.float32),
        "bt2": jnp.zeros((1, C), jnp.float32),
        "wf1": scale * jax.random.normal(ks[5], (C, F), jnp.float32),
        "bf1": scale * jax.random.normal(ks[6], (1, F), jnp.float32),
        "wf2": scale * jax.random.normal(ks[7], (F, C), jnp.float32),
        "bf2": jnp.zeros((1, C), jnp.float32),
    }


if __name__ == "__main__":
    B, T, EMB, HEADS = 2, 16, 32, 4
    key = jax.random.PRNGKey(0)
    kx, kp = jax.random.split(key)
    x = jax.random.normal(kx, (B, T, EMB), jnp.float32)
    params = init_params(kp, EMB)

    ref = transformer_block_ref(x, params, HEADS)

    # Multi-tile path: q_block=8 -> grid (B, 2); exercises the causal K/V
    # cache reuse across query tiles and the peeled-diagonal online softmax.
    out_tiled = jax.block_until_ready(
        transformer_block(x, params, HEADS, q_block=8))
    # Single-tile path (q_block == T).
    out_full = jax.block_until_ready(transformer_block(x, params, HEADS))

    assert out_tiled.shape == (B, T, EMB)
    assert jnp.allclose(out_tiled, ref, atol=2e-2, rtol=2e-2), \
        "tiled kernel mismatch vs reference"
    assert jnp.allclose(out_full, ref, atol=2e-2, rtol=2e-2), \
        "full-tile kernel mismatch vs reference"

    print("KERNEL_OK")
</pallas_src>

<mosaic_0001>
module attributes {stable_mosaic.version = 11 : i64} {
  func.func @_transformer_block_kernel(%arg0: i32, %arg1: i32, %arg2: memref<1x8x32xf32, #tpu.memory_space<vmem>>, %arg3: memref<1x32xf32, #tpu.memory_space<vmem>>, %arg4: memref<1x32xf32, #tpu.memory_space<vmem>>, %arg5: memref<32x96xbf16, #tpu.memory_space<vmem>>, %arg6: memref<32x32xbf16, #tpu.memory_space<vmem>>, %arg7: memref<1x32xf32, #tpu.memory_space<vmem>>, %arg8: memref<1x32xf32, #tpu.memory_space<vmem>>, %arg9: memref<1x32xf32, #tpu.memory_space<vmem>>, %arg10: memref<32x128xbf16, #tpu.memory_space<vmem>>, %arg11: memref<1x128xf32, #tpu.memory_space<vmem>>, %arg12: memref<128x32xbf16, #tpu.memory_space<vmem>>, %arg13: memref<1x32xf32, #tpu.memory_space<vmem>>, %arg14: memref<1x8x32xf32, #tpu.memory_space<vmem>>, %arg15: memref<2x4x8x8xbf16, #tpu.memory_space<vmem>>, %arg16: memref<2x4x8x8xbf16, #tpu.memory_space<vmem>>, %arg17: memref<4x8x1xf32, #tpu.memory_space<vmem>>, %arg18: memref<4x8x1xf32, #tpu.memory_space<vmem>>, %arg19: memref<4x8x8xf32, #tpu.memory_space<vmem>>) attributes {dimension_semantics = [#tpu.dimension_semantics<parallel>, #tpu.dimension_semantics<arbitrary>], iteration_bounds = array<i64: 2, 2>, scalar_prefetch = 0 : i64, scratch_operands = 5 : i64, tpu.core_type = #tpu.core_type<tc>, window_params = [{transform_indices = @transform_0, window_bounds = array<i64: 1, 8, 32>}, {pipeline_mode = #tpu.pipeline_mode<synchronous>, transform_indices = @transform_1, window_bounds = array<i64: 1, 32>}, {pipeline_mode = #tpu.pipeline_mode<synchronous>, transform_indices = @transform_2, window_bounds = array<i64: 1, 32>}, {pipeline_mode = #tpu.pipeline_mode<synchronous>, transform_indices = @transform_3, window_bounds = array<i64: 32, 96>}, {pipeline_mode = #tpu.pipeline_mode<synchronous>, transform_indices = @transform_4, window_bounds = array<i64: 32, 32>}, {pipeline_mode = #tpu.pipeline_mode<synchronous>, transform_indices = @transform_5, window_bounds = array<i64: 1, 32>}, {pipeline_mode = #tpu.pipeline_mode<synchronous>, transform_indices = @transform_6, window_bounds = array<i64: 1, 32>}, {pipeline_mode = #tpu.pipeline_mode<synchronous>, transform_indices = @transform_7, window_bounds = array<i64: 1, 32>}, {pipeline_mode = #tpu.pipeline_mode<synchronous>, transform_indices = @transform_8, window_bounds = array<i64: 32, 128>}, {pipeline_mode = #tpu.pipeline_mode<synchronous>, transform_indices = @transform_9, window_bounds = array<i64: 1, 128>}, {pipeline_mode = #tpu.pipeline_mode<synchronous>, transform_indices = @transform_10, window_bounds = array<i64: 128, 32>}, {pipeline_mode = #tpu.pipeline_mode<synchronous>, transform_indices = @transform_11, window_bounds = array<i64: 1, 32>}, {transform_indices = @transform_12, window_bounds = array<i64: 1, 8, 32>}]} {
    %c0 = arith.constant 0 : index
    %c0_0 = arith.constant 0 : index
    %c0_1 = arith.constant 0 : index
    %0 = vector.load %arg2[%c0, %c0_0, %c0_1] : memref<1x8x32xf32, #tpu.memory_space<vmem>>, vector<1x8x32xf32>
    %1 = vector.shape_cast %0 : vector<1x8x32xf32> to vector<8x32xf32>
    %c0_2 = arith.constant 0 : index
    %c0_3 = arith.constant 0 : index
    %2 = vector.load %arg3[%c0_2, %c0_3] : memref<1x32xf32, #tpu.memory_space<vmem>>, vector<1x32xf32>
    %3 = vector.shape_cast %2 : vector<1x32xf32> to vector<32xf32>
    %c0_4 = arith.constant 0 : index
    %c0_5 = arith.constant 0 : index
    %4 = vector.load %arg4[%c0_4, %c0_5] : memref<1x32xf32, #tpu.memory_space<vmem>>, vector<1x32xf32>
    %5 = vector.shape_cast %4 : vector<1x32xf32> to vector<32xf32>
    %cst = arith.constant dense<0.000000e+00> : vector<8xf32>
    %6 = vector.multi_reduction <add>, %1, %cst [1] : vector<8x32xf32> to vector<8xf32>
    %7 = vector.shape_cast %6 : vector<8xf32> to vector<8x1xf32>
    %8 = arith.mulf %1, %1 : vector<8x32xf32>
    %cst_6 = arith.constant dense<0.000000e+00> : vector<8xf32>
    %9 = vector.multi_reduction <add>, %8, %cst_6 [1] : vector<8x32xf32> to vector<8xf32>
    %10 = vector.shape_cast %9 : vector<8xf32> to vector<8x1xf32>
    %cst_7 = arith.constant 3.125000e-02 : f32
    %11 = vector.broadcast %cst_7 : f32 to vector<8x1xf32>
    %12 = arith.mulf %7, %11 : vector<8x1xf32>
    %cst_8 = arith.constant 3.125000e-02 : f32
    %13 = vector.broadcast %cst_8 : f32 to vector<8x1xf32>
    %14 = arith.mulf %10, %13 : vector<8x1xf32>
    %15 = arith.mulf %12, %12 : vector<8x1xf32>
    %16 = arith.subf %14, %15 : vector<8x1xf32>
    %cst_9 = arith.constant 0.000000e+00 : f32
    %17 = vector.broadcast %cst_9 : f32 to vector<8x1xf32>
    %18 = arith.maximumf %16, %17 : vector<8x1xf32>
    %19 = vector.broadcast %12 : vector<8x1xf32> to vector<8x32xf32>
    %20 = arith.subf %1, %19 : vector<8x32xf32>
    %cst_10 = arith.constant 9.99999974E-6 : f32
    %21 = vector.broadcast %cst_10 : f32 to vector<8x1xf32>
    %22 = arith.addf %18, %21 : vector<8x1xf32>
    %23 = math.rsqrt %22 : vector<8x1xf32>
    %24 = vector.broadcast %23 : vector<8x1xf32> to vector<8x32xf32>
    %25 = arith.mulf %20, %24 : vector<8x32xf32>
    %26 = vector.shape_cast %3 : vector<32xf32> to vector<1x32xf32>
    %27 = vector.broadcast %26 : vector<1x32xf32> to vector<8x32xf32>
    %28 = arith.mulf %25, %27 : vector<8x32xf32>
    %29 = vector.shape_cast %5 : vector<32xf32> to vector<1x32xf32>
    %30 = vector.broadcast %29 : vector<1x32xf32> to vector<8x32xf32>
    %31 = arith.addf %28, %30 : vector<8x32xf32>
    %32 = arith.truncf %31 : vector<8x32xf32> to vector<8x32xbf16>
    %c0_11 = arith.constant 0 : index
    %c0_12 = arith.constant 0 : index
    %33 = vector.load %arg5[%c0_11, %c0_12] : memref<32x96xbf16, #tpu.memory_space<vmem>>, vector<32x96xbf16>
    %cst_13 = arith.constant dense<0.000000e+00> : vector<8x96xf32>
    %34 = tpu.matmul %32, %33, %cst_13 {dimension_numbers = #tpu.dot_dimension_numbers<[1], [0], [0], [1], [0, 0, 1, 1], [], []>} : vector<8x32xbf16>, vector<32x96xbf16>, vector<8x96xf32> -> vector<8x96xf32>
    %35 = vector.extract_strided_slice %34 {offsets = [0, 0], sizes = [8, 32], strides = [1, 1]} : vector<8x96xf32> to vector<8x32xf32>
    %36 = arith.truncf %35 : vector<8x32xf32> to vector<8x32xbf16>
    %37 = vector.shape_cast %36 : vector<8x32xbf16> to vector<8x4x8xbf16>
    %38 = tpu.transpose %37, [1, 0, 2] : vector<8x4x8xbf16> -> vector<4x8x8xbf16>
    %39 = vector.extract_strided_slice %34 {offsets = [0, 32], sizes = [8, 32], strides = [1, 1]} : vector<8x96xf32> to vector<8x32xf32>
    %40 = arith.truncf %39 : vector<8x32xf32> to vector<8x32xbf16>
    %41 = vector.shape_cast %40 : vector<8x32xbf16> to vector<8x4x8xbf16>
    %42 = tpu.transpose %41, [1, 0, 2] : vector<8x4x8xbf16> -> vector<4x8x8xbf16>
    %43 = arith.index_cast %arg1 : i32 to index
    %c0_14 = arith.constant 0 : index
    %c0_15 = arith.constant 0 : index
    %c0_16 = arith.constant 0 : index
    %44 = vector.load %arg15[%43, %c0_14, %c0_15, %c0_16] : memref<2x4x8x8xbf16, #tpu.memory_space<vmem>>, vector<1x4x8x8xbf16>
    %45 = vector.shape_cast %44 : vector<1x4x8x8xbf16> to vector<4x8x8xbf16>
    %46 = vector.shape_cast %42 : vector<4x8x8xbf16> to vector<1x4x8x8xbf16>
    tpu.vector_store %arg15[%43, %c0_14, %c0_15, %c0_16], %46 {strides = array<i32>} : memref<2x4x8x8xbf16, #tpu.memory_space<vmem>>, vector<1x4x8x8xbf16>,
    %47 = vector.extract_strided_slice %34 {offsets = [0, 64], sizes = [8, 32], strides = [1, 1]} : vector<8x96xf32> to vector<8x32xf32>
    %48 = arith.truncf %47 : vector<8x32xf32> to vector<8x32xbf16>
    %49 = vector.shape_cast %48 : vector<8x32xbf16> to vector<8x4x8xbf16>
    %50 = tpu.transpose %49, [1, 0, 2] : vector<8x4x8xbf16> -> vector<4x8x8xbf16>
    %51 = arith.index_cast %arg1 : i32 to index
    %c0_17 = arith.constant 0 : index
    %c0_18 = arith.constant 0 : index
    %c0_19 = arith.constant 0 : index
    %52 = vector.load %arg16[%51, %c0_17, %c0_18, %c0_19] : memref<2x4x8x8xbf16, #tpu.memory_space<vmem>>, vector<1x4x8x8xbf16>
    %53 = vector.shape_cast %52 : vector<1x4x8x8xbf16> to vector<4x8x8xbf16>
    %54 = vector.shape_cast %50 : vector<4x8x8xbf16> to vector<1x4x8x8xbf16>
    tpu.vector_store %arg16[%51, %c0_17, %c0_18, %c0_19], %54 {strides = array<i32>} : memref<2x4x8x8xbf16, #tpu.memory_space<vmem>>, vector<1x4x8x8xbf16>,
    %cst_20 = arith.constant -1.000000e+30 : f32
    %55 = vector.broadcast %cst_20 : f32 to vector<4x8x1xf32>
    %c0_21 = arith.constant 0 : index
    %c0_22 = arith.constant 0 : index
    %c0_23 = arith.constant 0 : index
    %56 = vector.load %arg17[%c0_21, %c0_22, %c0_23] : memref<4x8x1xf32, #tpu.memory_space<vmem>>, vector<4x8x1xf32>
    tpu.vector_store %arg17[%c0_21, %c0_22, %c0_23], %55 {strides = array<i32>} : memref<4x8x1xf32, #tpu.memory_space<vmem>>, vector<4x8x1xf32>,
    %cst_24 = arith.constant 0.000000e+00 : f32
    %57 = vector.broadcast %cst_24 : f32 to vector<4x8x1xf32>
    %c0_25 = arith.constant 0 : index
    %c0_26 = arith.constant 0 : index
    %c0_27 = arith.constant 0 : index
    %58 = vector.load %arg18[%c0_25, %c0_26, %c0_27] : memref<4x8x1xf32, #tpu.memory_space<vmem>>, vector<4x8x1xf32>
    tpu.vector_store %arg18[%c0_25, %c0_26, %c0_27], %57 {strides = array<i32>} : memref<4x8x1xf32, #tpu.memory_space<vmem>>, vector<4x8x1xf32>,
    %cst_28 = arith.constant 0.000000e+00 : f32
    %59 = vector.broadcast %cst_28 : f32 to vector<4x8x8xf32>
    %c0_29 = arith.constant 0 : index
    %c0_30 = arith.constant 0 : index
    %c0_31 = arith.constant 0 : index
    %60 = vector.load %arg19[%c0_29, %c0_30, %c0_31] : memref<4x8x8xf32, #tpu.memory_space<vmem>>, vector<4x8x8xf32>
    tpu.vector_store %arg19[%c0_29, %c0_30, %c0_31], %59 {strides = array<i32>} : memref<4x8x8xf32, #tpu.memory_space<vmem>>, vector<4x8x8xf32>,
    %c0_i32 = arith.constant 0 : i32
    %61 = arith.subi %arg1, %c0_i32 : i32
    %c1_i32 = arith.constant 1 : i32
    %c1_i32_32 = arith.constant 1 : i32
    %62 = arith.subi %c1_i32, %c1_i32_32 : i32
    %63 = arith.addi %61, %62 : i32
    %c1_i32_33 = arith.constant 1 : i32
    %64 = arith.divsi %63, %c1_i32_33 : i32
    %c1_i32_34 = arith.constant 1 : i32
    %c0_i32_35 = arith.constant 0 : i32
    %c0_i32_36 = arith.constant 0 : i32
    %65 = arith.subi %64, %c0_i32_36 : i32
    %66 = arith.addi %c0_i32_36, %65 : i32
    %c1_i32_37 = arith.constant 1 : i32
    scf.for %arg20 = %c0_i32_36 to %66 step %c1_i32_37  : i32 {
      %173 = arith.muli %arg20, %c1_i32_34 : i32
      %174 = arith.addi %c0_i32_35, %173 : i32
      %175 = arith.index_cast %174 : i32 to index
      %c0_102 = arith.constant 0 : index
      %c0_103 = arith.constant 0 : index
      %c0_104 = arith.constant 0 : index
      %176 = vector.load %arg15[%175, %c0_102, %c0_103, %c0_104] : memref<2x4x8x8xbf16, #tpu.memory_space<vmem>>, vector<1x4x8x8xbf16>
      %177 = vector.shape_cast %176 : vector<1x4x8x8xbf16> to vector<4x8x8xbf16>
      "tpu.trace_start"() <{level = 10 : i32, message = "hqd,hkd->hqk"}> : () -> ()
      %cst_105 = arith.constant dense<0.000000e+00> : vector<4x8x8xf32>
      %178 = tpu.matmul %38, %177, %cst_105 {dimension_numbers = #tpu.dot_dimension_numbers<[2], [2], [1], [1], [0, 0, 0, 1, 1, 1], [0], [0]>} : vector<4x8x8xbf16>, vector<4x8x8xbf16>, vector<4x8x8xf32> -> vector<4x8x8xf32>
      "tpu.trace_stop"() : () -> ()
      %179 = arith.index_cast %174 : i32 to index
      %c0_106 = arith.constant 0 : index
      %c0_107 = arith.constant 0 : index
      %c0_108 = arith.constant 0 : index
      %180 = vector.load %arg16[%179, %c0_106, %c0_107, %c0_108] : memref<2x4x8x8xbf16, #tpu.memory_space<vmem>>, vector<1x4x8x8xbf16>
      %181 = vector.shape_cast %180 : vector<1x4x8x8xbf16> to vector<4x8x8xbf16>
      %c0_109 = arith.constant 0 : index
      %c0_110 = arith.constant 0 : index
      %c0_111 = arith.constant 0 : index
      %182 = vector.load %arg17[%c0_109, %c0_110, %c0_111] : memref<4x8x1xf32, #tpu.memory_space<vmem>>, vector<4x8x1xf32>
      %cst_112 = arith.constant dense<0xFF800000> : vector<4x8xf32>
      %183 = vector.multi_reduction <maximumf>, %178, %cst_112 [2] : vector<4x8x8xf32> to vector<4x8xf32>
      %184 = vector.shape_cast %183 : vector<4x8xf32> to vector<4x8x1xf32>
      %185 = arith.maximumf %182, %184 : vector<4x8x1xf32>
      %186 = arith.subf %182, %185 : vector<4x8x1xf32>
      %187 = math.exp %186 : vector<4x8x1xf32>
      %188 = vector.broadcast %185 : vector<4x8x1xf32> to vector<4x8x8xf32>
      %189 = arith.subf %178, %188 : vector<4x8x8xf32>
      %190 = math.exp %189 : vector<4x8x8xf32>
      %cst_113 = arith.constant dense<0.000000e+00> : vector<4x8xf32>
      %191 = vector.multi_reduction <add>, %190, %cst_113 [2] : vector<4x8x8xf32> to vector<4x8xf32>
      %192 = vector.shape_cast %191 : vector<4x8xf32> to vector<4x8x1xf32>
      %c0_114 = arith.constant 0 : index
      %c0_115 = arith.constant 0 : index
      %c0_116 = arith.constant 0 : index
      %193 = vector.load %arg18[%c0_114, %c0_115, %c0_116] : memref<4x8x1xf32, #tpu.memory_space<vmem>>, vector<4x8x1xf32>
      %194 = arith.mulf %187, %193 : vector<4x8x1xf32>
      %195 = arith.addf %194, %192 : vector<4x8x1xf32>
      %c0_117 = arith.constant 0 : index
      %c0_118 = arith.constant 0 : index
      %c0_119 = arith.constant 0 : index
      %196 = vector.load %arg18[%c0_117, %c0_118, %c0_119] : memref<4x8x1xf32, #tpu.memory_space<vmem>>, vector<4x8x1xf32>
      tpu.vector_store %arg18[%c0_117, %c0_118, %c0_119], %195 {strides = array<i32>} : memref<4x8x1xf32, #tpu.memory_space<vmem>>, vector<4x8x1xf32>,
      %c0_120 = arith.constant 0 : index
      %c0_121 = arith.constant 0 : index
      %c0_122 = arith.constant 0 : index
      %197 = vector.load %arg19[%c0_120, %c0_121, %c0_122] : memref<4x8x8xf32, #tpu.memory_space<vmem>>, vector<4x8x8xf32>
      %198 = vector.broadcast %187 : vector<4x8x1xf32> to vector<4x8x8xf32>
      %199 = arith.mulf %198, %197 : vector<4x8x8xf32>
      %200 = arith.truncf %190 : vector<4x8x8xf32> to vector<4x8x8xbf16>
      "tpu.trace_start"() <{level = 10 : i32, message = "hqk,hkd->hqd"}> : () -> ()
      %cst_123 = arith.constant dense<0.000000e+00> : vector<4x8x8xf32>
      %201 = tpu.matmul %200, %181, %cst_123 {dimension_numbers = #tpu.dot_dimension_numbers<[2], [1], [1], [2], [0, 0, 0, 1, 1, 2], [0], [0]>} : vector<4x8x8xbf16>, vector<4x8x8xbf16>, vector<4x8x8xf32> -> vector<4x8x8xf32>
      "tpu.trace_stop"() : () -> ()
      %202 = arith.addf %199, %201 : vector<4x8x8xf32>
      %c0_124 = arith.constant 0 : index
      %c0_125 = arith.constant 0 : index
      %c0_126 = arith.constant 0 : index
      %203 = vector.load %arg19[%c0_124, %c0_125, %c0_126] : memref<4x8x8xf32, #tpu.memory_space<vmem>>, vector<4x8x8xf32>
      tpu.vector_store %arg19[%c0_124, %c0_125, %c0_126], %202 {strides = array<i32>} : memref<4x8x8xf32, #tpu.memory_space<vmem>>, vector<4x8x8xf32>,
      %c0_127 = arith.constant 0 : index
      %c0_128 = arith.constant 0 : index
      %c0_129 = arith.constant 0 : index
      %204 = vector.load %arg17[%c0_127, %c0_128, %c0_129] : memref<4x8x1xf32, #tpu.memory_space<vmem>>, vector<4x8x1xf32>
      tpu.vector_store %arg17[%c0_127, %c0_128, %c0_129], %185 {strides = array<i32>} : memref<4x8x1xf32, #tpu.memory_space<vmem>>, vector<4x8x1xf32>,
    }
    %67 = tpu.iota {dimensions = array<i32: 0>} : vector<8x8xi32>
    %68 = tpu.iota {dimensions = array<i32: 1>} : vector<8x8xi32>
    %69 = arith.index_cast %arg1 : i32 to index
    %c0_38 = arith.constant 0 : index
    %c0_39 = arith.constant 0 : index
    %c0_40 = arith.constant 0 : index
    %70 = vector.load %arg15[%69, %c0_38, %c0_39, %c0_40] : memref<2x4x8x8xbf16, #tpu.memory_space<vmem>>, vector<1x4x8x8xbf16>
    %71 = vector.shape_cast %70 : vector<1x4x8x8xbf16> to vector<4x8x8xbf16>
    "tpu.trace_start"() <{level = 10 : i32, message = "hqd,hkd->hqk"}> : () -> ()
    %cst_41 = arith.constant dense<0.000000e+00> : vector<4x8x8xf32>
    %72 = tpu.matmul %38, %71, %cst_41 {dimension_numbers = #tpu.dot_dimension_numbers<[2], [2], [1], [1], [0, 0, 0, 1, 1, 1], [0], [0]>} : vector<4x8x8xbf16>, vector<4x8x8xbf16>, vector<4x8x8xf32> -> vector<4x8x8xf32>
    "tpu.trace_stop"() : () -> ()
    %73 = arith.cmpi sle, %68, %67 : vector<8x8xi32>
    %74 = vector.shape_cast %73 : vector<8x8xi1> to vector<1x8x8xi1>
    %cst_42 = arith.constant -1.000000e+30 : f32
    %75 = vector.shape_cast %74 : vector<1x8x8xi1> to vector<1x8x8xi1>
    %76 = vector.broadcast %75 : vector<1x8x8xi1> to vector<4x8x8xi1>
    %77 = vector.broadcast %cst_42 : f32 to vector<4x8x8xf32>
    %78 = arith.select %76, %72, %77 : vector<4x8x8xi1>, vector<4x8x8xf32>
    %79 = arith.index_cast %arg1 : i32 to index
    %c0_43 = arith.constant 0 : index
    %c0_44 = arith.constant 0 : index
    %c0_45 = arith.constant 0 : index
    %80 = vector.load %arg16[%79, %c0_43, %c0_44, %c0_45] : memref<2x4x8x8xbf16, #tpu.memory_space<vmem>>, vector<1x4x8x8xbf16>
    %81 = vector.shape_cast %80 : vector<1x4x8x8xbf16> to vector<4x8x8xbf16>
    %c0_46 = arith.constant 0 : index
    %c0_47 = arith.constant 0 : index
    %c0_48 = arith.constant 0 : index
    %82 = vector.load %arg17[%c0_46, %c0_47, %c0_48] : memref<4x8x1xf32, #tpu.memory_space<vmem>>, vector<4x8x1xf32>
    %cst_49 = arith.constant dense<0xFF800000> : vector<4x8xf32>
    %83 = vector.multi_reduction <maximumf>, %78, %cst_49 [2] : vector<4x8x8xf32> to vector<4x8xf32>
    %84 = vector.shape_cast %83 : vector<4x8xf32> to vector<4x8x1xf32>
    %85 = arith.maximumf %82, %84 : vector<4x8x1xf32>
    %86 = arith.subf %82, %85 : vector<4x8x1xf32>
    %87 = math.exp %86 : vector<4x8x1xf32>
    %88 = vector.broadcast %85 : vector<4x8x1xf32> to vector<4x8x8xf32>
    %89 = arith.subf %78, %88 : vector<4x8x8xf32>
    %90 = math.exp %89 : vector<4x8x8xf32>
    %cst_50 = arith.constant dense<0.000000e+00> : vector<4x8xf32>
    %91 = vector.multi_reduction <add>, %90, %cst_50 [2] : vector<4x8x8xf32> to vector<4x8xf32>
    %92 = vector.shape_cast %91 : vector<4x8xf32> to vector<4x8x1xf32>
    %c0_51 = arith.constant 0 : index
    %c0_52 = arith.constant 0 : index
    %c0_53 = arith.constant 0 : index
    %93 = vector.load %arg18[%c0_51, %c0_52, %c0_53] : memref<4x8x1xf32, #tpu.memory_space<vmem>>, vector<4x8x1xf32>
    %94 = arith.mulf %87, %93 : vector<4x8x1xf32>
    %95 = arith.addf %94, %92 : vector<4x8x1xf32>
    %c0_54 = arith.constant 0 : index
    %c0_55 = arith.constant 0 : index
    %c0_56 = arith.constant 0 : index
    %96 = vector.load %arg18[%c0_54, %c0_55, %c0_56] : memref<4x8x1xf32, #tpu.memory_space<vmem>>, vector<4x8x1xf32>
    tpu.vector_store %arg18[%c0_54, %c0_55, %c0_56], %95 {strides = array<i32>} : memref<4x8x1xf32, #tpu.memory_space<vmem>>, vector<4x8x1xf32>,
    %c0_57 = arith.constant 0 : index
    %c0_58 = arith.constant 0 : index
    %c0_59 = arith.constant 0 : index
    %97 = vector.load %arg19[%c0_57, %c0_58, %c0_59] : memref<4x8x8xf32, #tpu.memory_space<vmem>>, vector<4x8x8xf32>
    %98 = vector.broadcast %87 : vector<4x8x1xf32> to vector<4x8x8xf32>
    %99 = arith.mulf %98, %97 : vector<4x8x8xf32>
    %100 = arith.truncf %90 : vector<4x8x8xf32> to vector<4x8x8xbf16>
    "tpu.trace_start"() <{level = 10 : i32, message = "hqk,hkd->hqd"}> : () -> ()
    %cst_60 = arith.constant dense<0.000000e+00> : vector<4x8x8xf32>
    %101 = tpu.matmul %100, %81, %cst_60 {dimension_numbers = #tpu.dot_dimension_numbers<[2], [1], [1], [2], [0, 0, 0, 1, 1, 2], [0], [0]>} : vector<4x8x8xbf16>, vector<4x8x8xbf16>, vector<4x8x8xf32> -> vector<4x8x8xf32>
    "tpu.trace_stop"() : () -> ()
    %102 = arith.addf %99, %101 : vector<4x8x8xf32>
    %c0_61 = arith.constant 0 : index
    %c0_62 = arith.constant 0 : index
    %c0_63 = arith.constant 0 : index
    %103 = vector.load %arg19[%c0_61, %c0_62, %c0_63] : memref<4x8x8xf32, #tpu.memory_space<vmem>>, vector<4x8x8xf32>
    tpu.vector_store %arg19[%c0_61, %c0_62, %c0_63], %102 {strides = array<i32>} : memref<4x8x8xf32, #tpu.memory_space<vmem>>, vector<4x8x8xf32>,
    %c0_64 = arith.constant 0 : index
    %c0_65 = arith.constant 0 : index
    %c0_66 = arith.constant 0 : index
    %104 = vector.load %arg17[%c0_64, %c0_65, %c0_66] : memref<4x8x1xf32, #tpu.memory_space<vmem>>, vector<4x8x1xf32>
    tpu.vector_store %arg17[%c0_64, %c0_65, %c0_66], %85 {strides = array<i32>} : memref<4x8x1xf32, #tpu.memory_space<vmem>>, vector<4x8x1xf32>,
    %c0_67 = arith.constant 0 : index
    %c0_68 = arith.constant 0 : index
    %c0_69 = arith.constant 0 : index
    %105 = vector.load %arg19[%c0_67, %c0_68, %c0_69] : memref<4x8x8xf32, #tpu.memory_space<vmem>>, vector<4x8x8xf32>
    %c0_70 = arith.constant 0 : index
    %c0_71 = arith.constant 0 : index
    %c0_72 = arith.constant 0 : index
    %106 = vector.load %arg18[%c0_70, %c0_71, %c0_72] : memref<4x8x1xf32, #tpu.memory_space<vmem>>, vector<4x8x1xf32>
    %107 = tpu.reciprocal %106 {approx = true} : vector<4x8x1xf32> -> vector<4x8x1xf32>
    %108 = vector.broadcast %107 : vector<4x8x1xf32> to vector<4x8x8xf32>
    %109 = arith.mulf %105, %108 : vector<4x8x8xf32>
    %110 = arith.truncf %109 : vector<4x8x8xf32> to vector<4x8x8xbf16>
    %111 = tpu.transpose %110, [1, 0, 2] : vector<4x8x8xbf16> -> vector<8x4x8xbf16>
    %112 = vector.shape_cast %111 : vector<8x4x8xbf16> to vector<8x32xbf16>
    %c0_73 = arith.constant 0 : index
    %c0_74 = arith.constant 0 : index
    %113 = vector.load %arg6[%c0_73, %c0_74] : memref<32x32xbf16, #tpu.memory_space<vmem>>, vector<32x32xbf16>
    %cst_75 = arith.constant dense<0.000000e+00> : vector<8x32xf32>
    %114 = tpu.matmul %112, %113, %cst_75 {dimension_numbers = #tpu.dot_dimension_numbers<[1], [0], [0], [1], [0, 0, 1, 1], [], []>} : vector<8x32xbf16>, vector<32x32xbf16>, vector<8x32xf32> -> vector<8x32xf32>
    %c0_76 = arith.constant 0 : index
    %c0_77 = arith.constant 0 : index
    %115 = vector.load %arg7[%c0_76, %c0_77] : memref<1x32xf32, #tpu.memory_space<vmem>>, vector<1x32xf32>
    %116 = vector.shape_cast %115 : vector<1x32xf32> to vector<32xf32>
    %117 = vector.shape_cast %116 : vector<32xf32> to vector<1x32xf32>
    %118 = vector.broadcast %117 : vector<1x32xf32> to vector<8x32xf32>
    %119 = arith.addf %114, %118 : vector<8x32xf32>
    %120 = arith.addf %1, %119 : vector<8x32xf32>
    %c0_78 = arith.constant 0 : index
    %c0_79 = arith.constant 0 : index
    %121 = vector.load %arg8[%c0_78, %c0_79] : memref<1x32xf32, #tpu.memory_space<vmem>>, vector<1x32xf32>
    %122 = vector.shape_cast %121 : vector<1x32xf32> to vector<32xf32>
    %c0_80 = arith.constant 0 : index
    %c0_81 = arith.constant 0 : index
    %123 = vector.load %arg9[%c0_80, %c0_81] : memref<1x32xf32, #tpu.memory_space<vmem>>, vector<1x32xf32>
    %124 = vector.shape_cast %123 : vector<1x32xf32> to vector<32xf32>
    %cst_82 = arith.constant dense<0.000000e+00> : vector<8xf32>
    %125 = vector.multi_reduction <add>, %120, %cst_82 [1] : vector<8x32xf32> to vector<8xf32>
    %126 = vector.shape_cast %125 : vector<8xf32> to vector<8x1xf32>
    %127 = arith.mulf %120, %120 : vector<8x32xf32>
    %cst_83 = arith.constant dense<0.000000e+00> : vector<8xf32>
    %128 = vector.multi_reduction <add>, %127, %cst_83 [1] : vector<8x32xf32> to vector<8xf32>
    %129 = vector.shape_cast %128 : vector<8xf32> to vector<8x1xf32>
    %cst_84 = arith.constant 3.125000e-02 : f32
    %130 = vector.broadcast %cst_84 : f32 to vector<8x1xf32>
    %131 = arith.mulf %126, %130 : vector<8x1xf32>
    %cst_85 = arith.constant 3.125000e-02 : f32
    %132 = vector.broadcast %cst_85 : f32 to vector<8x1xf32>
    %133 = arith.mulf %129, %132 : vector<8x1xf32>
    %134 = arith.mulf %131, %131 : vector<8x1xf32>
    %135 = arith.subf %133, %134 : vector<8x1xf32>
    %cst_86 = arith.constant 0.000000e+00 : f32
    %136 = vector.broadcast %cst_86 : f32 to vector<8x1xf32>
    %137 = arith.maximumf %135, %136 : vector<8x1xf32>
    %138 = vector.broadcast %131 : vector<8x1xf32> to vector<8x32xf32>
    %139 = arith.subf %120, %138 : vector<8x32xf32>
    %cst_87 = arith.constant 9.99999974E-6 : f32
    %140 = vector.broadcast %cst_87 : f32 to vector<8x1xf32>
    %141 = arith.addf %137, %140 : vector<8x1xf32>
    %142 = math.rsqrt %141 : vector<8x1xf32>
    %143 = vector.broadcast %142 : vector<8x1xf32> to vector<8x32xf32>
    %144 = arith.mulf %139, %143 : vector<8x32xf32>
    %145 = vector.shape_cast %122 : vector<32xf32> to vector<1x32xf32>
    %146 = vector.broadcast %145 : vector<1x32xf32> to vector<8x32xf32>
    %147 = arith.mulf %144, %146 : vector<8x32xf32>
    %148 = vector.shape_cast %124 : vector<32xf32> to vector<1x32xf32>
    %149 = vector.broadcast %148 : vector<1x32xf32> to vector<8x32xf32>
    %150 = arith.addf %147, %149 : vector<8x32xf32>
    %151 = arith.truncf %150 : vector<8x32xf32> to vector<8x32xbf16>
    %c0_88 = arith.constant 0 : index
    %c0_89 = arith.constant 0 : index
    %152 = vector.load %arg10[%c0_88, %c0_89] : memref<32x128xbf16, #tpu.memory_space<vmem>>, vector<32x128xbf16>
    %cst_90 = arith.constant dense<0.000000e+00> : vector<8x128xf32>
    %153 = tpu.matmul %151, %152, %cst_90 {dimension_numbers = #tpu.dot_dimension_numbers<[1], [0], [0], [1], [0, 0, 1, 1], [], []>} : vector<8x32xbf16>, vector<32x128xbf16>, vector<8x128xf32> -> vector<8x128xf32>
    %c0_91 = arith.constant 0 : index
    %c0_92 = arith.constant 0 : index
    %154 = vector.load %arg11[%c0_91, %c0_92] : memref<1x128xf32, #tpu.memory_space<vmem>>, vector<1x128xf32>
    %155 = vector.shape_cast %154 : vector<1x128xf32> to vector<128xf32>
    %156 = vector.shape_cast %155 : vector<128xf32> to vector<1x128xf32>
    %157 = vector.broadcast %156 : vector<1x128xf32> to vector<8x128xf32>
    %158 = arith.addf %153, %157 : vector<8x128xf32>
    %cst_93 = arith.constant 0.000000e+00 : f32
    %159 = vector.broadcast %cst_93 : f32 to vector<8x128xf32>
    %160 = arith.maximumf %158, %159 : vector<8x128xf32>
    %161 = arith.truncf %160 : vector<8x128xf32> to vector<8x128xbf16>
    %c0_94 = arith.constant 0 : index
    %c0_95 = arith.constant 0 : index
    %162 = vector.load %arg12[%c0_94, %c0_95] : memref<128x32xbf16, #tpu.memory_space<vmem>>, vector<128x32xbf16>
    %cst_96 = arith.constant dense<0.000000e+00> : vector<8x32xf32>
    %163 = tpu.matmul %161, %162, %cst_96 {dimension_numbers = #tpu.dot_dimension_numbers<[1], [0], [0], [1], [0, 0, 1, 1], [], []>} : vector<8x128xbf16>, vector<128x32xbf16>, vector<8x32xf32> -> vector<8x32xf32>
    %c0_97 = arith.constant 0 : index
    %c0_98 = arith.constant 0 : index
    %164 = vector.load %arg13[%c0_97, %c0_98] : memref<1x32xf32, #tpu.memory_space<vmem>>, vector<1x32xf32>
    %165 = vector.shape_cast %164 : vector<1x32xf32> to vector<32xf32>
    %166 = vector.shape_cast %165 : vector<32xf32> to vector<1x32xf32>
    %167 = vector.broadcast %166 : vector<1x32xf32> to vector<8x32xf32>
    %168 = arith.addf %163, %167 : vector<8x32xf32>
    %169 = arith.addf %120, %168 : vector<8x32xf32>
    %c0_99 = arith.constant 0 : index
    %c0_100 = arith.constant 0 : index
    %c0_101 = arith.constant 0 : index
    %170 = vector.load %arg14[%c0_99, %c0_100, %c0_101] : memref<1x8x32xf32, #tpu.memory_space<vmem>>, vector<1x8x32xf32>
    %171 = vector.shape_cast %170 : vector<1x8x32xf32> to vector<8x32xf32>
    %172 = vector.shape_cast %169 : vector<8x32xf32> to vector<1x8x32xf32>
    tpu.vector_store %arg14[%c0_99, %c0_100, %c0_101], %172 {strides = array<i32>} : memref<1x8x32xf32, #tpu.memory_space<vmem>>, vector<1x8x32xf32>,
    return
  }
  func.func @transform_0(%arg0: i32, %arg1: i32) -> (i32, i32, i32) {
    %c0_i32 = arith.constant 0 : i32
    %c0_i32_0 = arith.constant 0 : i32
    return %arg0, %arg1, %c0_i32 : i32, i32, i32
  }
  func.func @transform_1(%arg0: i32, %arg1: i32) -> (i32, i32) {
    %c0_i32 = arith.constant 0 : i32
    %c0_i32_0 = arith.constant 0 : i32
    %c0_i32_1 = arith.constant 0 : i32
    return %c0_i32, %c0_i32_0 : i32, i32
  }
  func.func @transform_2(%arg0: i32, %arg1: i32) -> (i32, i32) {
    %c0_i32 = arith.constant 0 : i32
    %c0_i32_0 = arith.constant 0 : i32
    %c0_i32_1 = arith.constant 0 : i32
    return %c0_i32, %c0_i32_0 : i32, i32
  }
  func.func @transform_3(%arg0: i32, %arg1: i32) -> (i32, i32) {
    %c0_i32 = arith.constant 0 : i32
    %c0_i32_0 = arith.constant 0 : i32
    %c0_i32_1 = arith.constant 0 : i32
    return %c0_i32, %c0_i32_0 : i32, i32
  }
  func.func @transform_4(%arg0: i32, %arg1: i32) -> (i32, i32) {
    %c0_i32 = arith.constant 0 : i32
    %c0_i32_0 = arith.constant 0 : i32
    %c0_i32_1 = arith.constant 0 : i32
    return %c0_i32, %c0_i32_0 : i32, i32
  }
  func.func @transform_5(%arg0: i32, %arg1: i32) -> (i32, i32) {
    %c0_i32 = arith.constant 0 : i32
    %c0_i32_0 = arith.constant 0 : i32
    %c0_i32_1 = arith.constant 0 : i32
    return %c0_i32, %c0_i32_0 : i32, i32
  }
  func.func @transform_6(%arg0: i32, %arg1: i32) -> (i32, i32) {
    %c0_i32 = arith.constant 0 : i32
    %c0_i32_0 = arith.constant 0 : i32
    %c0_i32_1 = arith.constant 0 : i32
    return %c0_i32, %c0_i32_0 : i32, i32
  }
  func.func @transform_7(%arg0: i32, %arg1: i32) -> (i32, i32) {
    %c0_i32 = arith.constant 0 : i32
    %c0_i32_0 = arith.constant 0 : i32
    %c0_i32_1 = arith.constant 0 : i32
    return %c0_i32, %c0_i32_0 : i32, i32
  }
  func.func @transform_8(%arg0: i32, %arg1: i32) -> (i32, i32) {
    %c0_i32 = arith.constant 0 : i32
    %c0_i32_0 = arith.constant 0 : i32
    %c0_i32_1 = arith.constant 0 : i32
    return %c0_i32, %c0_i32_0 : i32, i32
  }
  func.func @transform_9(%arg0: i32, %arg1: i32) -> (i32, i32) {
    %c0_i32 = arith.constant 0 : i32
    %c0_i32_0 = arith.constant 0 : i32
    %c0_i32_1 = arith.constant 0 : i32
    return %c0_i32, %c0_i32_0 : i32, i32
  }
  func.func @transform_10(%arg0: i32, %arg1: i32) -> (i32, i32) {
    %c0_i32 = arith.constant 0 : i32
    %c0_i32_0 = arith.constant 0 : i32
    %c0_i32_1 = arith.constant 0 : i32
    return %c0_i32, %c0_i32_0 : i32, i32
  }
  func.func @transform_11(%arg0: i32, %arg1: i32) -> (i32, i32) {
    %c0_i32 = arith.constant 0 : i32
    %c0_i32_0 = arith.constant 0 : i32
    %c0_i32_1 = arith.constant 0 : i32
    return %c0_i32, %c0_i32_0 : i32, i32
  }
  func.func @transform_12(%arg0: i32, %arg1: i32) -> (i32, i32, i32) {
    %c0_i32 = arith.constant 0 : i32
    %c0_i32_0 = arith.constant 0 : i32
    return %arg0, %arg1, %c0_i32 : i32, i32, i32
  }
}

module attributes {stable_mosaic.version = 11 : i64} {
  func.func @_transformer_block_kernel(%arg0: i32, %arg1: i32, %arg2: memref<1x8x32xf32, #tpu.memory_space<vmem>>, %arg3: memref<1x32xf32, #tpu.memory_space<vmem>>, %arg4: memref<1x32xf32, #tpu.memory_space<vmem>>, %arg5: memref<32x96xbf16, #tpu.memory_space<vmem>>, %arg6: memref<32x32xbf16, #tpu.memory_space<vmem>>, %arg7: memref<1x32xf32, #tpu.memory_space<vmem>>, %arg8: memref<1x32xf32, #tpu.memory_space<vmem>>, %arg9: memref<1x32xf32, #tpu.memory_space<vmem>>, %arg10: memref<32x128xbf16, #tpu.memory_space<vmem>>, %arg11: memref<1x128xf32, #tpu.memory_space<vmem>>, %arg12: memref<128x32xbf16, #tpu.memory_space<vmem>>, %arg13: memref<1x32xf32, #tpu.memory_space<vmem>>, %arg14: memref<1x8x32xf32, #tpu.memory_space<vmem>>, %arg15: memref<2x4x8x8xbf16, #tpu.memory_space<vmem>>, %arg16: memref<2x4x8x8xbf16, #tpu.memory_space<vmem>>, %arg17: memref<4x8x1xf32, #tpu.memory_space<vmem>>, %arg18: memref<4x8x1xf32, #tpu.memory_space<vmem>>, %arg19: memref<4x8x8xf32, #tpu.memory_space<vmem>>) attributes {dimension_semantics = [#tpu.dimension_semantics<parallel>, #tpu.dimension_semantics<arbitrary>], iteration_bounds = array<i64: 2, 2>, scalar_prefetch = 0 : i64, scratch_operands = 5 : i64, tpu.core_type = #tpu.core_type<tc>, window_params = [{transform_indices = @transform_0, window_bounds = array<i64: 1, 8, 32>}, {pipeline_mode = #tpu.pipeline_mode<synchronous>, transform_indices = @transform_1, window_bounds = array<i64: 1, 32>}, {pipeline_mode = #tpu.pipeline_mode<synchronous>, transform_indices = @transform_2, window_bounds = array<i64: 1, 32>}, {pipeline_mode = #tpu.pipeline_mode<synchronous>, transform_indices = @transform_3, window_bounds = array<i64: 32, 96>}, {pipeline_mode = #tpu.pipeline_mode<synchronous>, transform_indices = @transform_4, window_bounds = array<i64: 32, 32>}, {pipeline_mode = #tpu.pipeline_mode<synchronous>, transform_indices = @transform_5, window_bounds = array<i64: 1, 32>}, {pipeline_mode = #tpu.pipeline_mode<synchronous>, transform_indices = @transform_6, window_bounds = array<i64: 1, 32>}, {pipeline_mode = #tpu.pipeline_mode<synchronous>, transform_indices = @transform_7, window_bounds = array<i64: 1, 32>}, {pipeline_mode = #tpu.pipeline_mode<synchronous>, transform_indices = @transform_8, window_bounds = array<i64: 32, 128>}, {pipeline_mode = #tpu.pipeline_mode<synchronous>, transform_indices = @transform_9, window_bounds = array<i64: 1, 128>}, {pipeline_mode = #tpu.pipeline_mode<synchronous>, transform_indices = @transform_10, window_bounds = array<i64: 128, 32>}, {pipeline_mode = #tpu.pipeline_mode<synchronous>, transform_indices = @transform_11, window_bounds = array<i64: 1, 32>}, {transform_indices = @transform_12, window_bounds = array<i64: 1, 8, 32>}]} {
    %c0 = arith.constant 0 : index
    %c0_0 = arith.constant 0 : index
    %c0_1 = arith.constant 0 : index
    %0 = vector.load %arg2[%c0, %c0_0, %c0_1] : memref<1x8x32xf32, #tpu.memory_space<vmem>>, vector<1x8x32xf32>
    %1 = vector.shape_cast %0 : vector<1x8x32xf32> to vector<8x32xf32>
    %c0_2 = arith.constant 0 : index
    %c0_3 = arith.constant 0 : index
    %2 = vector.load %arg3[%c0_2, %c0_3] : memref<1x32xf32, #tpu.memory_space<vmem>>, vector<1x32xf32>
    %3 = vector.shape_cast %2 : vector<1x32xf32> to vector<32xf32>
    %c0_4 = arith.constant 0 : index
    %c0_5 = arith.constant 0 : index
    %4 = vector.load %arg4[%c0_4, %c0_5] : memref<1x32xf32, #tpu.memory_space<vmem>>, vector<1x32xf32>
    %5 = vector.shape_cast %4 : vector<1x32xf32> to vector<32xf32>
    %cst = arith.constant dense<0.000000e+00> : vector<8xf32>
    %6 = vector.multi_reduction <add>, %1, %cst [1] : vector<8x32xf32> to vector<8xf32>
    %7 = vector.shape_cast %6 : vector<8xf32> to vector<8x1xf32>
    %8 = arith.mulf %1, %1 : vector<8x32xf32>
    %cst_6 = arith.constant dense<0.000000e+00> : vector<8xf32>
    %9 = vector.multi_reduction <add>, %8, %cst_6 [1] : vector<8x32xf32> to vector<8xf32>
    %10 = vector.shape_cast %9 : vector<8xf32> to vector<8x1xf32>
    %cst_7 = arith.constant 3.125000e-02 : f32
    %11 = vector.broadcast %cst_7 : f32 to vector<8x1xf32>
    %12 = arith.mulf %7, %11 : vector<8x1xf32>
    %cst_8 = arith.constant 3.125000e-02 : f32
    %13 = vector.broadcast %cst_8 : f32 to vector<8x1xf32>
    %14 = arith.mulf %10, %13 : vector<8x1xf32>
    %15 = arith.mulf %12, %12 : vector<8x1xf32>
    %16 = arith.subf %14, %15 : vector<8x1xf32>
    %cst_9 = arith.constant 0.000000e+00 : f32
    %17 = vector.broadcast %cst_9 : f32 to vector<8x1xf32>
    %18 = arith.maximumf %16, %17 : vector<8x1xf32>
    %19 = vector.broadcast %12 : vector<8x1xf32> to vector<8x32xf32>
    %20 = arith.subf %1, %19 : vector<8x32xf32>
    %cst_10 = arith.constant 9.99999974E-6 : f32
    %21 = vector.broadcast %cst_10 : f32 to vector<8x1xf32>
    %22 = arith.addf %18, %21 : vector<8x1xf32>
    %23 = math.rsqrt %22 : vector<8x1xf32>
    %24 = vector.broadcast %23 : vector<8x1xf32> to vector<8x32xf32>
    %25 = arith.mulf %20, %24 : vector<8x32xf32>
    %26 = vector.shape_cast %3 : vector<32xf32> to vector<1x32xf32>
    %27 = vector.broadcast %26 : vector<1x32xf32> to vector<8x32xf32>
    %28 = arith.mulf %25, %27 : vector<8x32xf32>
    %29 = vector.shape_cast %5 : vector<32xf32> to vector<1x32xf32>
    %30 = vector.broadcast %29 : vector<1x32xf32> to vector<8x32xf32>
    %31 = arith.addf %28, %30 : vector<8x32xf32>
    %32 = arith.truncf %31 : vector<8x32xf32> to vector<8x32xbf16>
    %c0_11 = arith.constant 0 : index
    %c0_12 = arith.constant 0 : index
    %33 = vector.load %arg5[%c0_11, %c0_12] : memref<32x96xbf16, #tpu.memory_space<vmem>>, vector<32x96xbf16>
    %cst_13 = arith.constant dense<0.000000e+00> : vector<8x96xf32>
    %34 = tpu.matmul %32, %33, %cst_13 {dimension_numbers = #tpu.dot_dimension_numbers<[1], [0], [0], [1], [0, 0, 1, 1], [], []>} : vector<8x32xbf16>, vector<32x96xbf16>, vector<8x96xf32> -> vector<8x96xf32>
    %35 = vector.extract_strided_slice %34 {offsets = [0, 0], sizes = [8, 32], strides = [1, 1]} : vector<8x96xf32> to vector<8x32xf32>
    %36 = arith.truncf %35 : vector<8x32xf32> to vector<8x32xbf16>
    %37 = vector.shape_cast %36 : vector<8x32xbf16> to vector<8x4x8xbf16>
    %38 = tpu.transpose %37, [1, 0, 2] : vector<8x4x8xbf16> -> vector<4x8x8xbf16>
    %39 = vector.extract_strided_slice %34 {offsets = [0, 32], sizes = [8, 32], strides = [1, 1]} : vector<8x96xf32> to vector<8x32xf32>
    %40 = arith.truncf %39 : vector<8x32xf32> to vector<8x32xbf16>
    %41 = vector.shape_cast %40 : vector<8x32xbf16> to vector<8x4x8xbf16>
    %42 = tpu.transpose %41, [1, 0, 2] : vector<8x4x8xbf16> -> vector<4x8x8xbf16>
    %43 = arith.index_cast %arg1 : i32 to index
    %c0_14 = arith.constant 0 : index
    %c0_15 = arith.constant 0 : index
    %c0_16 = arith.constant 0 : index
    %44 = vector.load %arg15[%43, %c0_14, %c0_15, %c0_16] : memref<2x4x8x8xbf16, #tpu.memory_space<vmem>>, vector<1x4x8x8xbf16>
    %45 = vector.shape_cast %44 : vector<1x4x8x8xbf16> to vector<4x8x8xbf16>
    %46 = vector.shape_cast %42 : vector<4x8x8xbf16> to vector<1x4x8x8xbf16>
    tpu.vector_store %arg15[%43, %c0_14, %c0_15, %c0_16], %46 {strides = array<i32>} : memref<2x4x8x8xbf16, #tpu.memory_space<vmem>>, vector<1x4x8x8xbf16>,
    %47 = vector.extract_strided_slice %34 {offsets = [0, 64], sizes = [8, 32], strides = [1, 1]} : vector<8x96xf32> to vector<8x32xf32>
    %48 = arith.truncf %47 : vector<8x32xf32> to vector<8x32xbf16>
    %49 = vector.shape_cast %48 : vector<8x32xbf16> to vector<8x4x8xbf16>
    %50 = tpu.transpose %49, [1, 0, 2] : vector<8x4x8xbf16> -> vector<4x8x8xbf16>
    %51 = arith.index_cast %arg1 : i32 to index
    %c0_17 = arith.constant 0 : index
    %c0_18 = arith.constant 0 : index
    %c0_19 = arith.constant 0 : index
    %52 = vector.load %arg16[%51, %c0_17, %c0_18, %c0_19] : memref<2x4x8x8xbf16, #tpu.memory_space<vmem>>, vector<1x4x8x8xbf16>
    %53 = vector.shape_cast %52 : vector<1x4x8x8xbf16> to vector<4x8x8xbf16>
    %54 = vector.shape_cast %50 : vector<4x8x8xbf16> to vector<1x4x8x8xbf16>
    tpu.vector_store %arg16[%51, %c0_17, %c0_18, %c0_19], %54 {strides = array<i32>} : memref<2x4x8x8xbf16, #tpu.memory_space<vmem>>, vector<1x4x8x8xbf16>,
    %cst_20 = arith.constant -1.000000e+30 : f32
    %55 = vector.broadcast %cst_20 : f32 to vector<4x8x1xf32>
    %c0_21 = arith.constant 0 : index
    %c0_22 = arith.constant 0 : index
    %c0_23 = arith.constant 0 : index
    %56 = vector.load %arg17[%c0_21, %c0_22, %c0_23] : memref<4x8x1xf32, #tpu.memory_space<vmem>>, vector<4x8x1xf32>
    tpu.vector_store %arg17[%c0_21, %c0_22, %c0_23], %55 {strides = array<i32>} : memref<4x8x1xf32, #tpu.memory_space<vmem>>, vector<4x8x1xf32>,
    %cst_24 = arith.constant 0.000000e+00 : f32
    %57 = vector.broadcast %cst_24 : f32 to vector<4x8x1xf32>
    %c0_25 = arith.constant 0 : index
    %c0_26 = arith.constant 0 : index
    %c0_27 = arith.constant 0 : index
    %58 = vector.load %arg18[%c0_25, %c0_26, %c0_27] : memref<4x8x1xf32, #tpu.memory_space<vmem>>, vector<4x8x1xf32>
    tpu.vector_store %arg18[%c0_25, %c0_26, %c0_27], %57 {strides = array<i32>} : memref<4x8x1xf32, #tpu.memory_space<vmem>>, vector<4x8x1xf32>,
    %cst_28 = arith.constant 0.000000e+00 : f32
    %59 = vector.broadcast %cst_28 : f32 to vector<4x8x8xf32>
    %c0_29 = arith.constant 0 : index
    %c0_30 = arith.constant 0 : index
    %c0_31 = arith.constant 0 : index
    %60 = vector.load %arg19[%c0_29, %c0_30, %c0_31] : memref<4x8x8xf32, #tpu.memory_space<vmem>>, vector<4x8x8xf32>
    tpu.vector_store %arg19[%c0_29, %c0_30, %c0_31], %59 {strides = array<i32>} : memref<4x8x8xf32, #tpu.memory_space<vmem>>, vector<4x8x8xf32>,
    %c0_i32 = arith.constant 0 : i32
    %61 = arith.subi %arg1, %c0_i32 : i32
    %c1_i32 = arith.constant 1 : i32
    %c1_i32_32 = arith.constant 1 : i32
    %62 = arith.subi %c1_i32, %c1_i32_32 : i32
    %63 = arith.addi %61, %62 : i32
    %c1_i32_33 = arith.constant 1 : i32
    %64 = arith.divsi %63, %c1_i32_33 : i32
    %c1_i32_34 = arith.constant 1 : i32
    %c0_i32_35 = arith.constant 0 : i32
    %c0_i32_36 = arith.constant 0 : i32
    %65 = arith.subi %64, %c0_i32_36 : i32
    %66 = arith.addi %c0_i32_36, %65 : i32
    %c1_i32_37 = arith.constant 1 : i32
    scf.for %arg20 = %c0_i32_36 to %66 step %c1_i32_37  : i32 {
      %173 = arith.muli %arg20, %c1_i32_34 : i32
      %174 = arith.addi %c0_i32_35, %173 : i32
      %175 = arith.index_cast %174 : i32 to index
      %c0_102 = arith.constant 0 : index
      %c0_103 = arith.constant 0 : index
      %c0_104 = arith.constant 0 : index
      %176 = vector.load %arg15[%175, %c0_102, %c0_103, %c0_104] : memref<2x4x8x8xbf16, #tpu.memory_space<vmem>>, vector<1x4x8x8xbf16>
      %177 = vector.shape_cast %176 : vector<1x4x8x8xbf16> to vector<4x8x8xbf16>
      "tpu.trace_start"() <{level = 10 : i32, message = "hqd,hkd->hqk"}> : () -> ()
      %cst_105 = arith.constant dense<0.000000e+00> : vector<4x8x8xf32>
      %178 = tpu.matmul %38, %177, %cst_105 {dimension_numbers = #tpu.dot_dimension_numbers<[2], [2], [1], [1], [0, 0, 0, 1, 1, 1], [0], [0]>} : vector<4x8x8xbf16>, vector<4x8x8xbf16>, vector<4x8x8xf32> -> vector<4x8x8xf32>
      "tpu.trace_stop"() : () -> ()
      %179 = arith.index_cast %174 : i32 to index
      %c0_106 = arith.constant 0 : index
      %c0_107 = arith.constant 0 : index
      %c0_108 = arith.constant 0 : index
      %180 = vector.load %arg16[%179, %c0_106, %c0_107, %c0_108] : memref<2x4x8x8xbf16, #tpu.memory_space<vmem>>, vector<1x4x8x8xbf16>
      %181 = vector.shape_cast %180 : vector<1x4x8x8xbf16> to vector<4x8x8xbf16>
      %c0_109 = arith.constant 0 : index
      %c0_110 = arith.constant 0 : index
      %c0_111 = arith.constant 0 : index
      %182 = vector.load %arg17[%c0_109, %c0_110, %c0_111] : memref<4x8x1xf32, #tpu.memory_space<vmem>>, vector<4x8x1xf32>
      %cst_112 = arith.constant dense<0xFF800000> : vector<4x8xf32>
      %183 = vector.multi_reduction <maximumf>, %178, %cst_112 [2] : vector<4x8x8xf32> to vector<4x8xf32>
      %184 = vector.shape_cast %183 : vector<4x8xf32> to vector<4x8x1xf32>
      %185 = arith.maximumf %182, %184 : vector<4x8x1xf32>
      %186 = arith.subf %182, %185 : vector<4x8x1xf32>
      %187 = math.exp %186 : vector<4x8x1xf32>
      %188 = vector.broadcast %185 : vector<4x8x1xf32> to vector<4x8x8xf32>
      %189 = arith.subf %178, %188 : vector<4x8x8xf32>
      %190 = math.exp %189 : vector<4x8x8xf32>
      %cst_113 = arith.constant dense<0.000000e+00> : vector<4x8xf32>
      %191 = vector.multi_reduction <add>, %190, %cst_113 [2] : vector<4x8x8xf32> to vector<4x8xf32>
      %192 = vector.shape_cast %191 : vector<4x8xf32> to vector<4x8x1xf32>
      %c0_114 = arith.constant 0 : index
      %c0_115 = arith.constant 0 : index
      %c0_116 = arith.constant 0 : index
      %193 = vector.load %arg18[%c0_114, %c0_115, %c0_116] : memref<4x8x1xf32, #tpu.memory_space<vmem>>, vector<4x8x1xf32>
      %194 = arith.mulf %187, %193 : vector<4x8x1xf32>
      %195 = arith.addf %194, %192 : vector<4x8x1xf32>
      %c0_117 = arith.constant 0 : index
      %c0_118 = arith.constant 0 : index
      %c0_119 = arith.constant 0 : index
      %196 = vector.load %arg18[%c0_117, %c0_118, %c0_119] : memref<4x8x1xf32, #tpu.memory_space<vmem>>, vector<4x8x1xf32>
      tpu.vector_store %arg18[%c0_117, %c0_118, %c0_119], %195 {strides = array<i32>} : memref<4x8x1xf32, #tpu.memory_space<vmem>>, vector<4x8x1xf32>,
      %c0_120 = arith.constant 0 : index
      %c0_121 = arith.constant 0 : index
      %c0_122 = arith.constant 0 : index
      %197 = vector.load %arg19[%c0_120, %c0_121, %c0_122] : memref<4x8x8xf32, #tpu.memory_space<vmem>>, vector<4x8x8xf32>
      %198 = vector.broadcast %187 : vector<4x8x1xf32> to vector<4x8x8xf32>
      %199 = arith.mulf %198, %197 : vector<4x8x8xf32>
      %200 = arith.truncf %190 : vector<4x8x8xf32> to vector<4x8x8xbf16>
      "tpu.trace_start"() <{level = 10 : i32, message = "hqk,hkd->hqd"}> : () -> ()
      %cst_123 = arith.constant dense<0.000000e+00> : vector<4x8x8xf32>
      %201 = tpu.matmul %200, %181, %cst_123 {dimension_numbers = #tpu.dot_dimension_numbers<[2], [1], [1], [2], [0, 0, 0, 1, 1, 2], [0], [0]>} : vector<4x8x8xbf16>, vector<4x8x8xbf16>, vector<4x8x8xf32> -> vector<4x8x8xf32>
      "tpu.trace_stop"() : () -> ()
      %202 = arith.addf %199, %201 : vector<4x8x8xf32>
      %c0_124 = arith.constant 0 : index
      %c0_125 = arith.constant 0 : index
      %c0_126 = arith.constant 0 : index
      %203 = vector.load %arg19[%c0_124, %c0_125, %c0_126] : memref<4x8x8xf32, #tpu.memory_space<vmem>>, vector<4x8x8xf32>
      tpu.vector_store %arg19[%c0_124, %c0_125, %c0_126], %202 {strides = array<i32>} : memref<4x8x8xf32, #tpu.memory_space<vmem>>, vector<4x8x8xf32>,
      %c0_127 = arith.constant 0 : index
      %c0_128 = arith.constant 0 : index
      %c0_129 = arith.constant 0 : index
      %204 = vector.load %arg17[%c0_127, %c0_128, %c0_129] : memref<4x8x1xf32, #tpu.memory_space<vmem>>, vector<4x8x1xf32>
      tpu.vector_store %arg17[%c0_127, %c0_128, %c0_129], %185 {strides = array<i32>} : memref<4x8x1xf32, #tpu.memory_space<vmem>>, vector<4x8x1xf32>,
    }
    %67 = tpu.iota {dimensions = array<i32: 0>} : vector<8x8xi32>
    %68 = tpu.iota {dimensions = array<i32: 1>} : vector<8x8xi32>
    %69 = arith.index_cast %arg1 : i32 to index
    %c0_38 = arith.constant 0 : index
    %c0_39 = arith.constant 0 : index
    %c0_40 = arith.constant 0 : index
    %70 = vector.load %arg15[%69, %c0_38, %c0_39, %c0_40] : memref<2x4x8x8xbf16, #tpu.memory_space<vmem>>, vector<1x4x8x8xbf16>
    %71 = vector.shape_cast %70 : vector<1x4x8x8xbf16> to vector<4x8x8xbf16>
    "tpu.trace_start"() <{level = 10 : i32, message = "hqd,hkd->hqk"}> : () -> ()
    %cst_41 = arith.constant dense<0.000000e+00> : vector<4x8x8xf32>
    %72 = tpu.matmul %38, %71, %cst_41 {dimension_numbers = #tpu.dot_dimension_numbers<[2], [2], [1], [1], [0, 0, 0, 1, 1, 1], [0], [0]>} : vector<4x8x8xbf16>, vector<4x8x8xbf16>, vector<4x8x8xf32> -> vector<4x8x8xf32>
    "tpu.trace_stop"() : () -> ()
    %73 = arith.cmpi sle, %68, %67 : vector<8x8xi32>
    %74 = vector.shape_cast %73 : vector<8x8xi1> to vector<1x8x8xi1>
    %cst_42 = arith.constant -1.000000e+30 : f32
    %75 = vector.shape_cast %74 : vector<1x8x8xi1> to vector<1x8x8xi1>
    %76 = vector.broadcast %75 : vector<1x8x8xi1> to vector<4x8x8xi1>
    %77 = vector.broadcast %cst_42 : f32 to vector<4x8x8xf32>
    %78 = arith.select %76, %72, %77 : vector<4x8x8xi1>, vector<4x8x8xf32>
    %79 = arith.index_cast %arg1 : i32 to index
    %c0_43 = arith.constant 0 : index
    %c0_44 = arith.constant 0 : index
    %c0_45 = arith.constant 0 : index
    %80 = vector.load %arg16[%79, %c0_43, %c0_44, %c0_45] : memref<2x4x8x8xbf16, #tpu.memory_space<vmem>>, vector<1x4x8x8xbf16>
    %81 = vector.shape_cast %80 : vector<1x4x8x8xbf16> to vector<4x8x8xbf16>
    %c0_46 = arith.constant 0 : index
    %c0_47 = arith.constant 0 : index
    %c0_48 = arith.constant 0 : index
    %82 = vector.load %arg17[%c0_46, %c0_47, %c0_48] : memref<4x8x1xf32, #tpu.memory_space<vmem>>, vector<4x8x1xf32>
    %cst_49 = arith.constant dense<0xFF800000> : vector<4x8xf32>
    %83 = vector.multi_reduction <maximumf>, %78, %cst_49 [2] : vector<4x8x8xf32> to vector<4x8xf32>
    %84 = vector.shape_cast %83 : vector<4x8xf32> to vector<4x8x1xf32>
    %85 = arith.maximumf %82, %84 : vector<4x8x1xf32>
    %86 = arith.subf %82, %85 : vector<4x8x1xf32>
    %87 = math.exp %86 : vector<4x8x1xf32>
    %88 = vector.broadcast %85 : vector<4x8x1xf32> to vector<4x8x8xf32>
    %89 = arith.subf %78, %88 : vector<4x8x8xf32>
    %90 = math.exp %89 : vector<4x8x8xf32>
    %cst_50 = arith.constant dense<0.000000e+00> : vector<4x8xf32>
    %91 = vector.multi_reduction <add>, %90, %cst_50 [2] : vector<4x8x8xf32> to vector<4x8xf32>
    %92 = vector.shape_cast %91 : vector<4x8xf32> to vector<4x8x1xf32>
    %c0_51 = arith.constant 0 : index
    %c0_52 = arith.constant 0 : index
    %c0_53 = arith.constant 0 : index
    %93 = vector.load %arg18[%c0_51, %c0_52, %c0_53] : memref<4x8x1xf32, #tpu.memory_space<vmem>>, vector<4x8x1xf32>
    %94 = arith.mulf %87, %93 : vector<4x8x1xf32>
    %95 = arith.addf %94, %92 : vector<4x8x1xf32>
    %c0_54 = arith.constant 0 : index
    %c0_55 = arith.constant 0 : index
    %c0_56 = arith.constant 0 : index
    %96 = vector.load %arg18[%c0_54, %c0_55, %c0_56] : memref<4x8x1xf32, #tpu.memory_space<vmem>>, vector<4x8x1xf32>
    tpu.vector_store %arg18[%c0_54, %c0_55, %c0_56], %95 {strides = array<i32>} : memref<4x8x1xf32, #tpu.memory_space<vmem>>, vector<4x8x1xf32>,
    %c0_57 = arith.constant 0 : index
    %c0_58 = arith.constant 0 : index
    %c0_59 = arith.constant 0 : index
    %97 = vector.load %arg19[%c0_57, %c0_58, %c0_59] : memref<4x8x8xf32, #tpu.memory_space<vmem>>, vector<4x8x8xf32>
    %98 = vector.broadcast %87 : vector<4x8x1xf32> to vector<4x8x8xf32>
    %99 = arith.mulf %98, %97 : vector<4x8x8xf32>
    %100 = arith.truncf %90 : vector<4x8x8xf32> to vector<4x8x8xbf16>
    "tpu.trace_start"() <{level = 10 : i32, message = "hqk,hkd->hqd"}> : () -> ()
    %cst_60 = arith.constant dense<0.000000e+00> : vector<4x8x8xf32>
    %101 = tpu.matmul %100, %81, %cst_60 {dimension_numbers = #tpu.dot_dimension_numbers<[2], [1], [1], [2], [0, 0, 0, 1, 1, 2], [0], [0]>} : vector<4x8x8xbf16>, vector<4x8x8xbf16>, vector<4x8x8xf32> -> vector<4x8x8xf32>
    "tpu.trace_stop"() : () -> ()
    %102 = arith.addf %99, %101 : vector<4x8x8xf32>
    %c0_61 = arith.constant 0 : index
    %c0_62 = arith.constant 0 : index
    %c0_63 = arith.constant 0 : index
    %103 = vector.load %arg19[%c0_61, %c0_62, %c0_63] : memref<4x8x8xf32, #tpu.memory_space<vmem>>, vector<4x8x8xf32>
    tpu.vector_store %arg19[%c0_61, %c0_62, %c0_63], %102 {strides = array<i32>} : memref<4x8x8xf32, #tpu.memory_space<vmem>>, vector<4x8x8xf32>,
    %c0_64 = arith.constant 0 : index
    %c0_65 = arith.constant 0 : index
    %c0_66 = arith.constant 0 : index
    %104 = vector.load %arg17[%c0_64, %c0_65, %c0_66] : memref<4x8x1xf32, #tpu.memory_space<vmem>>, vector<4x8x1xf32>
    tpu.vector_store %arg17[%c0_64, %c0_65, %c0_66], %85 {strides = array<i32>} : memref<4x8x1xf32, #tpu.memory_space<vmem>>, vector<4x8x1xf32>,
    %c0_67 = arith.constant 0 : index
    %c0_68 = arith.constant 0 : index
    %c0_69 = arith.constant 0 : index
    %105 = vector.load %arg19[%c0_67, %c0_68, %c0_69] : memref<4x8x8xf32, #tpu.memory_space<vmem>>, vector<4x8x8xf32>
    %c0_70 = arith.constant 0 : index
    %c0_71 = arith.constant 0 : index
    %c0_72 = arith.constant 0 : index
    %106 = vector.load %arg18[%c0_70, %c0_71, %c0_72] : memref<4x8x1xf32, #tpu.memory_space<vmem>>, vector<4x8x1xf32>
    %107 = tpu.reciprocal %106 {approx = true} : vector<4x8x1xf32> -> vector<4x8x1xf32>
    %108 = vector.broadcast %107 : vector<4x8x1xf32> to vector<4x8x8xf32>
    %109 = arith.mulf %105, %108 : vector<4x8x8xf32>
    %110 = arith.truncf %109 : vector<4x8x8xf32> to vector<4x8x8xbf16>
    %111 = tpu.transpose %110, [1, 0, 2] : vector<4x8x8xbf16> -> vector<8x4x8xbf16>
    %112 = vector.shape_cast %111 : vector<8x4x8xbf16> to vector<8x32xbf16>
    %c0_73 = arith.constant 0 : index
    %c0_74 = arith.constant 0 : index
    %113 = vector.load %arg6[%c0_73, %c0_74] : memref<32x32xbf16, #tpu.memory_space<vmem>>, vector<32x32xbf16>
    %cst_75 = arith.constant dense<0.000000e+00> : vector<8x32xf32>
    %114 = tpu.matmul %112, %113, %cst_75 {dimension_numbers = #tpu.dot_dimension_numbers<[1], [0], [0], [1], [0, 0, 1, 1], [], []>} : vector<8x32xbf16>, vector<32x32xbf16>, vector<8x32xf32> -> vector<8x32xf32>
    %c0_76 = arith.constant 0 : index
    %c0_77 = arith.constant 0 : index
    %115 = vector.load %arg7[%c0_76, %c0_77] : memref<1x32xf32, #tpu.memory_space<vmem>>, vector<1x32xf32>
    %116 = vector.shape_cast %115 : vector<1x32xf32> to vector<32xf32>
    %117 = vector.shape_cast %116 : vector<32xf32> to vector<1x32xf32>
    %118 = vector.broadcast %117 : vector<1x32xf32> to vector<8x32xf32>
    %119 = arith.addf %114, %118 : vector<8x32xf32>
    %120 = arith.addf %1, %119 : vector<8x32xf32>
    %c0_78 = arith.constant 0 : index
    %c0_79 = arith.constant 0 : index
    %121 = vector.load %arg8[%c0_78, %c0_79] : memref<1x32xf32, #tpu.memory_space<vmem>>, vector<1x32xf32>
    %122 = vector.shape_cast %121 : vector<1x32xf32> to vector<32xf32>
    %c0_80 = arith.constant 0 : index
    %c0_81 = arith.constant 0 : index
    %123 = vector.load %arg9[%c0_80, %c0_81] : memref<1x32xf32, #tpu.memory_space<vmem>>, vector<1x32xf32>
    %124 = vector.shape_cast %123 : vector<1x32xf32> to vector<32xf32>
    %cst_82 = arith.constant dense<0.000000e+00> : vector<8xf32>
    %125 = vector.multi_reduction <add>, %120, %cst_82 [1] : vector<8x32xf32> to vector<8xf32>
    %126 = vector.shape_cast %125 : vector<8xf32> to vector<8x1xf32>
    %127 = arith.mulf %120, %120 : vector<8x32xf32>
    %cst_83 = arith.constant dense<0.000000e+00> : vector<8xf32>
    %128 = vector.multi_reduction <add>, %127, %cst_83 [1] : vector<8x32xf32> to vector<8xf32>
    %129 = vector.shape_cast %128 : vector<8xf32> to vector<8x1xf32>
    %cst_84 = arith.constant 3.125000e-02 : f32
    %130 = vector.broadcast %cst_84 : f32 to vector<8x1xf32>
    %131 = arith.mulf %126, %130 : vector<8x1xf32>
    %cst_85 = arith.constant 3.125000e-02 : f32
    %132 = vector.broadcast %cst_85 : f32 to vector<8x1xf32>
    %133 = arith.mulf %129, %132 : vector<8x1xf32>
    %134 = arith.mulf %131, %131 : vector<8x1xf32>
    %135 = arith.subf %133, %134 : vector<8x1xf32>
    %cst_86 = arith.constant 0.000000e+00 : f32
    %136 = vector.broadcast %cst_86 : f32 to vector<8x1xf32>
    %137 = arith.maximumf %135, %136 : vector<8x1xf32>
    %138 = vector.broadcast %131 : vector<8x1xf32> to vector<8x32xf32>
    %139 = arith.subf %120, %138 : vector<8x32xf32>
    %cst_87 = arith.constant 9.99999974E-6 : f32
    %140 = vector.broadcast %cst_87 : f32 to vector<8x1xf32>
    %141 = arith.addf %137, %140 : vector<8x1xf32>
    %142 = math.rsqrt %141 : vector<8x1xf32>
    %143 = vector.broadcast %142 : vector<8x1xf32> to vector<8x32xf32>
    %144 = arith.mulf %139, %143 : vector<8x32xf32>
    %145 = vector.shape_cast %122 : vector<32xf32> to vector<1x32xf32>
    %146 = vector.broadcast %145 : vector<1x32xf32> to vector<8x32xf32>
    %147 = arith.mulf %144, %146 : vector<8x32xf32>
    %148 = vector.shape_cast %124 : vector<32xf32> to vector<1x32xf32>
    %149 = vector.broadcast %148 : vector<1x32xf32> to vector<8x32xf32>
    %150 = arith.addf %147, %149 : vector<8x32xf32>
    %151 = arith.truncf %150 : vector<8x32xf32> to vector<8x32xbf16>
    %c0_88 = arith.constant 0 : index
    %c0_89 = arith.constant 0 : index
    %152 = vector.load %arg10[%c0_88, %c0_89] : memref<32x128xbf16, #tpu.memory_space<vmem>>, vector<32x128xbf16>
    %cst_90 = arith.constant dense<0.000000e+00> : vector<8x128xf32>
    %153 = tpu.matmul %151, %152, %cst_90 {dimension_numbers = #tpu.dot_dimension_numbers<[1], [0], [0], [1], [0, 0, 1, 1], [], []>} : vector<8x32xbf16>, vector<32x128xbf16>, vector<8x128xf32> -> vector<8x128xf32>
    %c0_91 = arith.constant 0 : index
    %c0_92 = arith.constant 0 : index
    %154 = vector.load %arg11[%c0_91, %c0_92] : memref<1x128xf32, #tpu.memory_space<vmem>>, vector<1x128xf32>
    %155 = vector.shape_cast %154 : vector<1x128xf32> to vector<128xf32>
    %156 = vector.shape_cast %155 : vector<128xf32> to vector<1x128xf32>
    %157 = vector.broadcast %156 : vector<1x128xf32> to vector<8x128xf32>
    %158 = arith.addf %153, %157 : vector<8x128xf32>
    %cst_93 = arith.constant 0.000000e+00 : f32
    %159 = vector.broadcast %cst_93 : f32 to vector<8x128xf32>
    %160 = arith.maximumf %158, %159 : vector<8x128xf32>
    %161 = arith.truncf %160 : vector<8x128xf32> to vector<8x128xbf16>
    %c0_94 = arith.constant 0 : index
    %c0_95 = arith.constant 0 : index
    %162 = vector.load %arg12[%c0_94, %c0_95] : memref<128x32xbf16, #tpu.memory_space<vmem>>, vector<128x32xbf16>
    %cst_96 = arith.constant dense<0.000000e+00> : vector<8x32xf32>
    %163 = tpu.matmul %161, %162, %cst_96 {dimension_numbers = #tpu.dot_dimension_numbers<[1], [0], [0], [1], [0, 0, 1, 1], [], []>} : vector<8x128xbf16>, vector<128x32xbf16>, vector<8x32xf32> -> vector<8x32xf32>
    %c0_97 = arith.constant 0 : index
    %c0_98 = arith.constant 0 : index
    %164 = vector.load %arg13[%c0_97, %c0_98] : memref<1x32xf32, #tpu.memory_space<vmem>>, vector<1x32xf32>
    %165 = vector.shape_cast %164 : vector<1x32xf32> to vector<32xf32>
    %166 = vector.shape_cast %165 : vector<32xf32> to vector<1x32xf32>
    %167 = vector.broadcast %166 : vector<1x32xf32> to vector<8x32xf32>
    %168 = arith.addf %163, %167 : vector<8x32xf32>
    %169 = arith.addf %120, %168 : vector<8x32xf32>
    %c0_99 = arith.constant 0 : index
    %c0_100 = arith.constant 0 : index
    %c0_101 = arith.constant 0 : index
    %170 = vector.load %arg14[%c0_99, %c0_100, %c0_101] : memref<1x8x32xf32, #tpu.memory_space<vmem>>, vector<1x8x32xf32>
    %171 = vector.shape_cast %170 : vector<1x8x32xf32> to vector<8x32xf32>
    %172 = vector.shape_cast %169 : vector<8x32xf32> to vector<1x8x32xf32>
    tpu.vector_store %arg14[%c0_99, %c0_100, %c0_101], %172 {strides = array<i32>} : memref<1x8x32xf32, #tpu.memory_space<vmem>>, vector<1x8x32xf32>,
    return
  }
  func.func @transform_0(%arg0: i32, %arg1: i32) -> (i32, i32, i32) {
    %c0_i32 = arith.constant 0 : i32
    %c0_i32_0 = arith.constant 0 : i32
    return %arg0, %arg1, %c0_i32 : i32, i32, i32
  }
  func.func @transform_1(%arg0: i32, %arg1: i32) -> (i32, i32) {
    %c0_i32 = arith.constant 0 : i32
    %c0_i32_0 = arith.constant 0 : i32
    %c0_i32_1 = arith.constant 0 : i32
    return %c0_i32, %c0_i32_0 : i32, i32
  }
  func.func @transform_2(%arg0: i32, %arg1: i32) -> (i32, i32) {
    %c0_i32 = arith.constant 0 : i32
    %c0_i32_0 = arith.constant 0 : i32
    %c0_i32_1 = arith.constant 0 : i32
    return %c0_i32, %c0_i32_0 : i32, i32
  }
  func.func @transform_3(%arg0: i32, %arg1: i32) -> (i32, i32) {
    %c0_i32 = arith.constant 0 : i32
    %c0_i32_0 = arith.constant 0 : i32
    %c0_i32_1 = arith.constant 0 : i32
    return %c0_i32, %c0_i32_0 : i32, i32
  }
  func.func @transform_4(%arg0: i32, %arg1: i32) -> (i32, i32) {
    %c0_i32 = arith.constant 0 : i32
    %c0_i32_0 = arith.constant 0 : i32
    %c0_i32_1 = arith.constant 0 : i32
    return %c0_i32, %c0_i32_0 : i32, i32
  }
  func.func @transform_5(%arg0: i32, %arg1: i32) -> (i32, i32) {
    %c0_i32 = arith.constant 0 : i32
    %c0_i32_0 = arith.constant 0 : i32
    %c0_i32_1 = arith.constant 0 : i32
    return %c0_i32, %c0_i32_0 : i32, i32
  }
  func.func @transform_6(%arg0: i32, %arg1: i32) -> (i32, i32) {
    %c0_i32 = arith.constant 0 : i32
    %c0_i32_0 = arith.constant 0 : i32
    %c0_i32_1 = arith.constant 0 : i32
    return %c0_i32, %c0_i32_0 : i32, i32
  }
  func.func @transform_7(%arg0: i32, %arg1: i32) -> (i32, i32) {
    %c0_i32 = arith.constant 0 : i32
    %c0_i32_0 = arith.constant 0 : i32
    %c0_i32_1 = arith.constant 0 : i32
    return %c0_i32, %c0_i32_0 : i32, i32
  }
  func.func @transform_8(%arg0: i32, %arg1: i32) -> (i32, i32) {
    %c0_i32 = arith.constant 0 : i32
    %c0_i32_0 = arith.constant 0 : i32
    %c0_i32_1 = arith.constant 0 : i32
    return %c0_i32, %c0_i32_0 : i32, i32
  }
  func.func @transform_9(%arg0: i32, %arg1: i32) -> (i32, i32) {
    %c0_i32 = arith.constant 0 : i32
    %c0_i32_0 = arith.constant 0 : i32
    %c0_i32_1 = arith.constant 0 : i32
    return %c0_i32, %c0_i32_0 : i32, i32
  }
  func.func @transform_10(%arg0: i32, %arg1: i32) -> (i32, i32) {
    %c0_i32 = arith.constant 0 : i32
    %c0_i32_0 = arith.constant 0 : i32
    %c0_i32_1 = arith.constant 0 : i32
    return %c0_i32, %c0_i32_0 : i32, i32
  }
  func.func @transform_11(%arg0: i32, %arg1: i32) -> (i32, i32) {
    %c0_i32 = arith.constant 0 : i32
    %c0_i32_0 = arith.constant 0 : i32
    %c0_i32_1 = arith.constant 0 : i32
    return %c0_i32, %c0_i32_0 : i32, i32
  }
  func.func @transform_12(%arg0: i32, %arg1: i32) -> (i32, i32, i32) {
    %c0_i32 = arith.constant 0 : i32
    %c0_i32_0 = arith.constant 0 : i32
    return %arg0, %arg1, %c0_i32 : i32, i32, i32
  }
}

</mosaic_0001>

<llo_original>
// kernel: tpu_custom_call.1
$region0: #{tpu_custom_call.1}
  #allocation0 [shape = 'u32[]', space=smem, size = 0x4, offset = 0x4, fixed_abs, tag = 'smem constant byte address 0x4 - core index']
  #allocation1 [shape = 'u32[72,128]{1,0:T(1,128)}', space=vmem, size = 0x9000, scoped, tag = 'internal scratch']
  #allocation2 [shape = 'bf16[2,4,8,8]{3,2,1,0:T(8,128)(2,1)}', space=vmem, size = 0x4000, scoped, tag = 'scratch operand']
  #allocation3 [shape = 'bf16[2,4,8,8]{3,2,1,0:T(8,128)(2,1)}', space=vmem, size = 0x4000, scoped, tag = 'scratch operand']
  #allocation4 [shape = 'f32[4,8,1]{2,1,0:T(8,128)}', space=vmem, size = 0x4000, scoped, tag = 'scratch operand']
  #allocation5 [shape = 'f32[4,8,1]{2,1,0:T(8,128)}', space=vmem, size = 0x4000, scoped, tag = 'scratch operand']
  #allocation6 [shape = 'f32[4,8,8]{2,1,0:T(8,128)}', space=vmem, size = 0x4000, scoped, tag = 'scratch operand']
  %s0 = inlined_call_operand.vmem [shape: f32[2,16,32], index: 0, kind: input, shape index: {}]
  %s1 = inlined_call_operand.hbm [shape: f32[1,32], index: 1, kind: input, shape index: {}]
  %s2 = inlined_call_operand.vmem [shape: f32[1,32], index: 2, kind: input, shape index: {}]
  %s3 = inlined_call_operand.vmem [shape: bf16[32,96], index: 3, kind: input, shape index: {}]
  %s4 = inlined_call_operand.vmem [shape: bf16[32,32], index: 4, kind: input, shape index: {}]
  %s5 = inlined_call_operand.vmem [shape: f32[1,32], index: 5, kind: input, shape index: {}]
  %s6 = inlined_call_operand.vmem [shape: f32[1,32], index: 6, kind: input, shape index: {}]
  %s7 = inlined_call_operand.vmem [shape: f32[1,32], index: 7, kind: input, shape index: {}]
  %s8 = inlined_call_operand.vmem [shape: bf16[32,128], index: 8, kind: input, shape index: {}]
  %s9 = inlined_call_operand.vmem [shape: f32[1,128], index: 9, kind: input, shape index: {}]
  %s10 = inlined_call_operand.vmem [shape: bf16[128,32], index: 10, kind: input, shape index: {}]
  %s11 = inlined_call_operand.vmem [shape: f32[1,32], index: 11, kind: input, shape index: {}]
  %s12 = inlined_call_operand.hbm [shape: f32[2,16,32], index: 12, kind: output, shape index: {}]
  %s13 = sld [smem:[#allocation0]]
  $region92: #{tpu_custom_call.1} parent=0
    _
  %s15 = ssub.s32 1, %s13
  %s16 = scalar_select 0, %s15, %s13
  $region1: #{tpu_custom_call.1} parent=0
    #allocation7 [shape = 'u8[512]{0}', space=vmem, size = 0x400, scoped, tag = 'input window, operand 1, single buffered']
    #allocation8 [shape = 's32[2]{0}', space=sflag, size = 0x8, scoped, tag = 'scoped memory for tpu_custom_call.1']
    #allocation9 [shape = 's32[2]{0}', space=sflag, size = 0x8, scoped, tag = 'scoped memory for tpu_custom_call.1']
    #allocation10 [shape = 'u8[8192]{0}', space=vmem, size = 0x2000, scoped, tag = 'output window, operand 0']
    %17 = vsyncpa [#allocation8], 0
    %18 = vsyncpa [#allocation9], 0
    %s19 = scalar_lea.sflag [#allocation9], 1
    %20 = vsyncpa %s19, 0
    loop: start=0, step=1, limit=6
    $region2: #{tpu_custom_call.1} parent=1 // loop_pre_header
      _
    $region3: #{tpu_custom_call.1} parent=1 // loop_header
      %s22 = sphi 0, %s26
      %p23 = scmp.ge.s32.totalorder %s22, 6
      %s29 = sphi 0, %s41
      %s30 = sphi 0, %s37
      %s31 = sphi 0, %s29
      %s32 = sphi 0, %s30
      %s33 = sphi 0, %s31
      %s34 = sphi 0, %s32
      %s46 = sphi 0, %s48
      %s49 = sphi 0, %s46
      %s50 = sphi 0, %s49
      %s66 = sphi 0, %s50
      %s70 = sphi 0, %s70
      %s72 = sphi 0, %s70
      %s73 = sphi 0, %s72
      %s87 = sphi 0, %s73
      %s91 = sphi 0, %s91
      %s93 = sphi 0, %s91
      %s94 = sphi 0, %s93
      %s108 = sphi 0, %s94
      %s112 = sphi 0, %s112
      %s114 = sphi 0, %s112
      %s115 = sphi 0, %s114
      %s129 = sphi 0, %s115
      %s133 = sphi 0, %s133
      %s135 = sphi 0, %s133
      %s136 = sphi 0, %s135
      %s150 = sphi 0, %s136
      %s154 = sphi 0, %s154
      %s156 = sphi 0, %s154
      %s157 = sphi 0, %s156
      %s171 = sphi 0, %s157
      %s175 = sphi 0, %s175
      %s177 = sphi 0, %s175
      %s178 = sphi 0, %s177
      %s192 = sphi 0, %s178
      %s196 = sphi 0, %s196
      %s198 = sphi 0, %s196
      %s199 = sphi 0, %s198
      %s213 = sphi 0, %s199
      %s217 = sphi 0, %s217
      %s219 = sphi 0, %s217
      %s220 = sphi 0, %s219
      %s234 = sphi 0, %s220
      %s238 = sphi 0, %s238
      %s240 = sphi 0, %s238
      %s241 = sphi 0, %s240
      %s255 = sphi 0, %s241
      %s259 = sphi 0, %s259
      %s261 = sphi 0, %s259
      %s262 = sphi 0, %s261
      %s276 = sphi 0, %s262
      %s280 = sphi 0, %s280
      %s282 = sphi 0, %s280
      %s283 = sphi 0, %s282
      %s297 = sphi 0, %s283
      %s305 = sphi 0, %s307
      %s308 = sphi 0, %s305
      %s309 = sphi 0, %s308
      %s325 = sphi 0, %s309
    $region4: #{tpu_custom_call.1} parent=1 // loop_header_branch
      %25 = sbr.rel (%p23) target = $region8
    $region5: #{tpu_custom_call.1} parent=1 // loop_body
      %s27 = ssub.s32 %s22, 1
      %s28 = ssub.s32 %s22, 2
      %s35 = sadd.s32 1, %s30
      %p36 = scmp.ge.s32.totalorder %s35, 2
      %s37 = scalar_select %p36, 0, %s35
      %s38 = sadd.s32 1, %s29
      %s39 = scalar_select %p36, %s38, %s29
      %p40 = scmp.ge.s32.totalorder %s39, 2
      %s41 = scalar_select %p40, 0, %s39
      %s42 = ssub.s32 %s29, %s41
      %s43 = ssub.s32 %s30, %s37
      %s44 = sor.u32 %s42, %s43
      %p45 = scmp.eq.s32.totalorder %s44, 0
      %s47 = sadd.s32 %s46, 1
      %s48 = scalar_select %p45, %s46, %s47
      %p51 = pneg %p45
      %p52 = scmp.eq.s32.totalorder %s22, 3
      %p53 = por %p51, %p52
      %p54 = scmp.ne.s32.totalorder %s46, %s49
      %p55 = scmp.eq.s32.totalorder %s22, 0
      %p56 = por %p54, %p55
      %p57 = scmp.ne.s32.totalorder %s46, %s49
      %p58 = scmp.eq.s32.totalorder %s27, 3
      %p59 = por %p57, %p58
      %p60 = scmp.ne.s32.totalorder %s49, %s50
      %p61 = scmp.eq.s32.totalorder %s27, 0
      %p62 = por %p60, %p61
      %p63 = scmp.ne.s32.totalorder %s49, %s50
      %p64 = scmp.eq.s32.totalorder %s28, 3
      %p65 = por %p63, %p64
      %p67 = scmp.ne.s32.totalorder %s50, %s66
      %p68 = scmp.eq.s32.totalorder %s28, 0
      %p69 = por %p67, %p68
      %s71 = sadd.s32 %s70, 1
      %p74 = scmp.eq.s32.totalorder %s22, 3
      %p75 = scmp.ne.s32.totalorder %s70, %s72
      %p76 = scmp.eq.s32.totalorder %s22, 0
      %p77 = por %p75, %p76
      %p78 = scmp.ne.s32.totalorder %s70, %s72
      %p79 = scmp.eq.s32.totalorder %s27, 3
      %p80 = por %p78, %p79
      %p81 = scmp.ne.s32.totalorder %s72, %s73
      %p82 = scmp.eq.s32.totalorder %s27, 0
      %p83 = por %p81, %p82
      %p84 = scmp.ne.s32.totalorder %s72, %s73
      %p85 = scmp.eq.s32.totalorder %s28, 3
      %p86 = por %p84, %p85
      %p88 = scmp.ne.s32.totalorder %s73, %s87
      %p89 = scmp.eq.s32.totalorder %s28, 0
      %p90 = por %p88, %p89
      %s92 = sadd.s32 %s91, 1
      %p95 = scmp.eq.s32.totalorder %s22, 3
      %p96 = scmp.ne.s32.totalorder %s91, %s93
      %p97 = scmp.eq.s32.totalorder %s22, 0
      %p98 = por %p96, %p97
      %p99 = scmp.ne.s32.totalorder %s91, %s93
      %p100 = scmp.eq.s32.totalorder %s27, 3
      %p101 = por %p99, %p100
      %p102 = scmp.ne.s32.totalorder %s93, %s94
      %p103 = scmp.eq.s32.totalorder %s27, 0
      %p104 = por %p102, %p103
      %p105 = scmp.ne.s32.totalorder %s93, %s94
      %p106 = scmp.eq.s32.totalorder %s28, 3
      %p107 = por %p105, %p106
      %p109 = scmp.ne.s32.totalorder %s94, %s108
      %p110 = scmp.eq.s32.totalorder %s28, 0
      %p111 = por %p109, %p110
      %s113 = sadd.s32 %s112, 1
      %p116 = scmp.eq.s32.totalorder %s22, 3
      %p117 = scmp.ne.s32.totalorder %s112, %s114
      %p118 = scmp.eq.s32.totalorder %s22, 0
      %p119 = por %p117, %p118
      %p120 = scmp.ne.s32.totalorder %s112, %s114
      %p121 = scmp.eq.s32.totalorder %s27, 3
      %p122 = por %p120, %p121
      %p123 = scmp.ne.s32.totalorder %s114, %s115
      %p124 = scmp.eq.s32.totalorder %s27, 0
      %p125 = por %p123, %p124
      %p126 = scmp.ne.s32.totalorder %s114, %s115
      %p127 = scmp.eq.s32.totalorder %s28, 3
      %p128 = por %p126, %p127
      %p130 = scmp.ne.s32.totalorder %s115, %s129
      %p131 = scmp.eq.s32.totalorder %s28, 0
      %p132 = por %p130, %p131
      %s134 = sadd.s32 %s133, 1
      %p137 = scmp.eq.s32.totalorder %s22, 3
      %p138 = scmp.ne.s32.totalorder %s133, %s135
      %p139 = scmp.eq.s32.totalorder %s22, 0
      %p140 = por %p138, %p139
      %p141 = scmp.ne.s32.totalorder %s133, %s135
      %p142 = scmp.eq.s32.totalorder %s27, 3
      %p143 = por %p141, %p142
      %p144 = scmp.ne.s32.totalorder %s135, %s136
      %p145 = scmp.eq.s32.totalorder %s27, 0
      %p146 = por %p144, %p145
      %p147 = scmp.ne.s32.totalorder %s135, %s136
      %p148 = scmp.eq.s32.totalorder %s28, 3
      %p149 = por %p147, %p148
      %p151 = scmp.ne.s32.totalorder %s136, %s150
      %p152 = scmp.eq.s32.totalorder %s28, 0
      %p153 = por %p151, %p152
      %s155 = sadd.s32 %s154, 1
      %p158 = scmp.eq.s32.totalorder %s22, 3
      %p159 = scmp.ne.s32.totalorder %s154, %s156
      %p160 = scmp.eq.s32.totalorder %s22, 0
      %p161 = por %p159, %p160
      %p162 = scmp.ne.s32.totalorder %s154, %s156
      %p163 = scmp.eq.s32.totalorder %s27, 3
      %p164 = por %p162, %p163
      %p165 = scmp.ne.s32.totalorder %s156, %s157
      %p166 = scmp.eq.s32.totalorder %s27, 0
      %p167 = por %p165, %p166
      %p168 = scmp.ne.s32.totalorder %s156, %s157
      %p169 = scmp.eq.s32.totalorder %s28, 3
      %p170 = por %p168, %p169
      %p172 = scmp.ne.s32.totalorder %s157, %s171
      %p173 = scmp.eq.s32.totalorder %s28, 0
      %p174 = por %p172, %p173
      %s176 = sadd.s32 %s175, 1
      %p179 = scmp.eq.s32.totalorder %s22, 3
      %p180 = scmp.ne.s32.totalorder %s175, %s177
      %p181 = scmp.eq.s32.totalorder %s22, 0
      %p182 = por %p180, %p181
      %p183 = scmp.ne.s32.totalorder %s175, %s177
      %p184 = scmp.eq.s32.totalorder %s27, 3
      %p185 = por %p183, %p184
      %p186 = scmp.ne.s32.totalorder %s177, %s178
      %p187 = scmp.eq.s32.totalorder %s27, 0
      %p188 = por %p186, %p187
      %p189 = scmp.ne.s32.totalorder %s177, %s178
      %p190 = scmp.eq.s32.totalorder %s28, 3
      %p191 = por %p189, %p190
      %p193 = scmp.ne.s32.totalorder %s178, %s192
      %p194 = scmp.eq.s32.totalorder %s28, 0
      %p195 = por %p193, %p194
      %s197 = sadd.s32 %s196, 1
      %p200 = scmp.eq.s32.totalorder %s22, 3
      %p201 = scmp.ne.s32.totalorder %s196, %s198
      %p202 = scmp.eq.s32.totalorder %s22, 0
      %p203 = por %p201, %p202
      %p204 = scmp.ne.s32.totalorder %s196, %s198
      %p205 = scmp.eq.s32.totalorder %s27, 3
      %p206 = por %p204, %p205
      %p207 = scmp.ne.s32.totalorder %s198, %s199
      %p208 = scmp.eq.s32.totalorder %s27, 0
      %p209 = por %p207, %p208
      %p210 = scmp.ne.s32.totalorder %s198, %s199
      %p211 = scmp.eq.s32.totalorder %s28, 3
      %p212 = por %p210, %p211
      %p214 = scmp.ne.s32.totalorder %s199, %s213
      %p215 = scmp.eq.s32.totalorder %s28, 0
      %p216 = por %p214, %p215
      %s218 = sadd.s32 %s217, 1
      %p221 = scmp.eq.s32.totalorder %s22, 3
      %p222 = scmp.ne.s32.totalorder %s217, %s219
      %p223 = scmp.eq.s32.totalorder %s22, 0
      %p224 = por %p222, %p223
      %p225 = scmp.ne.s32.totalorder %s217, %s219
      %p226 = scmp.eq.s32.totalorder %s27, 3
      %p227 = por %p225, %p226
      %p228 = scmp.ne.s32.totalorder %s219, %s220
      %p229 = scmp.eq.s32.totalorder %s27, 0
      %p230 = por %p228, %p229
      %p231 = scmp.ne.s32.totalorder %s219, %s220
      %p232 = scmp.eq.s32.totalorder %s28, 3
      %p233 = por %p231, %p232
      %p235 = scmp.ne.s32.totalorder %s220, %s234
      %p236 = scmp.eq.s32.totalorder %s28, 0
      %p237 = por %p235, %p236
      %s239 = sadd.s32 %s238, 1
      %p242 = scmp.eq.s32.totalorder %s22, 3
      %p243 = scmp.ne.s32.totalorder %s238, %s240
      %p244 = scmp.eq.s32.totalorder %s22, 0
      %p245 = por %p243, %p244
      %p246 = scmp.ne.s32.totalorder %s238, %s240
      %p247 = scmp.eq.s32.totalorder %s27, 3
      %p248 = por %p246, %p247
      %p249 = scmp.ne.s32.totalorder %s240, %s241
      %p250 = scmp.eq.s32.totalorder %s27, 0
      %p251 = por %p249, %p250
      %p252 = scmp.ne.s32.totalorder %s240, %s241
      %p253 = scmp.eq.s32.totalorder %s28, 3
      %p254 = por %p252, %p253
      %p256 = scmp.ne.s32.totalorder %s241, %s255
      %p257 = scmp.eq.s32.totalorder %s28, 0
      %p258 = por %p256, %p257
      %s260 = sadd.s32 %s259, 1
      %p263 = scmp.eq.s32.totalorder %s22, 3
      %p264 = scmp.ne.s32.totalorder %s259, %s261
      %p265 = scmp.eq.s32.totalorder %s22, 0
      %p266 = por %p264, %p265
      %p267 = scmp.ne.s32.totalorder %s259, %s261
      %p268 = scmp.eq.s32.totalorder %s27, 3
      %p269 = por %p267, %p268
      %p270 = scmp.ne.s32.totalorder %s261, %s262
      %p271 = scmp.eq.s32.totalorder %s27, 0
      %p272 = por %p270, %p271
      %p273 = scmp.ne.s32.totalorder %s261, %s262
      %p274 = scmp.eq.s32.totalorder %s28, 3
      %p275 = por %p273, %p274
      %p277 = scmp.ne.s32.totalorder %s262, %s276
      %p278 = scmp.eq.s32.totalorder %s28, 0
      %p279 = por %p277, %p278
      %s281 = sadd.s32 %s280, 1
      %p284 = scmp.eq.s32.totalorder %s22, 3
      %p285 = scmp.ne.s32.totalorder %s280, %s282
      %p286 = scmp.eq.s32.totalorder %s22, 0
      %p287 = por %p285, %p286
      %p288 = scmp.ne.s32.totalorder %s280, %s282
      %p289 = scmp.eq.s32.totalorder %s27, 3
      %p290 = por %p288, %p289
      %p291 = scmp.ne.s32.totalorder %s282, %s283
      %p292 = scmp.eq.s32.totalorder %s27, 0
      %p293 = por %p291, %p292
      %p294 = scmp.ne.s32.totalorder %s282, %s283
      %p295 = scmp.eq.s32.totalorder %s28, 3
      %p296 = por %p294, %p295
      %p298 = scmp.ne.s32.totalorder %s283, %s297
      %p299 = scmp.eq.s32.totalorder %s28, 0
      %p300 = por %p298, %p299
      %s301 = ssub.s32 %s29, %s41
      %s302 = ssub.s32 %s30, %s37
      %s303 = sor.u32 %s301, %s302
      %p304 = scmp.eq.s32.totalorder %s303, 0
      %s306 = sadd.s32 %s305, 1
      %s307 = scalar_select %p304, %s305, %s306
      %p310 = pneg %p304
      %p311 = scmp.eq.s32.totalorder %s22, 3
      %p312 = por %p310, %p311
      %p313 = scmp.ne.s32.totalorder %s305, %s308
      %p314 = scmp.eq.s32.totalorder %s22, 0
      %p315 = por %p313, %p314
      %p316 = scmp.ne.s32.totalorder %s305, %s308
      %p317 = scmp.eq.s32.totalorder %s27, 3
      %p318 = por %p316, %p317
      %p319 = scmp.ne.s32.totalorder %s308, %s309
      %p320 = scmp.eq.s32.totalorder %s27, 0
      %p321 = por %p319, %p320
      %p322 = scmp.ne.s32.totalorder %s308, %s309
      %p323 = scmp.eq.s32.totalorder %s28, 3
      %p324 = por %p322, %p323
      %p326 = scmp.ne.s32.totalorder %s309, %s325
      %p327 = scmp.eq.s32.totalorder %s28, 0
      %p328 = por %p326, %p327
      %p329 = scmp.le.s32.totalorder 1, %s22
      %p330 = scmp.lt.s32.totalorder %s22, 5
      %p331 = pnand %p329, %p330
      %p332 = pneg %p331
      // Predicated region
      $region9: #{tpu_custom_call.1} parent=5 // pred_check
        _
      $region10: #{tpu_custom_call.1} parent=5 // pred_check_branch
        %334 = sbr.rel (%p331) target = $region12
      $region11: #{tpu_custom_call.1} parent=5 // pred_region
        %s335 = ssub.s32 %s22, 1
        // Predicated region
        $region13: #{tpu_custom_call.1} parent=11 // pred_check
          %p336 = pneg %p83
        $region14: #{tpu_custom_call.1} parent=11 // pred_check_branch
          %338 = sbr.rel (%p336) target = $region16
        $region15: #{tpu_custom_call.1} parent=11 // pred_region
          %340 = vsyncadd [#allocation8], 0
          %s342 = sshll.u32 %s1, 4
          %s343 = int_to_ptr.hbm [resolvable:$true] %s342
          %s344 = sshll.u32 [#allocation7], 4
          %s345 = int_to_ptr.vmem [resolvable:$true] %s344
          %347 = dma.hbm_to_vmem [thread:$0]  %s343, 16, %s345, [#allocation8]
        $region16: #{tpu_custom_call.1} parent=11 // pred_fallthru
          _
        // Predicated region
        $region17: #{tpu_custom_call.1} parent=11 // pred_check
          %p348 = pneg %p104
        $region18: #{tpu_custom_call.1} parent=11 // pred_check_branch
          %350 = sbr.rel (%p348) target = $region20
        $region19: #{tpu_custom_call.1} parent=11 // pred_region
          _
        $region20: #{tpu_custom_call.1} parent=11 // pred_fallthru
          _
        // Predicated region
        $region21: #{tpu_custom_call.1} parent=11 // pred_check
          %p351 = pneg %p125
        $region22: #{tpu_custom_call.1} parent=11 // pred_check_branch
          %353 = sbr.rel (%p351) target = $region24
        $region23: #{tpu_custom_call.1} parent=11 // pred_region
          _
        $region24: #{tpu_custom_call.1} parent=11 // pred_fallthru
          _
        // Predicated region
        $region25: #{tpu_custom_call.1} parent=11 // pred_check
          %p354 = pneg %p146
        $region26: #{tpu_custom_call.1} parent=11 // pred_check_branch
          %356 = sbr.rel (%p354) target = $region28
        $region27: #{tpu_custom_call.1} parent=11 // pred_region
          _
        $region28: #{tpu_custom_call.1} parent=11 // pred_fallthru
          _
        // Predicated region
        $region29: #{tpu_custom_call.1} parent=11 // pred_check
          %p357 = pneg %p167
        $region30: #{tpu_custom_call.1} parent=11 // pred_check_branch
          %359 = sbr.rel (%p357) target = $region32
        $region31: #{tpu_custom_call.1} parent=11 // pred_region
          _
        $region32: #{tpu_custom_call.1} parent=11 // pred_fallthru
          _
        // Predicated region
        $region33: #{tpu_custom_call.1} parent=11 // pred_check
          %p360 = pneg %p188
        $region34: #{tpu_custom_call.1} parent=11 // pred_check_branch
          %362 = sbr.rel (%p360) target = $region36
        $region35: #{tpu_custom_call.1} parent=11 // pred_region
          _
        $region36: #{tpu_custom_call.1} parent=11 // pred_fallthru
          _
        // Predicated region
        $region37: #{tpu_custom_call.1} parent=11 // pred_check
          %p363 = pneg %p209
        $region38: #{tpu_custom_call.1} parent=11 // pred_check_branch
          %365 = sbr.rel (%p363) target = $region40
        $region39: #{tpu_custom_call.1} parent=11 // pred_region
          _
        $region40: #{tpu_custom_call.1} parent=11 // pred_fallthru
          _
        // Predicated region
        $region41: #{tpu_custom_call.1} parent=11 // pred_check
          %p366 = pneg %p230
        $region42: #{tpu_custom_call.1} parent=11 // pred_check_branch
          %368 = sbr.rel (%p366) target = $region44
        $region43: #{tpu_custom_call.1} parent=11 // pred_region
          _
        $region44: #{tpu_custom_call.1} parent=11 // pred_fallthru
          _
        // Predicated region
        $region45: #{tpu_custom_call.1} parent=11 // pred_check
          %p369 = pneg %p251
        $region46: #{tpu_custom_call.1} parent=11 // pred_check_branch
          %371 = sbr.rel (%p369) target = $region48
        $region47: #{tpu_custom_call.1} parent=11 // pred_region
          _
        $region48: #{tpu_custom_call.1} parent=11 // pred_fallthru
          _
        // Predicated region
        $region49: #{tpu_custom_call.1} parent=11 // pred_check
          %p372 = pneg %p272
        $region50: #{tpu_custom_call.1} parent=11 // pred_check_branch
          %374 = sbr.rel (%p372) target = $region52
        $region51: #{tpu_custom_call.1} parent=11 // pred_region
          _
        $region52: #{tpu_custom_call.1} parent=11 // pred_fallthru
          _
        // Predicated region
        $region53: #{tpu_custom_call.1} parent=11 // pred_check
          %p375 = pneg %p293
        $region54: #{tpu_custom_call.1} parent=11 // pred_check_branch
          %377 = sbr.rel (%p375) target = $region56
        $region55: #{tpu_custom_call.1} parent=11 // pred_region
          _
        $region56: #{tpu_custom_call.1} parent=11 // pred_fallthru
          _
      $region12: #{tpu_custom_call.1} parent=5 // pred_fallthru
        _
      %p378 = scmp.lt.s32.totalorder %s22, 4
      // Predicated region
      $region57: #{tpu_custom_call.1} parent=5 // pred_check
        %p379 = pneg %p378
      $region58: #{tpu_custom_call.1} parent=5 // pred_check_branch
        %381 = sbr.rel (%p379) target = $region60
      $region59: #{tpu_custom_call.1} parent=5 // pred_region
        // Predicated region
        $region61: #{tpu_custom_call.1} parent=59 // pred_check
          %p382 = pneg %p56
        $region62: #{tpu_custom_call.1} parent=59 // pred_check_branch
          %384 = sbr.rel (%p382) target = $region64
        $region63: #{tpu_custom_call.1} parent=59 // pred_region
          %p385 = scmp.lt.s32.totalorder %s29, 1
          %s386 = scalar_select %p385, %s29, 1
          %p387 = scmp.lt.s32.totalorder %s30, 1
          %s388 = scalar_select %p387, %s30, 1
          %s389 = smul.addr %s386, 2
          %s390 = sadd.s32 %s388, %s389
          %s391 = smul.addr %s390, 8
          %s392 = scalar_lea.vmem %s0, %s391
        $region64: #{tpu_custom_call.1} parent=59 // pred_fallthru
          _
      $region60: #{tpu_custom_call.1} parent=5 // pred_fallthru
        _
      %p393 = scmp.le.s32.totalorder 1, %s22
      %p394 = scmp.lt.s32.totalorder %s22, 5
      %p395 = pnand %p393, %p394
      %p396 = pneg %p395
      // Predicated region
      $region65: #{tpu_custom_call.1} parent=5 // pred_check
        _
      $region66: #{tpu_custom_call.1} parent=5 // pred_check_branch
        %398 = sbr.rel (%p395) target = $region68
      $region67: #{tpu_custom_call.1} parent=5 // pred_region
        %s399 = ssub.s32 %s22, 1
        // Predicated region
        $region69: #{tpu_custom_call.1} parent=67 // pred_check
          %p400 = pneg %p83
        $region70: #{tpu_custom_call.1} parent=67 // pred_check_branch
          %402 = sbr.rel (%p400) target = $region72
        $region71: #{tpu_custom_call.1} parent=67 // pred_region
          %404 = dma.done [#allocation8], 16
        $region72: #{tpu_custom_call.1} parent=67 // pred_fallthru
          _
        %p405 = scmp.lt.s32.totalorder %s31, 1
        %s406 = scalar_select %p405, %s31, 1
        %p407 = scmp.lt.s32.totalorder %s32, 1
        %s408 = scalar_select %p407, %s32, 1
        %s409 = smul.addr %s406, 2
        %s410 = sadd.s32 %s408, %s409
        %s411 = smul.addr %s410, 8
        %s412 = scalar_lea.vmem %s0, %s411
        %p413 = pneg %p62
        %p414 = pneg %p59
        %p415 = pneg %p83
        %p416 = pneg %p80
        %p417 = pneg %p104
        %p418 = pneg %p101
        %p419 = pneg %p125
        %p420 = pneg %p122
        %p421 = pneg %p146
        %p422 = pneg %p143
        %p423 = pneg %p167
        %p424 = pneg %p164
        %p425 = pneg %p188
        %p426 = pneg %p185
        %p427 = pneg %p209
        %p428 = pneg %p206
        %p429 = pneg %p230
        %p430 = pneg %p227
        %p431 = pneg %p251
        %p432 = pneg %p248
        %p433 = pneg %p272
        %p434 = pneg %p269
        %p435 = pneg %p293
        %p436 = pneg %p290
        %p437 = pneg %p321
        %p438 = pneg %p318
        %s439 = sand.u32 %s308, 1
        %s440 = scalar_lea.sflag [#allocation9], %s439
        %s441 = sand.u32 %s308, 1
        %s442 = smul.addr %s441, 8
        %s443 = scalar_lea.vmem [#allocation10], %s442
        %p444 = scmp.lt.s32.totalorder %s31, 1
        %s445 = scalar_select %p444, %s31, 1
        %p446 = scmp.lt.s32.totalorder %s32, 1
        %s447 = scalar_select %p446, %s32, 1
        %s448 = smul.addr %s445, 2
        %s449 = sadd.s32 %s447, %s448
        %s450 = smul.addr %s449, 8
        %s451 = scalar_lea.vmem %s0, %s450
        %v453 = vld [vmem:[%s451] sm:$0xff]
        %v454 = vld [vmem:[#allocation7] sm:$0x1]
        %v455 = vld [vmem:[%s2] sm:$0x1]
        %vm456 = vcmask 261120
        %v457 = vsel %vm456, %v453, 0.0
        %458 = vadd.xlane.f32.xlu0 %v457
        %v459 = vpop.xlane.xlu0 %458
        %v460 = vmul.f32 %v453, %v453
        %v461 = vsel %vm456, %v460, 0.0
        %462 = vadd.xlane.f32.xlu0 %v461
        %v463 = vpop.xlane.xlu0 %462
        %v464 = vmul.f32 %v459, 0.03125
        %v465 = vmul.f32 %v463, 0.03125
        %v466 = vmul.f32 %v464, %v464
        %v467 = vsub.f32 %v465, %v466
        %v468 = vmax.f32 %v467, 0.0
        %v469 = vsub.f32 %v453, %v464
        %v470 = vadd.f32 %v468, 1e-05
        %v471 = vrsqrt.pop %v470
        %v472 = vmul.f32 %v471, %v470
        %v473 = vmul.f32 %v472, %v471
        %v474 = vmul.f32 0.5, %v473
        %v475 = vsub.f32 1.5, %v474
        %v476 = vmul.f32 %v471, %v475
        %vm477 = vweird.f32 %v470
        %vm478 = vweird.f32 %v471
        %vm479 = vmor %vm477, %vm478
        %v480 = vsel %vm479, %v471, %v476
        %v481 = vmul.f32 %v469, %v480
        %v483 = vperm.slane %v454, 0
        %v485 = vmul.f32 %v481, %v483
        %v487 = vperm.slane %v455, 0
        %v489 = vadd.f32 %v485, %v487
        %v490 = vpack.c.bf16 %v489, %v489
        %v491 = vld [vmem:[%s3] sm:$0xf]
        %v492 = vld [vmem:[%s3 + $0x4] sm:$0xf]
        %v493 = vld [vmem:[%s3 + $0x8] sm:$0xf]
        %v494 = vld [vmem:[%s3 + $0xc] sm:$0xf]
        %v499 = vunpack.c.l.b16 %v491
        %v500 = vunpack.c.l.b16 %v492
        %v501 = vunpack.c.l.b16 %v493
        %v502 = vunpack.c.l.b16 %v494
        %v503 = vpack.c.b16 %v500, %v499
        %v504 = vpack.c.b16 %v502, %v501
        %v508 = vsel %vm456, %v490, 0
        %510 = vmatpush.bf16.msra.mxu0 0
        %511 = vmatpush.bf16.msra.mxu0 0
        %512 = vmatpush.bf16.msra.mxu0 0
        %513 = vmatpush.bf16.msra.mxu0 0
        %514 = vmatpush.bf16.msra.mxu0 0
        %515 = vmatpush.bf16.msra.mxu0 0
        %516 = vmatpush.bf16.msra.mxu0 %v504
        %517 = vmatpush.bf16.msra.mxu0 %v503
        %518 = vmatmul.bf16.gmra.mxu0 %v508
        %v519 = vpop.f32.mrf.mxu0
        %v520 = vadd.f32 0.0, %v519
        %v521 = vpop.f32.mrf.mxu0
        %522 = vdwg.mxu0
        %v523 = vpack.c.bf16 %v520, %v520
        %525 = vrot.lane.b32.xlu0 %v523, 120
        %v526 = vpop.permute.xlu0 %525
        %527 = vrot.lane.b32.xlu0 %v523, 112
        %v528 = vpop.permute.xlu0 %527
        %529 = vrot.lane.b32.xlu0 %v523, 104
        %v530 = vpop.permute.xlu0 %529
        %v533 = vpack.i.b16 %v526, %v523
        %v534 = vshrl.u32 %v523, 16
        %v535 = vshrl.u32 %v526, 16
        %v536 = vpack.i.b16 %v535, %v534
        %v539 = vpack.i.b16 %v530, %v528
        %v540 = vshrl.u32 %v528, 16
        %v541 = vshrl.u32 %v530, 16
        %v542 = vpack.i.b16 %v541, %v540
        %v545 = vunpack.c.l.s4 1983009808
        %v546 = vunpack.c.0.s8 %v545
        %v547 = vperm.slane %v533, %v546
        %v550 = vunpack.c.l.s4 1983009808
        %v551 = vunpack.c.0.s8 %v550
        %v552 = vperm.slane %v539, %v551
        %v553 = vrot.slane %v552, 4
        %vm554 = vcmask 1047556
        %v555 = vsel %vm554, %v553, %v547
        %v556 = vrot.slane %v547, 4
        %v557 = vsel %vm554, %v552, %v556
        %v559 = vunpack.c.l.s4 1934713408
        %v560 = vunpack.c.0.s8 %v559
        %v561 = vperm.slane %v555, %v560
        %v563 = vunpack.c.l.s4 1934713408
        %v564 = vunpack.c.0.s8 %v563
        %v565 = vperm.slane %v557, %v564
        %v566 = vrot.slane %v561, 4
        %v567 = vsel %vm554, 0, %v566
        %v568 = vrot.slane %v565, 4
        %v569 = vsel %vm554, 0, %v568
        %v572 = vunpack.c.l.s4 1983009808
        %v573 = vunpack.c.0.s8 %v572
        %v574 = vperm.slane %v536, %v573
        %v577 = vunpack.c.l.s4 1983009808
        %v578 = vunpack.c.0.s8 %v577
        %v579 = vperm.slane %v542, %v578
        %v580 = vrot.slane %v579, 4
        %v581 = vsel %vm554, %v580, %v574
        %v582 = vrot.slane %v574, 4
        %v583 = vsel %vm554, %v579, %v582
        %v585 = vunpack.c.l.s4 1934713408
        %v586 = vunpack.c.0.s8 %v585
        %v587 = vperm.slane %v581, %v586
        %v589 = vunpack.c.l.s4 1934713408
        %v590 = vunpack.c.0.s8 %v589
        %v591 = vperm.slane %v583, %v590
        %v592 = vrot.slane %v587, 4
        %v593 = vsel %vm554, 0, %v592
        %v594 = vrot.slane %v591, 4
        %v595 = vsel %vm554, 0, %v594
        %v596 = vsel %vm554, %v568, %v561
        %v598 = vunpack.c.l.s4 1983009808
        %v599 = vunpack.c.0.s8 %v598
        %v600 = vperm.slane %v596, %v599
        %v601 = vrot.slane %v569, 4
        %v602 = vsel %vm554, %v601, %v567
        %v604 = vunpack.c.l.s4 1983009808
        %v605 = vunpack.c.0.s8 %v604
        %v606 = vperm.slane %v602, %v605
        %v607 = vrot.slane %v606, 4
        %v608 = vsel %vm554, %v607, %v600
        %v610 = vunpack.c.l.s4 1934713408
        %v611 = vunpack.c.0.s8 %v610
        %v612 = vperm.slane %v608, %v611
        %v613 = vrot.slane %v612, 4
        %v614 = vsel %vm554, 0, %v613
        %v615 = vsel %vm554, %v594, %v587
        %v617 = vunpack.c.l.s4 1983009808
        %v618 = vunpack.c.0.s8 %v617
        %v619 = vperm.slane %v615, %v618
        %v620 = vrot.slane %v595, 4
        %v621 = vsel %vm554, %v620, %v593
        %v623 = vunpack.c.l.s4 1983009808
        %v624 = vunpack.c.0.s8 %v623
        %v625 = vperm.slane %v621, %v624
        %v626 = vrot.slane %v625, 4
        %v627 = vsel %vm554, %v626, %v619
        %v629 = vunpack.c.l.s4 1934713408
        %v630 = vunpack.c.0.s8 %v629
        %v631 = vperm.slane %v627, %v630
        %v632 = vrot.slane %v631, 4
        %v633 = vsel %vm554, 0, %v632
        %v636 = vpack.i.b16 %v631, %v612
        %v637 = vshrl.u32 %v612, 16
        %v638 = vshrl.u32 %v631, 16
        %v639 = vpack.i.b16 %v638, %v637
        %v642 = vpack.i.b16 %v633, %v614
        %v643 = vshrl.u32 %v614, 16
        %v644 = vshrl.u32 %v633, 16
        %v645 = vpack.i.b16 %v644, %v643
        %646 = vrot.lane.b32.xlu0 %v523, 96
        %v647 = vpop.permute.xlu0 %646
        %648 = vrot.lane.b32.xlu0 %v526, 96
        %v649 = vpop.permute.xlu0 %648
        %650 = vrot.lane.b32.xlu0 %v528, 96
        %v651 = vpop.permute.xlu0 %650
        %652 = vrot.lane.b32.xlu0 %v530, 96
        %v653 = vpop.permute.xlu0 %652
        %v656 = vpack.i.b16 %v649, %v647
        %v657 = vshrl.u32 %v647, 16
        %v658 = vshrl.u32 %v649, 16
        %v659 = vpack.i.b16 %v658, %v657
        %v662 = vpack.i.b16 %v653, %v651
        %v663 = vshrl.u32 %v651, 16
        %v664 = vshrl.u32 %v653, 16
        %v665 = vpack.i.b16 %v664, %v663
        %v668 = vunpack.c.l.s4 1983009808
        %v669 = vunpack.c.0.s8 %v668
        %v670 = vperm.slane %v656, %v669
        %v673 = vunpack.c.l.s4 1983009808
        %v674 = vunpack.c.0.s8 %v673
        %v675 = vperm.slane %v662, %v674
        %v676 = vrot.slane %v675, 4
        %v677 = vsel %vm554, %v676, %v670
        %v678 = vrot.slane %v670, 4
        %v679 = vsel %vm554, %v675, %v678
        %v681 = vunpack.c.l.s4 1934713408
        %v682 = vunpack.c.0.s8 %v681
        %v683 = vperm.slane %v677, %v682
        %v685 = vunpack.c.l.s4 1934713408
        %v686 = vunpack.c.0.s8 %v685
        %v687 = vperm.slane %v679, %v686
        %v688 = vrot.slane %v683, 4
        %v689 = vsel %vm554, 0, %v688
        %v690 = vrot.slane %v687, 4
        %v691 = vsel %vm554, 0, %v690
        %v694 = vunpack.c.l.s4 1983009808
        %v695 = vunpack.c.0.s8 %v694
        %v696 = vperm.slane %v659, %v695
        %v699 = vunpack.c.l.s4 1983009808
        %v700 = vunpack.c.0.s8 %v699
        %v701 = vperm.slane %v665, %v700
        %v702 = vrot.slane %v701, 4
        %v703 = vsel %vm554, %v702, %v696
        %v704 = vrot.slane %v696, 4
        %v705 = vsel %vm554, %v701, %v704
        %v707 = vunpack.c.l.s4 1934713408
        %v708 = vunpack.c.0.s8 %v707
        %v709 = vperm.slane %v703, %v708
        %v711 = vunpack.c.l.s4 1934713408
        %v712 = vunpack.c.0.s8 %v711
        %v713 = vperm.slane %v705, %v712
        %v714 = vrot.slane %v709, 4
        %v715 = vsel %vm554, 0, %v714
        %v716 = vrot.slane %v713, 4
        %v717 = vsel %vm554, 0, %v716
        %v718 = vsel %vm554, %v690, %v683
        %v720 = vunpack.c.l.s4 1983009808
        %v721 = vunpack.c.0.s8 %v720
        %v722 = vperm.slane %v718, %v721
        %v723 = vrot.slane %v691, 4
        %v724 = vsel %vm554, %v723, %v689
        %v726 = vunpack.c.l.s4 1983009808
        %v727 = vunpack.c.0.s8 %v726
        %v728 = vperm.slane %v724, %v727
        %v729 = vrot.slane %v728, 4
        %v730 = vsel %vm554, %v729, %v722
        %v732 = vunpack.c.l.s4 1934713408
        %v733 = vunpack.c.0.s8 %v732
        %v734 = vperm.slane %v730, %v733
        %v735 = vrot.slane %v734, 4
        %v736 = vsel %vm554, 0, %v735
        %v737 = vsel %vm554, %v716, %v709
        %v739 = vunpack.c.l.s4 1983009808
        %v740 = vunpack.c.0.s8 %v739
        %v741 = vperm.slane %v737, %v740
        %v742 = vrot.slane %v717, 4
        %v743 = vsel %vm554, %v742, %v715
        %v745 = vunpack.c.l.s4 1983009808
        %v746 = vunpack.c.0.s8 %v745
        %v747 = vperm.slane %v743, %v746
        %v748 = vrot.slane %v747, 4
        %v749 = vsel %vm554, %v748, %v741
        %v751 = vunpack.c.l.s4 1934713408
        %v752 = vunpack.c.0.s8 %v751
        %v753 = vperm.slane %v749, %v752
        %v754 = vrot.slane %v753, 4
        %v755 = vsel %vm554, 0, %v754
        %v758 = vpack.i.b16 %v753, %v734
        %v760 = vshrl.u32 %v734, 16
        %v761 = vshrl.u32 %v753, 16
        %v762 = vpack.i.b16 %v761, %v760
        %v766 = vpack.i.b16 %v755, %v736
        %v768 = vshrl.u32 %v736, 16
        %v769 = vshrl.u32 %v755, 16
        %v770 = vpack.i.b16 %v769, %v768
        %s772 = smul.u32 %s32, 4
        %s773 = smul.addr %s772, 4
        %s774 = scalar_lea.vmem [#allocation2], %s773
        %vm775 = vcmask 60416
        %776 = vst.msk [vmem:[%s774] sm:$0xf] %vm775, %v758
        %777 = vst.msk [vmem:[%s774 + $0x4] sm:$0xf] %vm775, %v762
        %778 = vst.msk [vmem:[%s774 + $0x8] sm:$0xf] %vm775, %v766
        %779 = vst.msk [vmem:[%s774 + $0xc] sm:$0xf] %vm775, %v770
        %780 = vrot.lane.b32.xlu0 %v523, 64
        %v781 = vpop.permute.xlu0 %780
        %782 = vrot.lane.b32.xlu0 %v526, 64
        %v783 = vpop.permute.xlu0 %782
        %784 = vrot.lane.b32.xlu0 %v528, 64
        %v785 = vpop.permute.xlu0 %784
        %786 = vrot.lane.b32.xlu0 %v530, 64
        %v787 = vpop.permute.xlu0 %786
        %v790 = vpack.i.b16 %v783, %v781
        %v791 = vshrl.u32 %v781, 16
        %v792 = vshrl.u32 %v783, 16
        %v793 = vpack.i.b16 %v792, %v791
        %v796 = vpack.i.b16 %v787, %v785
        %v797 = vshrl.u32 %v785, 16
        %v798 = vshrl.u32 %v787, 16
        %v799 = vpack.i.b16 %v798, %v797
        %v802 = vunpack.c.l.s4 1983009808
        %v803 = vunpack.c.0.s8 %v802
        %v804 = vperm.slane %v790, %v803
        %v807 = vunpack.c.l.s4 1983009808
        %v808 = vunpack.c.0.s8 %v807
        %v809 = vperm.slane %v796, %v808
        %v810 = vrot.slane %v809, 4
        %v811 = vsel %vm554, %v810, %v804
        %v812 = vrot.slane %v804, 4
        %v813 = vsel %vm554, %v809, %v812
        %v815 = vunpack.c.l.s4 1934713408
        %v816 = vunpack.c.0.s8 %v815
        %v817 = vperm.slane %v811, %v816
        %v819 = vunpack.c.l.s4 1934713408
        %v820 = vunpack.c.0.s8 %v819
        %v821 = vperm.slane %v813, %v820
        %v822 = vrot.slane %v817, 4
        %v823 = vsel %vm554, 0, %v822
        %v824 = vrot.slane %v821, 4
        %v825 = vsel %vm554, 0, %v824
        %v828 = vunpack.c.l.s4 1983009808
        %v829 = vunpack.c.0.s8 %v828
        %v830 = vperm.slane %v793, %v829
        %v833 = vunpack.c.l.s4 1983009808
        %v834 = vunpack.c.0.s8 %v833
        %v835 = vperm.slane %v799, %v834
        %v836 = vrot.slane %v835, 4
        %v837 = vsel %vm554, %v836, %v830
        %v838 = vrot.slane %v830, 4
        %v839 = vsel %vm554, %v835, %v838
        %v841 = vunpack.c.l.s4 1934713408
        %v842 = vunpack.c.0.s8 %v841
        %v843 = vperm.slane %v837, %v842
        %v845 = vunpack.c.l.s4 1934713408
        %v846 = vunpack.c.0.s8 %v845
        %v847 = vperm.slane %v839, %v846
        %v848 = vrot.slane %v843, 4
        %v849 = vsel %vm554, 0, %v848
        %v850 = vrot.slane %v847, 4
        %v851 = vsel %vm554, 0, %v850
        %v852 = vsel %vm554, %v824, %v817
        %v854 = vunpack.c.l.s4 1983009808
        %v855 = vunpack.c.0.s8 %v854
        %v856 = vperm.slane %v852, %v855
        %v857 = vrot.slane %v825, 4
        %v858 = vsel %vm554, %v857, %v823
        %v860 = vunpack.c.l.s4 1983009808
        %v861 = vunpack.c.0.s8 %v860
        %v862 = vperm.slane %v858, %v861
        %v863 = vrot.slane %v862, 4
        %v864 = vsel %vm554, %v863, %v856
        %v866 = vunpack.c.l.s4 1934713408
        %v867 = vunpack.c.0.s8 %v866
        %v868 = vperm.slane %v864, %v867
        %v869 = vrot.slane %v868, 4
        %v870 = vsel %vm554, 0, %v869
        %v871 = vsel %vm554, %v850, %v843
        %v873 = vunpack.c.l.s4 1983009808
        %v874 = vunpack.c.0.s8 %v873
        %v875 = vperm.slane %v871, %v874
        %v876 = vrot.slane %v851, 4
        %v877 = vsel %vm554, %v876, %v849
        %v879 = vunpack.c.l.s4 1983009808
        %v880 = vunpack.c.0.s8 %v879
        %v881 = vperm.slane %v877, %v880
        %v882 = vrot.slane %v881, 4
        %v883 = vsel %vm554, %v882, %v875
        %v885 = vunpack.c.l.s4 1934713408
        %v886 = vunpack.c.0.s8 %v885
        %v887 = vperm.slane %v883, %v886
        %v888 = vrot.slane %v887, 4
        %v889 = vsel %vm554, 0, %v888
        %v892 = vpack.i.b16 %v887, %v868
        %v894 = vshrl.u32 %v868, 16
        %v895 = vshrl.u32 %v887, 16
        %v896 = vpack.i.b16 %v895, %v894
        %v900 = vpack.i.b16 %v889, %v870
        %v902 = vshrl.u32 %v870, 16
        %v903 = vshrl.u32 %v889, 16
        %v904 = vpack.i.b16 %v903, %v902
        %s906 = smul.addr %s772, 4
        %s907 = scalar_lea.vmem [#allocation3], %s906
        %908 = vst.msk [vmem:[%s907] sm:$0xf] %vm775, %v892
        %909 = vst.msk [vmem:[%s907 + $0x4] sm:$0xf] %vm775, %v896
        %910 = vst.msk [vmem:[%s907 + $0x8] sm:$0xf] %vm775, %v900
        %911 = vst.msk [vmem:[%s907 + $0xc] sm:$0xf] %vm775, %v904
        %vm912 = vcmask 7168
        %913 = vst.msk [vmem:[#allocation4] sm:$0xff] %vm912, -1e+30
        %914 = vst.msk [vmem:[#allocation4 + $0x8] sm:$0xff] %vm912, -1e+30
        %915 = vst.msk [vmem:[#allocation4 + $0x10] sm:$0xff] %vm912, -1e+30
        %916 = vst.msk [vmem:[#allocation4 + $0x18] sm:$0xff] %vm912, -1e+30
        %917 = vst.msk [vmem:[#allocation5] sm:$0xff] %vm912, 0.0
        %918 = vst.msk [vmem:[#allocation5 + $0x8] sm:$0xff] %vm912, 0.0
        %919 = vst.msk [vmem:[#allocation5 + $0x10] sm:$0xff] %vm912, 0.0
        %920 = vst.msk [vmem:[#allocation5 + $0x18] sm:$0xff] %vm912, 0.0
        %vm921 = vcmask 64512
        %922 = vst.msk [vmem:[#allocation6] sm:$0xff] %vm921, 0.0
        %923 = vst.msk [vmem:[#allocation6 + $0x8] sm:$0xff] %vm921, 0.0
        %924 = vst.msk [vmem:[#allocation6 + $0x10] sm:$0xff] %vm921, 0.0
        %925 = vst.msk [vmem:[#allocation6 + $0x18] sm:$0xff] %vm921, 0.0
        // While loop
        $region73: #{tpu_custom_call.1} parent=67 // loop_pre_header
          _
        $region74: #{tpu_custom_call.1} parent=67 // loop_header
          %s927 = sphi 0, %s929
          %p928 = scmp.ge.s32.totalorder %s927, %s32
        $region75: #{tpu_custom_call.1} parent=67 // loop_header_branch
          %931 = sbr.rel (%p928) target = $region79
        $region76: #{tpu_custom_call.1} parent=67 // loop_body
          %s932 = smul.u32 %s927, 4
          %s933 = smul.addr %s932, 4
          %s934 = scalar_lea.vmem [#allocation2], %s933
          %v935 = vld [vmem:[%s934] sm:$0xf]
          %v936 = vld [vmem:[%s934 + $0x4] sm:$0xf]
          %v937 = vld [vmem:[%s934 + $0x8] sm:$0xf]
          %v938 = vld [vmem:[%s934 + $0xc] sm:$0xf]
          %v940 = vsel %vm921, %v636, 0
          %v943 = vsel %vm921, %v935, 0
          %945 = vmatpush.bf16.xpose.msra.mxu0 0
          %946 = vmatpush.bf16.xpose.msra.mxu0 0
          %947 = vmatpush.bf16.xpose.msra.mxu0 0
          %948 = vmatpush.bf16.xpose.msra.mxu0 0
          %949 = vmatpush.bf16.xpose.msra.mxu0 0
          %950 = vmatpush.bf16.xpose.msra.mxu0 0
          %951 = vmatpush.bf16.xpose.msra.mxu0 0
          %952 = vmatpush.bf16.xpose.msra.mxu0 %v943
          %953 = vmatmul.bf16.gmra.mxu0 %v940
          %v954 = vpop.f32.mrf.mxu0
          %v955 = vadd.f32 0.0, %v954
          %v956 = vpop.f32.mrf.mxu0
          %957 = vdwg.mxu0
          %v959 = vsel %vm921, %v639, 0
          %v962 = vsel %vm921, %v936, 0
          %964 = vmatpush.bf16.xpose.msra.mxu0 0
          %965 = vmatpush.bf16.xpose.msra.mxu0 0
          %966 = vmatpush.bf16.xpose.msra.mxu0 0
          %967 = vmatpush.bf16.xpose.msra.mxu0 0
          %968 = vmatpush.bf16.xpose.msra.mxu0 0
          %969 = vmatpush.bf16.xpose.msra.mxu0 0
          %970 = vmatpush.bf16.xpose.msra.mxu0 0
          %971 = vmatpush.bf16.xpose.msra.mxu0 %v962
          %972 = vmatmul.bf16.gmra.mxu0 %v959
          %v973 = vpop.f32.mrf.mxu0
          %v974 = vadd.f32 0.0, %v973
          %v975 = vpop.f32.mrf.mxu0
          %976 = vdwg.mxu0
          %v978 = vsel %vm921, %v642, 0
          %v981 = vsel %vm921, %v937, 0
          %983 = vmatpush.bf16.xpose.msra.mxu0 0
          %984 = vmatpush.bf16.xpose.msra.mxu0 0
          %985 = vmatpush.bf16.xpose.msra.mxu0 0
          %986 = vmatpush.bf16.xpose.msra.mxu0 0
          %987 = vmatpush.bf16.xpose.msra.mxu0 0
          %988 = vmatpush.bf16.xpose.msra.mxu0 0
          %989 = vmatpush.bf16.xpose.msra.mxu0 0
          %990 = vmatpush.bf16.xpose.msra.mxu0 %v981
          %991 = vmatmul.bf16.gmra.mxu0 %v978
          %v992 = vpop.f32.mrf.mxu0
          %v993 = vadd.f32 0.0, %v992
          %v994 = vpop.f32.mrf.mxu0
          %995 = vdwg.mxu0
          %v997 = vsel %vm921, %v645, 0
          %v1000 = vsel %vm921, %v938, 0
          %1002 = vmatpush.bf16.xpose.msra.mxu0 0
          %1003 = vmatpush.bf16.xpose.msra.mxu0 0
          %1004 = vmatpush.bf16.xpose.msra.mxu0 0
          %1005 = vmatpush.bf16.xpose.msra.mxu0 0
          %1006 = vmatpush.bf16.xpose.msra.mxu0 0
          %1007 = vmatpush.bf16.xpose.msra.mxu0 0
          %1008 = vmatpush.bf16.xpose.msra.mxu0 0
          %1009 = vmatpush.bf16.xpose.msra.mxu0 %v1000
          %1010 = vmatmul.bf16.gmra.mxu0 %v997
          %v1011 = vpop.f32.mrf.mxu0
          %v1012 = vadd.f32 0.0, %v1011
          %v1013 = vpop.f32.mrf.mxu0
          %1014 = vdwg.mxu0
          %s1015 = smul.addr %s932, 4
          %s1016 = scalar_lea.vmem [#allocation3], %s1015
          %v1017 = vld [vmem:[%s1016] sm:$0xf]
          %v1018 = vld [vmem:[%s1016 + $0x4] sm:$0xf]
          %v1019 = vld [vmem:[%s1016 + $0x8] sm:$0xf]
          %v1020 = vld [vmem:[%s1016 + $0xc] sm:$0xf]
          %v1021 = vld [vmem:[#allocation4] sm:$0xff]
          %v1022 = vld [vmem:[#allocation4 + $0x8] sm:$0xff]
          %v1023 = vld [vmem:[#allocation4 + $0x10] sm:$0xff]
          %v1024 = vld [vmem:[#allocation4 + $0x18] sm:$0xff]
          %v1025 = vsel %vm921, %v955, -inf
          %1026 = vmax.xlane.f32.xlu0 %v1025
          %v1027 = vpop.xlane.xlu0 %1026
          %v1028 = vsel %vm921, %v974, -inf
          %1029 = vmax.xlane.f32.xlu0 %v1028
          %v1030 = vpop.xlane.xlu0 %1029
          %v1031 = vsel %vm921, %v993, -inf
          %1032 = vmax.xlane.f32.xlu0 %v1031
          %v1033 = vpop.xlane.xlu0 %1032
          %v1034 = vsel %vm921, %v1012, -inf
          %1035 = vmax.xlane.f32.xlu0 %v1034
          %v1036 = vpop.xlane.xlu0 %1035
          %v1037 = vmax.f32 %v1021, %v1027
          %v1038 = vmax.f32 %v1022, %v1030
          %v1039 = vmax.f32 %v1023, %v1033
          %v1040 = vmax.f32 %v1024, %v1036
          %v1041 = vsub.f32 %v1021, %v1037
          %v1042 = vsub.f32 %v1022, %v1038
          %v1043 = vsub.f32 %v1023, %v1039
          %v1044 = vsub.f32 %v1024, %v1040
          %v1045 = vmul.f32 %v1041, 1.442695
          %v1046 = vpow.pop %v1045
          %v1047 = vmul.f32 %v1042, 1.442695
          %v1048 = vpow.pop %v1047
          %v1049 = vmul.f32 %v1043, 1.442695
          %v1050 = vpow.pop %v1049
          %v1051 = vmul.f32 %v1044, 1.442695
          %v1052 = vpow.pop %v1051
          %1054 = vset.pattern.permute.xlu0 0
          %1055 = vperm.xlu0 %1054, %v1037
          %v1056 = vpop.permute.xlu0 %1055
          %1059 = vset.pattern.permute.xlu0 0
          %1060 = vperm.xlu0 %1059, %v1038
          %v1061 = vpop.permute.xlu0 %1060
          %1064 = vset.pattern.permute.xlu0 0
          %1065 = vperm.xlu0 %1064, %v1039
          %v1066 = vpop.permute.xlu0 %1065
          %1069 = vset.pattern.permute.xlu0 0
          %1070 = vperm.xlu0 %1069, %v1040
          %v1071 = vpop.permute.xlu0 %1070
          %v1073 = vsub.f32 %v955, %v1056
          %v1074 = vsub.f32 %v974, %v1061
          %v1075 = vsub.f32 %v993, %v1066
          %v1076 = vsub.f32 %v1012, %v1071
          %v1077 = vmul.f32 %v1073, 1.442695
          %v1078 = vpow.pop %v1077
          %v1079 = vmul.f32 %v1074, 1.442695
          %v1080 = vpow.pop %v1079
          %v1081 = vmul.f32 %v1075, 1.442695
          %v1082 = vpow.pop %v1081
          %v1083 = vmul.f32 %v1076, 1.442695
          %v1084 = vpow.pop %v1083
          %v1085 = vsel %vm921, %v1078, 0.0
          %1086 = vadd.xlane.f32.xlu0 %v1085
          %v1087 = vpop.xlane.xlu0 %1086
          %v1088 = vsel %vm921, %v1080, 0.0
          %1089 = vadd.xlane.f32.xlu0 %v1088
          %v1090 = vpop.xlane.xlu0 %1089
          %v1091 = vsel %vm921, %v1082, 0.0
          %1092 = vadd.xlane.f32.xlu0 %v1091
          %v1093 = vpop.xlane.xlu0 %1092
          %v1094 = vsel %vm921, %v1084, 0.0
          %1095 = vadd.xlane.f32.xlu0 %v1094
          %v1096 = vpop.xlane.xlu0 %1095
          %v1097 = vld [vmem:[#allocation5] sm:$0xff]
          %v1098 = vld [vmem:[#allocation5 + $0x8] sm:$0xff]
          %v1099 = vld [vmem:[#allocation5 + $0x10] sm:$0xff]
          %v1100 = vld [vmem:[#allocation5 + $0x18] sm:$0xff]
          %v1101 = vmul.f32 %v1046, %v1097
          %v1102 = vmul.f32 %v1048, %v1098
          %v1103 = vmul.f32 %v1050, %v1099
          %v1104 = vmul.f32 %v1052, %v1100
          %v1105 = vadd.f32 %v1101, %v1087
          %v1106 = vadd.f32 %v1102, %v1090
          %v1107 = vadd.f32 %v1103, %v1093
          %v1108 = vadd.f32 %v1104, %v1096
          %1109 = vst.msk [vmem:[#allocation5] sm:$0xff] %vm912, %v1105
          %1110 = vst.msk [vmem:[#allocation5 + $0x8] sm:$0xff] %vm912, %v1106
          %1111 = vst.msk [vmem:[#allocation5 + $0x10] sm:$0xff] %vm912, %v1107
          %1112 = vst.msk [vmem:[#allocation5 + $0x18] sm:$0xff] %vm912, %v1108
          %v1113 = vld [vmem:[#allocation6] sm:$0xff]
          %v1114 = vld [vmem:[#allocation6 + $0x8] sm:$0xff]
          %v1115 = vld [vmem:[#allocation6 + $0x10] sm:$0xff]
          %v1116 = vld [vmem:[#allocation6 + $0x18] sm:$0xff]
          %1118 = vset.pattern.permute.xlu0 0
          %1119 = vperm.xlu0 %1118, %v1046
          %v1120 = vpop.permute.xlu0 %1119
          %1123 = vset.pattern.permute.xlu0 0
          %1124 = vperm.xlu0 %1123, %v1048
          %v1125 = vpop.permute.xlu0 %1124
          %1128 = vset.pattern.permute.xlu0 0
          %1129 = vperm.xlu0 %1128, %v1050
          %v1130 = vpop.permute.xlu0 %1129
          %1133 = vset.pattern.permute.xlu0 0
          %1134 = vperm.xlu0 %1133, %v1052
          %v1135 = vpop.permute.xlu0 %1134
          %v1137 = vmul.f32 %v1120, %v1113
          %v1138 = vmul.f32 %v1125, %v1114
          %v1139 = vmul.f32 %v1130, %v1115
          %v1140 = vmul.f32 %v1135, %v1116
          %v1141 = vpack.c.bf16 %v1078, %v1078
          %v1142 = vpack.c.bf16 %v1080, %v1080
          %v1143 = vpack.c.bf16 %v1082, %v1082
          %v1144 = vpack.c.bf16 %v1084, %v1084
          %v1146 = vsel %vm921, %v1141, 0
          %vm1148 = vcmask 1043456
          %v1150 = vsel %vm1148, %v1017, 0
          %1152 = vmatpush.bf16.msra.mxu0 0
          %1153 = vmatpush.bf16.msra.mxu0 0
          %1154 = vmatpush.bf16.msra.mxu0 0
          %1155 = vmatpush.bf16.msra.mxu0 0
          %1156 = vmatpush.bf16.msra.mxu0 0
          %1157 = vmatpush.bf16.msra.mxu0 0
          %1158 = vmatpush.bf16.msra.mxu0 0
          %1159 = vmatpush.bf16.msra.mxu0 %v1150
          %1160 = vmatmul.bf16.gmra.mxu0 %v1146
          %v1161 = vpop.f32.mrf.mxu0
          %v1162 = vadd.f32 0.0, %v1161
          %v1163 = vpop.f32.mrf.mxu0
          %1164 = vdwg.mxu0
          %v1166 = vsel %vm921, %v1142, 0
          %v1169 = vsel %vm1148, %v1018, 0
          %1171 = vmatpush.bf16.msra.mxu0 0
          %1172 = vmatpush.bf16.msra.mxu0 0
          %1173 = vmatpush.bf16.msra.mxu0 0
          %1174 = vmatpush.bf16.msra.mxu0 0
          %1175 = vmatpush.bf16.msra.mxu0 0
          %1176 = vmatpush.bf16.msra.mxu0 0
          %1177 = vmatpush.bf16.msra.mxu0 0
          %1178 = vmatpush.bf16.msra.mxu0 %v1169
          %1179 = vmatmul.bf16.gmra.mxu0 %v1166
          %v1180 = vpop.f32.mrf.mxu0
          %v1181 = vadd.f32 0.0, %v1180
          %v1182 = vpop.f32.mrf.mxu0
          %1183 = vdwg.mxu0
          %v1185 = vsel %vm921, %v1143, 0
          %v1188 = vsel %vm1148, %v1019, 0
          %1190 = vmatpush.bf16.msra.mxu0 0
          %1191 = vmatpush.bf16.msra.mxu0 0
          %1192 = vmatpush.bf16.msra.mxu0 0
          %1193 = vmatpush.bf16.msra.mxu0 0
          %1194 = vmatpush.bf16.msra.mxu0 0
          %1195 = vmatpush.bf16.msra.mxu0 0
          %1196 = vmatpush.bf16.msra.mxu0 0
          %1197 = vmatpush.bf16.msra.mxu0 %v1188
          %1198 = vmatmul.bf16.gmra.mxu0 %v1185
          %v1199 = vpop.f32.mrf.mxu0
          %v1200 = vadd.f32 0.0, %v1199
          %v1201 = vpop.f32.mrf.mxu0
          %1202 = vdwg.mxu0
          %v1204 = vsel %vm921, %v1144, 0
          %v1207 = vsel %vm1148, %v1020, 0
          %1209 = vmatpush.bf16.msra.mxu0 0
          %1210 = vmatpush.bf16.msra.mxu0 0
          %1211 = vmatpush.bf16.msra.mxu0 0
          %1212 = vmatpush.bf16.msra.mxu0 0
          %1213 = vmatpush.bf16.msra.mxu0 0
          %1214 = vmatpush.bf16.msra.mxu0 0
          %1215 = vmatpush.bf16.msra.mxu0 0
          %1216 = vmatpush.bf16.msra.mxu0 %v1207
          %1217 = vmatmul.bf16.gmra.mxu0 %v1204
          %v1218 = vpop.f32.mrf.mxu0
          %v1219 = vadd.f32 0.0, %v1218
          %v1220 = vpop.f32.mrf.mxu0
          %1221 = vdwg.mxu0
          %v1222 = vadd.f32 %v1137, %v1162
          %v1223 = vadd.f32 %v1138, %v1181
          %v1224 = vadd.f32 %v1139, %v1200
          %v1225 = vadd.f32 %v1140, %v1219
          %1226 = vst.msk [vmem:[#allocation6] sm:$0xff] %vm921, %v1222
          %1227 = vst.msk [vmem:[#allocation6 + $0x8] sm:$0xff] %vm921, %v1223
          %1228 = vst.msk [vmem:[#allocation6 + $0x10] sm:$0xff] %vm921, %v1224
          %1229 = vst.msk [vmem:[#allocation6 + $0x18] sm:$0xff] %vm921, %v1225
          %1230 = vst.msk [vmem:[#allocation4] sm:$0xff] %vm912, %v1037
          %1231 = vst.msk [vmem:[#allocation4 + $0x8] sm:$0xff] %vm912, %v1038
          %1232 = vst.msk [vmem:[#allocation4 + $0x10] sm:$0xff] %vm912, %v1039
          %1233 = vst.msk [vmem:[#allocation4 + $0x18] sm:$0xff] %vm912, %v1040
        $region77: #{tpu_custom_call.1} parent=67 // loop_footer
          %s929 = sadd.s32 %s927, 1
        $region78: #{tpu_custom_call.1} parent=67 // loop_footer_branch
          %926 = sbr.rel target = $region74
        $region79: #{tpu_custom_call.1} parent=67 // loop_exit
          _
        %v1234 = vlaneseq
        %v1235 = vshrl.u32 %v1234, 7
        %v1236 = vlaneseq
        %v1237 = vand.u32 %v1236, 127
        %v1238 = vld [vmem:[%s774] sm:$0xf]
        %v1239 = vld [vmem:[%s774 + $0x4] sm:$0xf]
        %v1240 = vld [vmem:[%s774 + $0x8] sm:$0xf]
        %v1241 = vld [vmem:[%s774 + $0xc] sm:$0xf]
        %v1243 = vsel %vm921, %v636, 0
        %v1246 = vsel %vm921, %v1238, 0
        %1248 = vmatpush.bf16.xpose.msra.mxu0 0
        %1249 = vmatpush.bf16.xpose.msra.mxu0 0
        %1250 = vmatpush.bf16.xpose.msra.mxu0 0
        %1251 = vmatpush.bf16.xpose.msra.mxu0 0
        %1252 = vmatpush.bf16.xpose.msra.mxu0 0
        %1253 = vmatpush.bf16.xpose.msra.mxu0 0
        %1254 = vmatpush.bf16.xpose.msra.mxu0 0
        %1255 = vmatpush.bf16.xpose.msra.mxu0 %v1246
        %1256 = vmatmul.bf16.gmra.mxu0 %v1243
        %v1257 = vpop.f32.mrf.mxu0
        %v1258 = vadd.f32 0.0, %v1257
        %v1259 = vpop.f32.mrf.mxu0
        %1260 = vdwg.mxu0
        %v1262 = vsel %vm921, %v639, 0
        %v1265 = vsel %vm921, %v1239, 0
        %1267 = vmatpush.bf16.xpose.msra.mxu0 0
        %1268 = vmatpush.bf16.xpose.msra.mxu0 0
        %1269 = vmatpush.bf16.xpose.msra.mxu0 0
        %1270 = vmatpush.bf16.xpose.msra.mxu0 0
        %1271 = vmatpush.bf16.xpose.msra.mxu0 0
        %1272 = vmatpush.bf16.xpose.msra.mxu0 0
        %1273 = vmatpush.bf16.xpose.msra.mxu0 0
        %1274 = vmatpush.bf16.xpose.msra.mxu0 %v1265
        %1275 = vmatmul.bf16.gmra.mxu0 %v1262
        %v1276 = vpop.f32.mrf.mxu0
        %v1277 = vadd.f32 0.0, %v1276
        %v1278 = vpop.f32.mrf.mxu0
        %1279 = vdwg.mxu0
        %v1281 = vsel %vm921, %v642, 0
        %v1284 = vsel %vm921, %v1240, 0
        %1286 = vmatpush.bf16.xpose.msra.mxu0 0
        %1287 = vmatpush.bf16.xpose.msra.mxu0 0
        %1288 = vmatpush.bf16.xpose.msra.mxu0 0
        %1289 = vmatpush.bf16.xpose.msra.mxu0 0
        %1290 = vmatpush.bf16.xpose.msra.mxu0 0
        %1291 = vmatpush.bf16.xpose.msra.mxu0 0
        %1292 = vmatpush.bf16.xpose.msra.mxu0 0
        %1293 = vmatpush.bf16.xpose.msra.mxu0 %v1284
        %1294 = vmatmul.bf16.gmra.mxu0 %v1281
        %v1295 = vpop.f32.mrf.mxu0
        %v1296 = vadd.f32 0.0, %v1295
        %v1297 = vpop.f32.mrf.mxu0
        %1298 = vdwg.mxu0
        %v1300 = vsel %vm921, %v645, 0
        %v1303 = vsel %vm921, %v1241, 0
        %1305 = vmatpush.bf16.xpose.msra.mxu0 0
        %1306 = vmatpush.bf16.xpose.msra.mxu0 0
        %1307 = vmatpush.bf16.xpose.msra.mxu0 0
        %1308 = vmatpush.bf16.xpose.msra.mxu0 0
        %1309 = vmatpush.bf16.xpose.msra.mxu0 0
        %1310 = vmatpush.bf16.xpose.msra.mxu0 0
        %1311 = vmatpush.bf16.xpose.msra.mxu0 0
        %1312 = vmatpush.bf16.xpose.msra.mxu0 %v1303
        %1313 = vmatmul.bf16.gmra.mxu0 %v1300
        %v1314 = vpop.f32.mrf.mxu0
        %v1315 = vadd.f32 0.0, %v1314
        %v1316 = vpop.f32.mrf.mxu0
        %1317 = vdwg.mxu0
        %vm1318 = vcmp.le.s32.totalorder %v1237, %v1235
        %v1319 = vsel %vm1318, 1, 0
        %vm1320 = vcmp.eq.s32.totalorder %v1319, 1
        %v1321 = vsel %vm1320, %v1258, -1e+30
        %v1322 = vsel %vm1320, %v1277, -1e+30
        %v1323 = vsel %vm1320, %v1296, -1e+30
        %v1324 = vsel %vm1320, %v1315, -1e+30
        %v1325 = vld [vmem:[%s907] sm:$0xf]
        %v1326 = vld [vmem:[%s907 + $0x4] sm:$0xf]
        %v1327 = vld [vmem:[%s907 + $0x8] sm:$0xf]
        %v1328 = vld [vmem:[%s907 + $0xc] sm:$0xf]
        %v1329 = vld [vmem:[#allocation4] sm:$0xff]
        %v1330 = vld [vmem:[#allocation4 + $0x8] sm:$0xff]
        %v1331 = vld [vmem:[#allocation4 + $0x10] sm:$0xff]
        %v1332 = vld [vmem:[#allocation4 + $0x18] sm:$0xff]
        %v1333 = vsel %vm921, %v1321, -inf
        %1334 = vmax.xlane.f32.xlu0 %v1333
        %v1335 = vpop.xlane.xlu0 %1334
        %v1336 = vsel %vm921, %v1322, -inf
        %1337 = vmax.xlane.f32.xlu0 %v1336
        %v1338 = vpop.xlane.xlu0 %1337
        %v1339 = vsel %vm921, %v1323, -inf
        %1340 = vmax.xlane.f32.xlu0 %v1339
        %v1341 = vpop.xlane.xlu0 %1340
        %v1342 = vsel %vm921, %v1324, -inf
        %1343 = vmax.xlane.f32.xlu0 %v1342
        %v1344 = vpop.xlane.xlu0 %1343
        %v1345 = vmax.f32 %v1329, %v1335
        %v1346 = vmax.f32 %v1330, %v1338
        %v1347 = vmax.f32 %v1331, %v1341
        %v1348 = vmax.f32 %v1332, %v1344
        %v1349 = vsub.f32 %v1329, %v1345
        %v1350 = vsub.f32 %v1330, %v1346
        %v1351 = vsub.f32 %v1331, %v1347
        %v1352 = vsub.f32 %v1332, %v1348
        %v1353 = vmul.f32 %v1349, 1.442695
        %v1354 = vpow.pop %v1353
        %v1355 = vmul.f32 %v1350, 1.442695
        %v1356 = vpow.pop %v1355
        %v1357 = vmul.f32 %v1351, 1.442695
        %v1358 = vpow.pop %v1357
        %v1359 = vmul.f32 %v1352, 1.442695
        %v1360 = vpow.pop %v1359
        %1362 = vset.pattern.permute.xlu0 0
        %1363 = vperm.xlu0 %1362, %v1345
        %v1364 = vpop.permute.xlu0 %1363
        %1367 = vset.pattern.permute.xlu0 0
        %1368 = vperm.xlu0 %1367, %v1346
        %v1369 = vpop.permute.xlu0 %1368
        %1372 = vset.pattern.permute.xlu0 0
        %1373 = vperm.xlu0 %1372, %v1347
        %v1374 = vpop.permute.xlu0 %1373
        %1377 = vset.pattern.permute.xlu0 0
        %1378 = vperm.xlu0 %1377, %v1348
        %v1379 = vpop.permute.xlu0 %1378
        %v1381 = vsub.f32 %v1321, %v1364
        %v1382 = vsub.f32 %v1322, %v1369
        %v1383 = vsub.f32 %v1323, %v1374
        %v1384 = vsub.f32 %v1324, %v1379
        %v1385 = vmul.f32 %v1381, 1.442695
        %v1386 = vpow.pop %v1385
        %v1387 = vmul.f32 %v1382, 1.442695
        %v1388 = vpow.pop %v1387
        %v1389 = vmul.f32 %v1383, 1.442695
        %v1390 = vpow.pop %v1389
        %v1391 = vmul.f32 %v1384, 1.442695
        %v1392 = vpow.pop %v1391
        %v1393 = vsel %vm921, %v1386, 0.0
        %1394 = vadd.xlane.f32.xlu0 %v1393
        %v1395 = vpop.xlane.xlu0 %1394
        %v1396 = vsel %vm921, %v1388, 0.0
        %1397 = vadd.xlane.f32.xlu0 %v1396
        %v1398 = vpop.xlane.xlu0 %1397
        %v1399 = vsel %vm921, %v1390, 0.0
        %1400 = vadd.xlane.f32.xlu0 %v1399
        %v1401 = vpop.xlane.xlu0 %1400
        %v1402 = vsel %vm921, %v1392, 0.0
        %1403 = vadd.xlane.f32.xlu0 %v1402
        %v1404 = vpop.xlane.xlu0 %1403
        %v1405 = vld [vmem:[#allocation5] sm:$0xff]
        %v1406 = vld [vmem:[#allocation5 + $0x8] sm:$0xff]
        %v1407 = vld [vmem:[#allocation5 + $0x10] sm:$0xff]
        %v1408 = vld [vmem:[#allocation5 + $0x18] sm:$0xff]
        %v1409 = vmul.f32 %v1354, %v1405
        %v1410 = vmul.f32 %v1356, %v1406
        %v1411 = vmul.f32 %v1358, %v1407
        %v1412 = vmul.f32 %v1360, %v1408
        %v1413 = vadd.f32 %v1409, %v1395
        %v1414 = vadd.f32 %v1410, %v1398
        %v1415 = vadd.f32 %v1411, %v1401
        %v1416 = vadd.f32 %v1412, %v1404
        %1417 = vst.msk [vmem:[#allocation5] sm:$0xff] %vm912, %v1413
        %1418 = vst.msk [vmem:[#allocation5 + $0x8] sm:$0xff] %vm912, %v1414
        %1419 = vst.msk [vmem:[#allocation5 + $0x10] sm:$0xff] %vm912, %v1415
        %1420 = vst.msk [vmem:[#allocation5 + $0x18] sm:$0xff] %vm912, %v1416
        %v1421 = vld [vmem:[#allocation6] sm:$0xff]
        %v1422 = vld [vmem:[#allocation6 + $0x8] sm:$0xff]
        %v1423 = vld [vmem:[#allocation6 + $0x10] sm:$0xff]
        %v1424 = vld [vmem:[#allocation6 + $0x18] sm:$0xff]
        %1426 = vset.pattern.permute.xlu0 0
        %1427 = vperm.xlu0 %1426, %v1354
        %v1428 = vpop.permute.xlu0 %1427
        %1431 = vset.pattern.permute.xlu0 0
        %1432 = vperm.xlu0 %1431, %v1356
        %v1433 = vpop.permute.xlu0 %1432
        %1436 = vset.pattern.permute.xlu0 0
        %1437 = vperm.xlu0 %1436, %v1358
        %v1438 = vpop.permute.xlu0 %1437
        %1441 = vset.pattern.permute.xlu0 0
        %1442 = vperm.xlu0 %1441, %v1360
        %v1443 = vpop.permute.xlu0 %1442
        %v1445 = vmul.f32 %v1428, %v1421
        %v1446 = vmul.f32 %v1433, %v1422
        %v1447 = vmul.f32 %v1438, %v1423
        %v1448 = vmul.f32 %v1443, %v1424
        %v1449 = vpack.c.bf16 %v1386, %v1386
        %v1450 = vpack.c.bf16 %v1388, %v1388
        %v1451 = vpack.c.bf16 %v1390, %v1390
        %v1452 = vpack.c.bf16 %v1392, %v1392
        %v1454 = vsel %vm921, %v1449, 0
        %vm1456 = vcmask 1043456
        %v1458 = vsel %vm1456, %v1325, 0
        %1460 = vmatpush.bf16.msra.mxu0 0
        %1461 = vmatpush.bf16.msra.mxu0 0
        %1462 = vmatpush.bf16.msra.mxu0 0
        %1463 = vmatpush.bf16.msra.mxu0 0
        %1464 = vmatpush.bf16.msra.mxu0 0
        %1465 = vmatpush.bf16.msra.mxu0 0
        %1466 = vmatpush.bf16.msra.mxu0 0
        %1467 = vmatpush.bf16.msra.mxu0 %v1458
        %1468 = vmatmul.bf16.gmra.mxu0 %v1454
        %v1469 = vpop.f32.mrf.mxu0
        %v1470 = vadd.f32 0.0, %v1469
        %v1471 = vpop.f32.mrf.mxu0
        %1472 = vdwg.mxu0
        %v1474 = vsel %vm921, %v1450, 0
        %v1477 = vsel %vm1456, %v1326, 0
        %1479 = vmatpush.bf16.msra.mxu0 0
        %1480 = vmatpush.bf16.msra.mxu0 0
        %1481 = vmatpush.bf16.msra.mxu0 0
        %1482 = vmatpush.bf16.msra.mxu0 0
        %1483 = vmatpush.bf16.msra.mxu0 0
        %1484 = vmatpush.bf16.msra.mxu0 0
        %1485 = vmatpush.bf16.msra.mxu0 0
        %1486 = vmatpush.bf16.msra.mxu0 %v1477
        %1487 = vmatmul.bf16.gmra.mxu0 %v1474
        %v1488 = vpop.f32.mrf.mxu0
        %v1489 = vadd.f32 0.0, %v1488
        %v1490 = vpop.f32.mrf.mxu0
        %1491 = vdwg.mxu0
        %v1493 = vsel %vm921, %v1451, 0
        %v1496 = vsel %vm1456, %v1327, 0
        %1498 = vmatpush.bf16.msra.mxu0 0
        %1499 = vmatpush.bf16.msra.mxu0 0
        %1500 = vmatpush.bf16.msra.mxu0 0
        %1501 = vmatpush.bf16.msra.mxu0 0
        %1502 = vmatpush.bf16.msra.mxu0 0
        %1503 = vmatpush.bf16.msra.mxu0 0
        %1504 = vmatpush.bf16.msra.mxu0 0
        %1505 = vmatpush.bf16.msra.mxu0 %v1496
        %1506 = vmatmul.bf16.gmra.mxu0 %v1493
        %v1507 = vpop.f32.mrf.mxu0
        %v1508 = vadd.f32 0.0, %v1507
        %v1509 = vpop.f32.mrf.mxu0
        %1510 = vdwg.mxu0
        %v1512 = vsel %vm921, %v1452, 0
        %v1515 = vsel %vm1456, %v1328, 0
        %1517 = vmatpush.bf16.msra.mxu0 0
        %1518 = vmatpush.bf16.msra.mxu0 0
        %1519 = vmatpush.bf16.msra.mxu0 0
        %1520 = vmatpush.bf16.msra.mxu0 0
        %1521 = vmatpush.bf16.msra.mxu0 0
        %1522 = vmatpush.bf16.msra.mxu0 0
        %1523 = vmatpush.bf16.msra.mxu0 0
        %1524 = vmatpush.bf16.msra.mxu0 %v1515
        %1525 = vmatmul.bf16.gmra.mxu0 %v1512
        %v1526 = vpop.f32.mrf.mxu0
        %v1527 = vadd.f32 0.0, %v1526
        %v1528 = vpop.f32.mrf.mxu0
        %1529 = vdwg.mxu0
        %v1530 = vadd.f32 %v1445, %v1470
        %v1531 = vadd.f32 %v1446, %v1489
        %v1532 = vadd.f32 %v1447, %v1508
        %v1533 = vadd.f32 %v1448, %v1527
        %1534 = vst.msk [vmem:[#allocation6] sm:$0xff] %vm921, %v1530
        %1535 = vst.msk [vmem:[#allocation6 + $0x8] sm:$0xff] %vm921, %v1531
        %1536 = vst.msk [vmem:[#allocation6 + $0x10] sm:$0xff] %vm921, %v1532
        %1537 = vst.msk [vmem:[#allocation6 + $0x18] sm:$0xff] %vm921, %v1533
        %1538 = vst.msk [vmem:[#allocation4] sm:$0xff] %vm912, %v1345
        %1539 = vst.msk [vmem:[#allocation4 + $0x8] sm:$0xff] %vm912, %v1346
        %1540 = vst.msk [vmem:[#allocation4 + $0x10] sm:$0xff] %vm912, %v1347
        %1541 = vst.msk [vmem:[#allocation4 + $0x18] sm:$0xff] %vm912, %v1348
        %v1542 = vld [vmem:[#allocation6] sm:$0xff]
        %v1543 = vld [vmem:[#allocation6 + $0x8] sm:$0xff]
        %v1544 = vld [vmem:[#allocation6 + $0x10] sm:$0xff]
        %v1545 = vld [vmem:[#allocation6 + $0x18] sm:$0xff]
        %v1546 = vld [vmem:[#allocation5] sm:$0xff]
        %v1547 = vld [vmem:[#allocation5 + $0x8] sm:$0xff]
        %v1548 = vld [vmem:[#allocation5 + $0x10] sm:$0xff]
        %v1549 = vld [vmem:[#allocation5 + $0x18] sm:$0xff]
        %v1550 = vrcp.pop %v1546
        %v1551 = vrcp.pop %v1547
        %v1552 = vrcp.pop %v1548
        %v1553 = vrcp.pop %v1549
        %1555 = vset.pattern.permute.xlu0 0
        %1556 = vperm.xlu0 %1555, %v1550
        %v1557 = vpop.permute.xlu0 %1556
        %1560 = vset.pattern.permute.xlu0 0
        %1561 = vperm.xlu0 %1560, %v1551
        %v1562 = vpop.permute.xlu0 %1561
        %1565 = vset.pattern.permute.xlu0 0
        %1566 = vperm.xlu0 %1565, %v1552
        %v1567 = vpop.permute.xlu0 %1566
        %1570 = vset.pattern.permute.xlu0 0
        %1571 = vperm.xlu0 %1570, %v1553
        %v1572 = vpop.permute.xlu0 %1571
        %v1574 = vmul.f32 %v1542, %v1557
        %v1575 = vmul.f32 %v1543, %v1562
        %v1576 = vmul.f32 %v1544, %v1567
        %v1577 = vmul.f32 %v1545, %v1572
        %v1578 = vpack.c.bf16 %v1574, %v1574
        %v1579 = vpack.c.bf16 %v1575, %v1575
        %v1580 = vpack.c.bf16 %v1576, %v1576
        %v1581 = vpack.c.bf16 %v1577, %v1577
        %v1584 = vpack.i.b16 %v1579, %v1578
        %v1585 = vshrl.u32 %v1578, 16
        %v1586 = vshrl.u32 %v1579, 16
        %v1587 = vpack.i.b16 %v1586, %v1585
        %v1590 = vpack.i.b16 %v1581, %v1580
        %v1591 = vshrl.u32 %v1580, 16
        %v1592 = vshrl.u32 %v1581, 16
        %v1593 = vpack.i.b16 %v1592, %v1591
        %v1596 = vunpack.c.l.s4 1983009808
        %v1597 = vunpack.c.0.s8 %v1596
        %v1598 = vperm.slane %v1584, %v1597
        %v1601 = vunpack.c.l.s4 1983009808
        %v1602 = vunpack.c.0.s8 %v1601
        %v1603 = vperm.slane %v1590, %v1602
        %v1604 = vrot.slane %v1603, 4
        %v1605 = vsel %vm554, %v1604, %v1598
        %v1606 = vrot.slane %v1598, 4
        %v1607 = vsel %vm554, %v1603, %v1606
        %v1609 = vunpack.c.l.s4 1934713408
        %v1610 = vunpack.c.0.s8 %v1609
        %v1611 = vperm.slane %v1605, %v1610
        %v1613 = vunpack.c.l.s4 1934713408
        %v1614 = vunpack.c.0.s8 %v1613
        %v1615 = vperm.slane %v1607, %v1614
        %v1616 = vrot.slane %v1611, 4
        %v1617 = vsel %vm554, 0, %v1616
        %v1618 = vrot.slane %v1615, 4
        %v1619 = vsel %vm554, 0, %v1618
        %v1622 = vunpack.c.l.s4 1983009808
        %v1623 = vunpack.c.0.s8 %v1622
        %v1624 = vperm.slane %v1587, %v1623
        %v1627 = vunpack.c.l.s4 1983009808
        %v1628 = vunpack.c.0.s8 %v1627
        %v1629 = vperm.slane %v1593, %v1628
        %v1630 = vrot.slane %v1629, 4
        %v1631 = vsel %vm554, %v1630, %v1624
        %v1632 = vrot.slane %v1624, 4
        %v1633 = vsel %vm554, %v1629, %v1632
        %v1635 = vunpack.c.l.s4 1934713408
        %v1636 = vunpack.c.0.s8 %v1635
        %v1637 = vperm.slane %v1631, %v1636
        %v1639 = vunpack.c.l.s4 1934713408
        %v1640 = vunpack.c.0.s8 %v1639
        %v1641 = vperm.slane %v1633, %v1640
        %v1642 = vrot.slane %v1637, 4
        %v1643 = vsel %vm554, 0, %v1642
        %v1644 = vrot.slane %v1641, 4
        %v1645 = vsel %vm554, 0, %v1644
        %v1646 = vsel %vm554, %v1618, %v1611
        %v1648 = vunpack.c.l.s4 1983009808
        %v1649 = vunpack.c.0.s8 %v1648
        %v1650 = vperm.slane %v1646, %v1649
        %v1651 = vrot.slane %v1619, 4
        %v1652 = vsel %vm554, %v1651, %v1617
        %v1654 = vunpack.c.l.s4 1983009808
        %v1655 = vunpack.c.0.s8 %v1654
        %v1656 = vperm.slane %v1652, %v1655
        %v1657 = vrot.slane %v1656, 4
        %v1658 = vsel %vm554, %v1657, %v1650
        %v1660 = vunpack.c.l.s4 1934713408
        %v1661 = vunpack.c.0.s8 %v1660
        %v1662 = vperm.slane %v1658, %v1661
        %v1663 = vrot.slane %v1662, 4
        %v1664 = vsel %vm554, 0, %v1663
        %v1665 = vsel %vm554, %v1644, %v1637
        %v1667 = vunpack.c.l.s4 1983009808
        %v1668 = vunpack.c.0.s8 %v1667
        %v1669 = vperm.slane %v1665, %v1668
        %v1670 = vrot.slane %v1645, 4
        %v1671 = vsel %vm554, %v1670, %v1643
        %v1673 = vunpack.c.l.s4 1983009808
        %v1674 = vunpack.c.0.s8 %v1673
        %v1675 = vperm.slane %v1671, %v1674
        %v1676 = vrot.slane %v1675, 4
        %v1677 = vsel %vm554, %v1676, %v1669
        %v1679 = vunpack.c.l.s4 1934713408
        %v1680 = vunpack.c.0.s8 %v1679
        %v1681 = vperm.slane %v1677, %v1680
        %v1682 = vrot.slane %v1681, 4
        %v1683 = vsel %vm554, 0, %v1682
        %v1686 = vpack.i.b16 %v1681, %v1662
        %v1687 = vshrl.u32 %v1662, 16
        %v1688 = vshrl.u32 %v1681, 16
        %v1689 = vpack.i.b16 %v1688, %v1687
        %v1692 = vpack.i.b16 %v1683, %v1664
        %v1693 = vshrl.u32 %v1664, 16
        %v1694 = vshrl.u32 %v1683, 16
        %v1695 = vpack.i.b16 %v1694, %v1693
        %v1696 = vunpack.c.l.b16 %v1689
        %v1697 = vpack.c.b16 %v1696, %v1696
        %1698 = vrot.lane.b32.xlu0 %v1697, 8
        %v1699 = vpop.permute.xlu0 %1698
        %v1700 = vunpack.c.l.b16 %v1692
        %v1701 = vpack.c.b16 %v1700, %v1700
        %1702 = vrot.lane.b32.xlu0 %v1701, 16
        %v1703 = vpop.permute.xlu0 %1702
        %v1704 = vunpack.c.l.b16 %v1695
        %v1705 = vpack.c.b16 %v1704, %v1704
        %1706 = vrot.lane.b32.xlu0 %v1705, 24
        %v1707 = vpop.permute.xlu0 %1706
        %v1710 = vsel %vm921, %v1686, %v1699
        %vm1711 = vcmask 130048
        %v1713 = vsel %vm1711, %v1710, %v1703
        %vm1714 = vcmask 195584
        %v1716 = vsel %vm1714, %v1713, %v1707
        %v1717 = vld [vmem:[%s4] sm:$0xf]
        %v1718 = vld [vmem:[%s4 + $0x4] sm:$0xf]
        %v1719 = vld [vmem:[%s4 + $0x8] sm:$0xf]
        %v1720 = vld [vmem:[%s4 + $0xc] sm:$0xf]
        %v1721 = vld [vmem:[%s5] sm:$0x1]
        %v1723 = vperm.slane %v1721, 0
        %v1729 = vunpack.c.l.b16 %v1717
        %v1730 = vunpack.c.l.b16 %v1718
        %v1731 = vunpack.c.l.b16 %v1719
        %v1732 = vunpack.c.l.b16 %v1720
        %v1733 = vpack.c.b16 %v1730, %v1729
        %v1734 = vpack.c.b16 %v1732, %v1731
        %v1737 = vsel %vm456, %v1716, 0
        %1739 = vmatpush.bf16.msra.mxu0 0
        %1740 = vmatpush.bf16.msra.mxu0 0
        %1741 = vmatpush.bf16.msra.mxu0 0
        %1742 = vmatpush.bf16.msra.mxu0 0
        %1743 = vmatpush.bf16.msra.mxu0 0
        %1744 = vmatpush.bf16.msra.mxu0 0
        %1745 = vmatpush.bf16.msra.mxu0 %v1734
        %1746 = vmatpush.bf16.msra.mxu0 %v1733
        %1747 = vmatmul.bf16.gmra.mxu0 %v1737
        %v1748 = vpop.f32.mrf.mxu0
        %v1749 = vadd.f32 %v1723, %v1748
        %v1750 = vpop.f32.mrf.mxu0
        %1751 = vdwg.mxu0
        %v1752 = vadd.f32 %v453, %v1749
        %v1753 = vld [vmem:[%s6] sm:$0x1]
        %v1754 = vld [vmem:[%s7] sm:$0x1]
        %v1755 = vsel %vm456, %v1752, 0.0
        %1756 = vadd.xlane.f32.xlu0 %v1755
        %v1757 = vpop.xlane.xlu0 %1756
        %v1758 = vmul.f32 %v1752, %v1752
        %v1759 = vsel %vm456, %v1758, 0.0
        %1760 = vadd.xlane.f32.xlu0 %v1759
        %v1761 = vpop.xlane.xlu0 %1760
        %v1762 = vmul.f32 %v1757, 0.03125
        %v1763 = vmul.f32 %v1761, 0.03125
        %v1764 = vmul.f32 %v1762, %v1762
        %v1765 = vsub.f32 %v1763, %v1764
        %v1766 = vmax.f32 %v1765, 0.0
        %v1767 = vsub.f32 %v1752, %v1762
        %v1768 = vadd.f32 %v1766, 1e-05
        %v1769 = vrsqrt.pop %v1768
        %v1770 = vmul.f32 %v1769, %v1768
        %v1771 = vmul.f32 %v1770, %v1769
        %v1772 = vmul.f32 0.5, %v1771
        %v1773 = vsub.f32 1.5, %v1772
        %v1774 = vmul.f32 %v1769, %v1773
        %vm1775 = vweird.f32 %v1768
        %vm1776 = vweird.f32 %v1769
        %vm1777 = vmor %vm1775, %vm1776
        %v1778 = vsel %vm1777, %v1769, %v1774
        %v1779 = vmul.f32 %v1767, %v1778
        %v1781 = vperm.slane %v1753, 0
        %v1783 = vmul.f32 %v1779, %v1781
        %v1785 = vperm.slane %v1754, 0
        %v1787 = vadd.f32 %v1783, %v1785
        %v1788 = vpack.c.bf16 %v1787, %v1787
        %v1789 = vld [vmem:[%s8] sm:$0xf]
        %v1790 = vld [vmem:[%s8 + $0x4] sm:$0xf]
        %v1791 = vld [vmem:[%s8 + $0x8] sm:$0xf]
        %v1792 = vld [vmem:[%s8 + $0xc] sm:$0xf]
        %v1793 = vld [vmem:[%s9] sm:$0x1]
        %v1795 = vperm.slane %v1793, 0
        %v1801 = vunpack.c.l.b16 %v1789
        %v1802 = vunpack.c.l.b16 %v1790
        %v1803 = vunpack.c.l.b16 %v1791
        %v1804 = vunpack.c.l.b16 %v1792
        %v1805 = vpack.c.b16 %v1802, %v1801
        %v1806 = vpack.c.b16 %v1804, %v1803
        %v1810 = vsel %vm456, %v1788, 0
        %1812 = vmatpush.bf16.msra.mxu0 0
        %1813 = vmatpush.bf16.msra.mxu0 0
        %1814 = vmatpush.bf16.msra.mxu0 0
        %1815 = vmatpush.bf16.msra.mxu0 0
        %1816 = vmatpush.bf16.msra.mxu0 0
        %1817 = vmatpush.bf16.msra.mxu0 0
        %1818 = vmatpush.bf16.msra.mxu0 %v1806
        %1819 = vmatpush.bf16.msra.mxu0 %v1805
        %1820 = vmatmul.bf16.gmra.mxu0 %v1810
        %v1821 = vpop.f32.mrf.mxu0
        %v1822 = vadd.f32 %v1795, %v1821
        %v1823 = vpop.f32.mrf.mxu0
        %1824 = vdwg.mxu0
        %v1825 = vmax.f32 %v1822, 0.0
        %v1826 = vpack.c.bf16 %v1825, %v1825
        %v1827 = vld [vmem:[%s10] sm:$0xf]
        %v1828 = vld [vmem:[%s10 + $0x4] sm:$0xf]
        %v1829 = vld [vmem:[%s10 + $0x8] sm:$0xf]
        %v1830 = vld [vmem:[%s10 + $0xc] sm:$0xf]
        %v1831 = vld [vmem:[%s10 + $0x10] sm:$0xf]
        %v1832 = vld [vmem:[%s10 + $0x14] sm:$0xf]
        %v1833 = vld [vmem:[%s10 + $0x18] sm:$0xf]
        %v1834 = vld [vmem:[%s10 + $0x1c] sm:$0xf]
        %v1835 = vld [vmem:[%s10 + $0x20] sm:$0xf]
        %v1836 = vld [vmem:[%s10 + $0x24] sm:$0xf]
        %v1837 = vld [vmem:[%s10 + $0x28] sm:$0xf]
        %v1838 = vld [vmem:[%s10 + $0x2c] sm:$0xf]
        %v1839 = vld [vmem:[%s10 + $0x30] sm:$0xf]
        %v1840 = vld [vmem:[%s10 + $0x34] sm:$0xf]
        %v1841 = vld [vmem:[%s10 + $0x38] sm:$0xf]
        %v1842 = vld [vmem:[%s10 + $0x3c] sm:$0xf]
        %v1843 = vld [vmem:[%s11] sm:$0x1]
        %v1845 = vperm.slane %v1843, 0
        %v1863 = vunpack.c.l.b16 %v1827
        %v1864 = vunpack.c.l.b16 %v1828
        %v1865 = vunpack.c.l.b16 %v1829
        %v1866 = vunpack.c.l.b16 %v1830
        %v1867 = vunpack.c.l.b16 %v1831
        %v1868 = vunpack.c.l.b16 %v1832
        %v1869 = vunpack.c.l.b16 %v1833
        %v1870 = vunpack.c.l.b16 %v1834
        %v1871 = vunpack.c.l.b16 %v1835
        %v1872 = vunpack.c.l.b16 %v1836
        %v1873 = vunpack.c.l.b16 %v1837
        %v1874 = vunpack.c.l.b16 %v1838
        %v1875 = vunpack.c.l.b16 %v1839
        %v1876 = vunpack.c.l.b16 %v1840
        %v1877 = vunpack.c.l.b16 %v1841
        %v1878 = vunpack.c.l.b16 %v1842
        %v1879 = vpack.c.b16 %v1864, %v1863
        %v1880 = vpack.c.b16 %v1866, %v1865
        %v1881 = vpack.c.b16 %v1868, %v1867
        %v1882 = vpack.c.b16 %v1870, %v1869
        %v1883 = vpack.c.b16 %v1872, %v1871
        %v1884 = vpack.c.b16 %v1874, %v1873
        %v1885 = vpack.c.b16 %v1876, %v1875
        %v1886 = vpack.c.b16 %v1878, %v1877
        %1895 = vmatpush.bf16.msra.mxu0 %v1886
        %1896 = vmatpush.bf16.msra.mxu0 %v1885
        %1897 = vmatpush.bf16.msra.mxu0 %v1884
        %1898 = vmatpush.bf16.msra.mxu0 %v1883
        %1899 = vmatpush.bf16.msra.mxu0 %v1882
        %1900 = vmatpush.bf16.msra.mxu0 %v1881
        %1901 = vmatpush.bf16.msra.mxu0 %v1880
        %1902 = vmatpush.bf16.msra.mxu0 %v1879
        %1903 = vmatmul.bf16.gmra.mxu0 %v1826
        %v1904 = vpop.f32.mrf.mxu0
        %v1905 = vadd.f32 %v1845, %v1904
        %v1906 = vpop.f32.mrf.mxu0
        %1907 = vdwg.mxu0
        %v1908 = vadd.f32 %v1752, %v1905
        %1909 = vst.msk [vmem:[%s443] sm:$0xff] %vm456, %v1908
        %s1910 = sand.u32 %s308, 1
        %s1911 = scalar_lea.sflag [#allocation9], %s1910
        %s1912 = sand.u32 %s308, 1
        %s1913 = smul.addr %s1912, 8
        %s1914 = scalar_lea.vmem [#allocation10], %s1913
        // Predicated region
        $region80: #{tpu_custom_call.1} parent=67 // pred_check
          %p1915 = pneg %p318
        $region81: #{tpu_custom_call.1} parent=67 // pred_check_branch
          %1917 = sbr.rel (%p1915) target = $region83
        $region82: #{tpu_custom_call.1} parent=67 // pred_region
          %1919 = vsyncadd %s1911, 0
          %s1920 = smul.addr %s31, 2
          %s1921 = sadd.s32 %s32, %s1920
          %s1922 = smul.addr %s1921, 8
          %s1923 = scalar_lea.hbm %s12, %s1922
          %s1925 = sshll.u32 %s1914, 4
          %s1926 = int_to_ptr.vmem [resolvable:$true] %s1925
          %s1927 = sshll.u32 %s1923, 4
          %s1928 = int_to_ptr.hbm [resolvable:$true] %s1927
          %1930 = dma.vmem_to_hbm [thread:$0]  %s1926, 128, %s1928, %s1911
        $region83: #{tpu_custom_call.1} parent=67 // pred_fallthru
          _
      $region68: #{tpu_custom_call.1} parent=5 // pred_fallthru
        _
      %p1931 = scmp.le.s32.totalorder 2, %s22
      // Predicated region
      $region84: #{tpu_custom_call.1} parent=5 // pred_check
        %p1932 = pneg %p1931
      $region85: #{tpu_custom_call.1} parent=5 // pred_check_branch
        %1934 = sbr.rel (%p1932) target = $region87
      $region86: #{tpu_custom_call.1} parent=5 // pred_region
        %s1935 = ssub.s32 %s22, 2
        // Predicated region
        $region88: #{tpu_custom_call.1} parent=86 // pred_check
          %p1936 = pneg %p324
        $region89: #{tpu_custom_call.1} parent=86 // pred_check_branch
          %1938 = sbr.rel (%p1936) target = $region91
        $region90: #{tpu_custom_call.1} parent=86 // pred_region
          %s1939 = sand.u32 %s309, 1
          %s1940 = scalar_lea.sflag [#allocation9], %s1939
          %s1941 = sand.u32 %s309, 1
          %s1942 = smul.addr %s1941, 8
          %s1943 = scalar_lea.vmem [#allocation10], %s1942
          %1945 = dma.done %s1940, 128
        $region91: #{tpu_custom_call.1} parent=86 // pred_fallthru
          _
      $region87: #{tpu_custom_call.1} parent=5 // pred_fallthru
        _
    $region6: #{tpu_custom_call.1} parent=1 // loop_footer
      %s26 = sadd.s32 1, %s22
    $region7: #{tpu_custom_call.1} parent=1 // loop_footer_branch
      %21 = sbr.rel target = $region3
    $region8: #{tpu_custom_call.1} parent=1 // loop_exit
      _
    %1946 = vsyncpa [#allocation8], 1
    %s1947 = scalar_lea.sflag [#allocation8], 1
    %1948 = vsyncpa %s1947, 1
    %1949 = vsyncpa [#allocation9], 1
    %s1950 = scalar_lea.sflag [#allocation9], 1
    %1951 = vsyncpa %s1950, 1

// kernel: tpu_custom_call.1
$region0: #{tpu_custom_call.1}
  #allocation0 [shape = 'u32[]', space=smem, size = 0x4, offset = 0x4, fixed_abs, tag = 'smem constant byte address 0x4 - core index']
  #allocation1 [shape = 'u32[72,128]{1,0:T(1,128)}', space=vmem, size = 0x9000, scoped, tag = 'internal scratch']
  #allocation2 [shape = 'bf16[2,4,8,8]{3,2,1,0:T(8,128)(2,1)}', space=vmem, size = 0x4000, scoped, tag = 'scratch operand']
  #allocation3 [shape = 'bf16[2,4,8,8]{3,2,1,0:T(8,128)(2,1)}', space=vmem, size = 0x4000, scoped, tag = 'scratch operand']
  #allocation4 [shape = 'f32[4,8,1]{2,1,0:T(8,128)}', space=vmem, size = 0x4000, scoped, tag = 'scratch operand']
  #allocation5 [shape = 'f32[4,8,1]{2,1,0:T(8,128)}', space=vmem, size = 0x4000, scoped, tag = 'scratch operand']
  #allocation6 [shape = 'f32[4,8,8]{2,1,0:T(8,128)}', space=vmem, size = 0x4000, scoped, tag = 'scratch operand']
  %s0 = inlined_call_operand.vmem [shape: f32[2,16,32], index: 0, kind: input, shape index: {}]
  %s1 = inlined_call_operand.hbm [shape: f32[1,32], index: 1, kind: input, shape index: {}]
  %s2 = inlined_call_operand.vmem [shape: f32[1,32], index: 2, kind: input, shape index: {}]
  %s3 = inlined_call_operand.vmem [shape: bf16[32,96], index: 3, kind: input, shape index: {}]
  %s4 = inlined_call_operand.vmem [shape: bf16[32,32], index: 4, kind: input, shape index: {}]
  %s5 = inlined_call_operand.vmem [shape: f32[1,32], index: 5, kind: input, shape index: {}]
  %s6 = inlined_call_operand.vmem [shape: f32[1,32], index: 6, kind: input, shape index: {}]
  %s7 = inlined_call_operand.vmem [shape: f32[1,32], index: 7, kind: input, shape index: {}]
  %s8 = inlined_call_operand.vmem [shape: bf16[32,128], index: 8, kind: input, shape index: {}]
  %s9 = inlined_call_operand.vmem [shape: f32[1,128], index: 9, kind: input, shape index: {}]
  %s10 = inlined_call_operand.vmem [shape: bf16[128,32], index: 10, kind: input, shape index: {}]
  %s11 = inlined_call_operand.vmem [shape: f32[1,32], index: 11, kind: input, shape index: {}]
  %s12 = inlined_call_operand.hbm [shape: f32[2,16,32], index: 12, kind: output, shape index: {}]
  %s13 = sld [smem:[#allocation0]]
  $region92: #{tpu_custom_call.1} parent=0
    _
  %s15 = ssub.s32 1, %s13
  %s16 = scalar_select 0, %s15, %s13
  $region1: #{tpu_custom_call.1} parent=0
    #allocation7 [shape = 'u8[512]{0}', space=vmem, size = 0x400, scoped, tag = 'input window, operand 1, single buffered']
    #allocation8 [shape = 's32[2]{0}', space=sflag, size = 0x8, scoped, tag = 'scoped memory for tpu_custom_call.1']
    #allocation9 [shape = 's32[2]{0}', space=sflag, size = 0x8, scoped, tag = 'scoped memory for tpu_custom_call.1']
    #allocation10 [shape = 'u8[8192]{0}', space=vmem, size = 0x2000, scoped, tag = 'output window, operand 0']
    %17 = vsyncpa [#allocation8], 0
    %18 = vsyncpa [#allocation9], 0
    %s19 = scalar_lea.sflag [#allocation9], 1
    %20 = vsyncpa %s19, 0
    loop: start=0, step=1, limit=6
    $region2: #{tpu_custom_call.1} parent=1 // loop_pre_header
      _
    $region3: #{tpu_custom_call.1} parent=1 // loop_header
      %s22 = sphi 0, %s26
      %p23 = scmp.ge.s32.totalorder %s22, 6
      %s29 = sphi 0, %s41
      %s30 = sphi 0, %s37
      %s31 = sphi 0, %s29
      %s32 = sphi 0, %s30
      %s33 = sphi 0, %s31
      %s34 = sphi 0, %s32
      %s46 = sphi 0, %s48
      %s49 = sphi 0, %s46
      %s50 = sphi 0, %s49
      %s66 = sphi 0, %s50
      %s70 = sphi 0, %s70
      %s72 = sphi 0, %s70
      %s73 = sphi 0, %s72
      %s87 = sphi 0, %s73
      %s91 = sphi 0, %s91
      %s93 = sphi 0, %s91
      %s94 = sphi 0, %s93
      %s108 = sphi 0, %s94
      %s112 = sphi 0, %s112
      %s114 = sphi 0, %s112
      %s115 = sphi 0, %s114
      %s129 = sphi 0, %s115
      %s133 = sphi 0, %s133
      %s135 = sphi 0, %s133
      %s136 = sphi 0, %s135
      %s150 = sphi 0, %s136
      %s154 = sphi 0, %s154
      %s156 = sphi 0, %s154
      %s157 = sphi 0, %s156
      %s171 = sphi 0, %s157
      %s175 = sphi 0, %s175
      %s177 = sphi 0, %s175
      %s178 = sphi 0, %s177
      %s192 = sphi 0, %s178
      %s196 = sphi 0, %s196
      %s198 = sphi 0, %s196
      %s199 = sphi 0, %s198
      %s213 = sphi 0, %s199
      %s217 = sphi 0, %s217
      %s219 = sphi 0, %s217
      %s220 = sphi 0, %s219
      %s234 = sphi 0, %s220
      %s238 = sphi 0, %s238
      %s240 = sphi 0, %s238
      %s241 = sphi 0, %s240
      %s255 = sphi 0, %s241
      %s259 = sphi 0, %s259
      %s261 = sphi 0, %s259
      %s262 = sphi 0, %s261
      %s276 = sphi 0, %s262
      %s280 = sphi 0, %s280
      %s282 = sphi 0, %s280
      %s283 = sphi 0, %s282
      %s297 = sphi 0, %s283
      %s305 = sphi 0, %s307
      %s308 = sphi 0, %s305
      %s309 = sphi 0, %s308
      %s325 = sphi 0, %s309
    $region4: #{tpu_custom_call.1} parent=1 // loop_header_branch
      %25 = sbr.rel (%p23) target = $region8
    $region5: #{tpu_custom_call.1} parent=1 // loop_body
      %s27 = ssub.s32 %s22, 1
      %s28 = ssub.s32 %s22, 2
      %s35 = sadd.s32 1, %s30
      %p36 = scmp.ge.s32.totalorder %s35, 2
      %s37 = scalar_select %p36, 0, %s35
      %s38 = sadd.s32 1, %s29
      %s39 = scalar_select %p36, %s38, %s29
      %p40 = scmp.ge.s32.totalorder %s39, 2
      %s41 = scalar_select %p40, 0, %s39
      %s42 = ssub.s32 %s29, %s41
      %s43 = ssub.s32 %s30, %s37
      %s44 = sor.u32 %s42, %s43
      %p45 = scmp.eq.s32.totalorder %s44, 0
      %s47 = sadd.s32 %s46, 1
      %s48 = scalar_select %p45, %s46, %s47
      %p51 = pneg %p45
      %p52 = scmp.eq.s32.totalorder %s22, 3
      %p53 = por %p51, %p52
      %p54 = scmp.ne.s32.totalorder %s46, %s49
      %p55 = scmp.eq.s32.totalorder %s22, 0
      %p56 = por %p54, %p55
      %p57 = scmp.ne.s32.totalorder %s46, %s49
      %p58 = scmp.eq.s32.totalorder %s27, 3
      %p59 = por %p57, %p58
      %p60 = scmp.ne.s32.totalorder %s49, %s50
      %p61 = scmp.eq.s32.totalorder %s27, 0
      %p62 = por %p60, %p61
      %p63 = scmp.ne.s32.totalorder %s49, %s50
      %p64 = scmp.eq.s32.totalorder %s28, 3
      %p65 = por %p63, %p64
      %p67 = scmp.ne.s32.totalorder %s50, %s66
      %p68 = scmp.eq.s32.totalorder %s28, 0
      %p69 = por %p67, %p68
      %s71 = sadd.s32 %s70, 1
      %p74 = scmp.eq.s32.totalorder %s22, 3
      %p75 = scmp.ne.s32.totalorder %s70, %s72
      %p76 = scmp.eq.s32.totalorder %s22, 0
      %p77 = por %p75, %p76
      %p78 = scmp.ne.s32.totalorder %s70, %s72
      %p79 = scmp.eq.s32.totalorder %s27, 3
      %p80 = por %p78, %p79
      %p81 = scmp.ne.s32.totalorder %s72, %s73
      %p82 = scmp.eq.s32.totalorder %s27, 0
      %p83 = por %p81, %p82
      %p84 = scmp.ne.s32.totalorder %s72, %s73
      %p85 = scmp.eq.s32.totalorder %s28, 3
      %p86 = por %p84, %p85
      %p88 = scmp.ne.s32.totalorder %s73, %s87
      %p89 = scmp.eq.s32.totalorder %s28, 0
      %p90 = por %p88, %p89
      %s92 = sadd.s32 %s91, 1
      %p95 = scmp.eq.s32.totalorder %s22, 3
      %p96 = scmp.ne.s32.totalorder %s91, %s93
      %p97 = scmp.eq.s32.totalorder %s22, 0
      %p98 = por %p96, %p97
      %p99 = scmp.ne.s32.totalorder %s91, %s93
      %p100 = scmp.eq.s32.totalorder %s27, 3
      %p101 = por %p99, %p100
      %p102 = scmp.ne.s32.totalorder %s93, %s94
      %p103 = scmp.eq.s32.totalorder %s27, 0
      %p104 = por %p102, %p103
      %p105 = scmp.ne.s32.totalorder %s93, %s94
      %p106 = scmp.eq.s32.totalorder %s28, 3
      %p107 = por %p105, %p106
      %p109 = scmp.ne.s32.totalorder %s94, %s108
      %p110 = scmp.eq.s32.totalorder %s28, 0
      %p111 = por %p109, %p110
      %s113 = sadd.s32 %s112, 1
      %p116 = scmp.eq.s32.totalorder %s22, 3
      %p117 = scmp.ne.s32.totalorder %s112, %s114
      %p118 = scmp.eq.s32.totalorder %s22, 0
      %p119 = por %p117, %p118
      %p120 = scmp.ne.s32.totalorder %s112, %s114
      %p121 = scmp.eq.s32.totalorder %s27, 3
      %p122 = por %p120, %p121
      %p123 = scmp.ne.s32.totalorder %s114, %s115
      %p124 = scmp.eq.s32.totalorder %s27, 0
      %p125 = por %p123, %p124
      %p126 = scmp.ne.s32.totalorder %s114, %s115
      %p127 = scmp.eq.s32.totalorder %s28, 3
      %p128 = por %p126, %p127
      %p130 = scmp.ne.s32.totalorder %s115, %s129
      %p131 = scmp.eq.s32.totalorder %s28, 0
      %p132 = por %p130, %p131
      %s134 = sadd.s32 %s133, 1
      %p137 = scmp.eq.s32.totalorder %s22, 3
      %p138 = scmp.ne.s32.totalorder %s133, %s135
      %p139 = scmp.eq.s32.totalorder %s22, 0
      %p140 = por %p138, %p139
      %p141 = scmp.ne.s32.totalorder %s133, %s135
      %p142 = scmp.eq.s32.totalorder %s27, 3
      %p143 = por %p141, %p142
      %p144 = scmp.ne.s32.totalorder %s135, %s136
      %p145 = scmp.eq.s32.totalorder %s27, 0
      %p146 = por %p144, %p145
      %p147 = scmp.ne.s32.totalorder %s135, %s136
      %p148 = scmp.eq.s32.totalorder %s28, 3
      %p149 = por %p147, %p148
      %p151 = scmp.ne.s32.totalorder %s136, %s150
      %p152 = scmp.eq.s32.totalorder %s28, 0
      %p153 = por %p151, %p152
      %s155 = sadd.s32 %s154, 1
      %p158 = scmp.eq.s32.totalorder %s22, 3
      %p159 = scmp.ne.s32.totalorder %s154, %s156
      %p160 = scmp.eq.s32.totalorder %s22, 0
      %p161 = por %p159, %p160
      %p162 = scmp.ne.s32.totalorder %s154, %s156
      %p163 = scmp.eq.s32.totalorder %s27, 3
      %p164 = por %p162, %p163
      %p165 = scmp.ne.s32.totalorder %s156, %s157
      %p166 = scmp.eq.s32.totalorder %s27, 0
      %p167 = por %p165, %p166
      %p168 = scmp.ne.s32.totalorder %s156, %s157
      %p169 = scmp.eq.s32.totalorder %s28, 3
      %p170 = por %p168, %p169
      %p172 = scmp.ne.s32.totalorder %s157, %s171
      %p173 = scmp.eq.s32.totalorder %s28, 0
      %p174 = por %p172, %p173
      %s176 = sadd.s32 %s175, 1
      %p179 = scmp.eq.s32.totalorder %s22, 3
      %p180 = scmp.ne.s32.totalorder %s175, %s177
      %p181 = scmp.eq.s32.totalorder %s22, 0
      %p182 = por %p180, %p181
      %p183 = scmp.ne.s32.totalorder %s175, %s177
      %p184 = scmp.eq.s32.totalorder %s27, 3
      %p185 = por %p183, %p184
      %p186 = scmp.ne.s32.totalorder %s177, %s178
      %p187 = scmp.eq.s32.totalorder %s27, 0
      %p188 = por %p186, %p187
      %p189 = scmp.ne.s32.totalorder %s177, %s178
      %p190 = scmp.eq.s32.totalorder %s28, 3
      %p191 = por %p189, %p190
      %p193 = scmp.ne.s32.totalorder %s178, %s192
      %p194 = scmp.eq.s32.totalorder %s28, 0
      %p195 = por %p193, %p194
      %s197 = sadd.s32 %s196, 1
      %p200 = scmp.eq.s32.totalorder %s22, 3
      %p201 = scmp.ne.s32.totalorder %s196, %s198
      %p202 = scmp.eq.s32.totalorder %s22, 0
      %p203 = por %p201, %p202
      %p204 = scmp.ne.s32.totalorder %s196, %s198
      %p205 = scmp.eq.s32.totalorder %s27, 3
      %p206 = por %p204, %p205
      %p207 = scmp.ne.s32.totalorder %s198, %s199
      %p208 = scmp.eq.s32.totalorder %s27, 0
      %p209 = por %p207, %p208
      %p210 = scmp.ne.s32.totalorder %s198, %s199
      %p211 = scmp.eq.s32.totalorder %s28, 3
      %p212 = por %p210, %p211
      %p214 = scmp.ne.s32.totalorder %s199, %s213
      %p215 = scmp.eq.s32.totalorder %s28, 0
      %p216 = por %p214, %p215
      %s218 = sadd.s32 %s217, 1
      %p221 = scmp.eq.s32.totalorder %s22, 3
      %p222 = scmp.ne.s32.totalorder %s217, %s219
      %p223 = scmp.eq.s32.totalorder %s22, 0
      %p224 = por %p222, %p223
      %p225 = scmp.ne.s32.totalorder %s217, %s219
      %p226 = scmp.eq.s32.totalorder %s27, 3
      %p227 = por %p225, %p226
      %p228 = scmp.ne.s32.totalorder %s219, %s220
      %p229 = scmp.eq.s32.totalorder %s27, 0
      %p230 = por %p228, %p229
      %p231 = scmp.ne.s32.totalorder %s219, %s220
      %p232 = scmp.eq.s32.totalorder %s28, 3
      %p233 = por %p231, %p232
      %p235 = scmp.ne.s32.totalorder %s220, %s234
      %p236 = scmp.eq.s32.totalorder %s28, 0
      %p237 = por %p235, %p236
      %s239 = sadd.s32 %s238, 1
      %p242 = scmp.eq.s32.totalorder %s22, 3
      %p243 = scmp.ne.s32.totalorder %s238, %s240
      %p244 = scmp.eq.s32.totalorder %s22, 0
      %p245 = por %p243, %p244
      %p246 = scmp.ne.s32.totalorder %s238, %s240
      %p247 = scmp.eq.s32.totalorder %s27, 3
      %p248 = por %p246, %p247
      %p249 = scmp.ne.s32.totalorder %s240, %s241
      %p250 = scmp.eq.s32.totalorder %s27, 0
      %p251 = por %p249, %p250
      %p252 = scmp.ne.s32.totalorder %s240, %s241
      %p253 = scmp.eq.s32.totalorder %s28, 3
      %p254 = por %p252, %p253
      %p256 = scmp.ne.s32.totalorder %s241, %s255
      %p257 = scmp.eq.s32.totalorder %s28, 0
      %p258 = por %p256, %p257
      %s260 = sadd.s32 %s259, 1
      %p263 = scmp.eq.s32.totalorder %s22, 3
      %p264 = scmp.ne.s32.totalorder %s259, %s261
      %p265 = scmp.eq.s32.totalorder %s22, 0
      %p266 = por %p264, %p265
      %p267 = scmp.ne.s32.totalorder %s259, %s261
      %p268 = scmp.eq.s32.totalorder %s27, 3
      %p269 = por %p267, %p268
      %p270 = scmp.ne.s32.totalorder %s261, %s262
      %p271 = scmp.eq.s32.totalorder %s27, 0
      %p272 = por %p270, %p271
      %p273 = scmp.ne.s32.totalorder %s261, %s262
      %p274 = scmp.eq.s32.totalorder %s28, 3
      %p275 = por %p273, %p274
      %p277 = scmp.ne.s32.totalorder %s262, %s276
      %p278 = scmp.eq.s32.totalorder %s28, 0
      %p279 = por %p277, %p278
      %s281 = sadd.s32 %s280, 1
      %p284 = scmp.eq.s32.totalorder %s22, 3
      %p285 = scmp.ne.s32.totalorder %s280, %s282
      %p286 = scmp.eq.s32.totalorder %s22, 0
      %p287 = por %p285, %p286
      %p288 = scmp.ne.s32.totalorder %s280, %s282
      %p289 = scmp.eq.s32.totalorder %s27, 3
      %p290 = por %p288, %p289
      %p291 = scmp.ne.s32.totalorder %s282, %s283
      %p292 = scmp.eq.s32.totalorder %s27, 0
      %p293 = por %p291, %p292
      %p294 = scmp.ne.s32.totalorder %s282, %s283
      %p295 = scmp.eq.s32.totalorder %s28, 3
      %p296 = por %p294, %p295
      %p298 = scmp.ne.s32.totalorder %s283, %s297
      %p299 = scmp.eq.s32.totalorder %s28, 0
      %p300 = por %p298, %p299
      %s301 = ssub.s32 %s29, %s41
      %s302 = ssub.s32 %s30, %s37
      %s303 = sor.u32 %s301, %s302
      %p304 = scmp.eq.s32.totalorder %s303, 0
      %s306 = sadd.s32 %s305, 1
      %s307 = scalar_select %p304, %s305, %s306
      %p310 = pneg %p304
      %p311 = scmp.eq.s32.totalorder %s22, 3
      %p312 = por %p310, %p311
      %p313 = scmp.ne.s32.totalorder %s305, %s308
      %p314 = scmp.eq.s32.totalorder %s22, 0
      %p315 = por %p313, %p314
      %p316 = scmp.ne.s32.totalorder %s305, %s308
      %p317 = scmp.eq.s32.totalorder %s27, 3
      %p318 = por %p316, %p317
      %p319 = scmp.ne.s32.totalorder %s308, %s309
      %p320 = scmp.eq.s32.totalorder %s27, 0
      %p321 = por %p319, %p320
      %p322 = scmp.ne.s32.totalorder %s308, %s309
      %p323 = scmp.eq.s32.totalorder %s28, 3
      %p324 = por %p322, %p323
      %p326 = scmp.ne.s32.totalorder %s309, %s325
      %p327 = scmp.eq.s32.totalorder %s28, 0
      %p328 = por %p326, %p327
      %p329 = scmp.le.s32.totalorder 1, %s22
      %p330 = scmp.lt.s32.totalorder %s22, 5
      %p331 = pnand %p329, %p330
      %p332 = pneg %p331
      // Predicated region
      $region9: #{tpu_custom_call.1} parent=5 // pred_check
        _
      $region10: #{tpu_custom_call.1} parent=5 // pred_check_branch
        %334 = sbr.rel (%p331) target = $region12
      $region11: #{tpu_custom_call.1} parent=5 // pred_region
        %s335 = ssub.s32 %s22, 1
        // Predicated region
        $region13: #{tpu_custom_call.1} parent=11 // pred_check
          %p336 = pneg %p83
        $region14: #{tpu_custom_call.1} parent=11 // pred_check_branch
          %338 = sbr.rel (%p336) target = $region16
        $region15: #{tpu_custom_call.1} parent=11 // pred_region
          %340 = vsyncadd [#allocation8], 0
          %s342 = sshll.u32 %s1, 4
          %s343 = int_to_ptr.hbm [resolvable:$true] %s342
          %s344 = sshll.u32 [#allocation7], 4
          %s345 = int_to_ptr.vmem [resolvable:$true] %s344
          %347 = dma.hbm_to_vmem [thread:$0]  %s343, 16, %s345, [#allocation8]
        $region16: #{tpu_custom_call.1} parent=11 // pred_fallthru
          _
        // Predicated region
        $region17: #{tpu_custom_call.1} parent=11 // pred_check
          %p348 = pneg %p104
        $region18: #{tpu_custom_call.1} parent=11 // pred_check_branch
          %350 = sbr.rel (%p348) target = $region20
        $region19: #{tpu_custom_call.1} parent=11 // pred_region
          _
        $region20: #{tpu_custom_call.1} parent=11 // pred_fallthru
          _
        // Predicated region
        $region21: #{tpu_custom_call.1} parent=11 // pred_check
          %p351 = pneg %p125
        $region22: #{tpu_custom_call.1} parent=11 // pred_check_branch
          %353 = sbr.rel (%p351) target = $region24
        $region23: #{tpu_custom_call.1} parent=11 // pred_region
          _
        $region24: #{tpu_custom_call.1} parent=11 // pred_fallthru
          _
        // Predicated region
        $region25: #{tpu_custom_call.1} parent=11 // pred_check
          %p354 = pneg %p146
        $region26: #{tpu_custom_call.1} parent=11 // pred_check_branch
          %356 = sbr.rel (%p354) target = $region28
        $region27: #{tpu_custom_call.1} parent=11 // pred_region
          _
        $region28: #{tpu_custom_call.1} parent=11 // pred_fallthru
          _
        // Predicated region
        $region29: #{tpu_custom_call.1} parent=11 // pred_check
          %p357 = pneg %p167
        $region30: #{tpu_custom_call.1} parent=11 // pred_check_branch
          %359 = sbr.rel (%p357) target = $region32
        $region31: #{tpu_custom_call.1} parent=11 // pred_region
          _
        $region32: #{tpu_custom_call.1} parent=11 // pred_fallthru
          _
        // Predicated region
        $region33: #{tpu_custom_call.1} parent=11 // pred_check
          %p360 = pneg %p188
        $region34: #{tpu_custom_call.1} parent=11 // pred_check_branch
          %362 = sbr.rel (%p360) target = $region36
        $region35: #{tpu_custom_call.1} parent=11 // pred_region
          _
        $region36: #{tpu_custom_call.1} parent=11 // pred_fallthru
          _
        // Predicated region
        $region37: #{tpu_custom_call.1} parent=11 // pred_check
          %p363 = pneg %p209
        $region38: #{tpu_custom_call.1} parent=11 // pred_check_branch
          %365 = sbr.rel (%p363) target = $region40
        $region39: #{tpu_custom_call.1} parent=11 // pred_region
          _
        $region40: #{tpu_custom_call.1} parent=11 // pred_fallthru
          _
        // Predicated region
        $region41: #{tpu_custom_call.1} parent=11 // pred_check
          %p366 = pneg %p230
        $region42: #{tpu_custom_call.1} parent=11 // pred_check_branch
          %368 = sbr.rel (%p366) target = $region44
        $region43: #{tpu_custom_call.1} parent=11 // pred_region
          _
        $region44: #{tpu_custom_call.1} parent=11 // pred_fallthru
          _
        // Predicated region
        $region45: #{tpu_custom_call.1} parent=11 // pred_check
          %p369 = pneg %p251
        $region46: #{tpu_custom_call.1} parent=11 // pred_check_branch
          %371 = sbr.rel (%p369) target = $region48
        $region47: #{tpu_custom_call.1} parent=11 // pred_region
          _
        $region48: #{tpu_custom_call.1} parent=11 // pred_fallthru
          _
        // Predicated region
        $region49: #{tpu_custom_call.1} parent=11 // pred_check
          %p372 = pneg %p272
        $region50: #{tpu_custom_call.1} parent=11 // pred_check_branch
          %374 = sbr.rel (%p372) target = $region52
        $region51: #{tpu_custom_call.1} parent=11 // pred_region
          _
        $region52: #{tpu_custom_call.1} parent=11 // pred_fallthru
          _
        // Predicated region
        $region53: #{tpu_custom_call.1} parent=11 // pred_check
          %p375 = pneg %p293
        $region54: #{tpu_custom_call.1} parent=11 // pred_check_branch
          %377 = sbr.rel (%p375) target = $region56
        $region55: #{tpu_custom_call.1} parent=11 // pred_region
          _
        $region56: #{tpu_custom_call.1} parent=11 // pred_fallthru
          _
      $region12: #{tpu_custom_call.1} parent=5 // pred_fallthru
        _
      %p378 = scmp.lt.s32.totalorder %s22, 4
      // Predicated region
      $region57: #{tpu_custom_call.1} parent=5 // pred_check
        %p379 = pneg %p378
      $region58: #{tpu_custom_call.1} parent=5 // pred_check_branch
        %381 = sbr.rel (%p379) target = $region60
      $region59: #{tpu_custom_call.1} parent=5 // pred_region
        // Predicated region
        $region61: #{tpu_custom_call.1} parent=59 // pred_check
          %p382 = pneg %p56
        $region62: #{tpu_custom_call.1} parent=59 // pred_check_branch
          %384 = sbr.rel (%p382) target = $region64
        $region63: #{tpu_custom_call.1} parent=59 // pred_region
          %p385 = scmp.lt.s32.totalorder %s29, 1
          %s386 = scalar_select %p385, %s29, 1
          %p387 = scmp.lt.s32.totalorder %s30, 1
          %s388 = scalar_select %p387, %s30, 1
          %s389 = smul.addr %s386, 2
          %s390 = sadd.s32 %s388, %s389
          %s391 = smul.addr %s390, 8
          %s392 = scalar_lea.vmem %s0, %s391
        $region64: #{tpu_custom_call.1} parent=59 // pred_fallthru
          _
      $region60: #{tpu_custom_call.1} parent=5 // pred_fallthru
        _
      %p393 = scmp.le.s32.totalorder 1, %s22
      %p394 = scmp.lt.s32.totalorder %s22, 5
      %p395 = pnand %p393, %p394
      %p396 = pneg %p395
      // Predicated region
      $region65: #{tpu_custom_call.1} parent=5 // pred_check
        _
      $region66: #{tpu_custom_call.1} parent=5 // pred_check_branch
        %398 = sbr.rel (%p395) target = $region68
      $region67: #{tpu_custom_call.1} parent=5 // pred_region
        %s399 = ssub.s32 %s22, 1
        // Predicated region
        $region69: #{tpu_custom_call.1} parent=67 // pred_check
          %p400 = pneg %p83
        $region70: #{tpu_custom_call.1} parent=67 // pred_check_branch
          %402 = sbr.rel (%p400) target = $region72
        $region71: #{tpu_custom_call.1} parent=67 // pred_region
          %404 = dma.done [#allocation8], 16
        $region72: #{tpu_custom_call.1} parent=67 // pred_fallthru
          _
        %p405 = scmp.lt.s32.totalorder %s31, 1
        %s406 = scalar_select %p405, %s31, 1
        %p407 = scmp.lt.s32.totalorder %s32, 1
        %s408 = scalar_select %p407, %s32, 1
        %s409 = smul.addr %s406, 2
        %s410 = sadd.s32 %s408, %s409
        %s411 = smul.addr %s410, 8
        %s412 = scalar_lea.vmem %s0, %s411
        %p413 = pneg %p62
        %p414 = pneg %p59
        %p415 = pneg %p83
        %p416 = pneg %p80
        %p417 = pneg %p104
        %p418 = pneg %p101
        %p419 = pneg %p125
        %p420 = pneg %p122
        %p421 = pneg %p146
        %p422 = pneg %p143
        %p423 = pneg %p167
        %p424 = pneg %p164
        %p425 = pneg %p188
        %p426 = pneg %p185
        %p427 = pneg %p209
        %p428 = pneg %p206
        %p429 = pneg %p230
        %p430 = pneg %p227
        %p431 = pneg %p251
        %p432 = pneg %p248
        %p433 = pneg %p272
        %p434 = pneg %p269
        %p435 = pneg %p293
        %p436 = pneg %p290
        %p437 = pneg %p321
        %p438 = pneg %p318
        %s439 = sand.u32 %s308, 1
        %s440 = scalar_lea.sflag [#allocation9], %s439
        %s441 = sand.u32 %s308, 1
        %s442 = smul.addr %s441, 8
        %s443 = scalar_lea.vmem [#allocation10], %s442
        %p444 = scmp.lt.s32.totalorder %s31, 1
        %s445 = scalar_select %p444, %s31, 1
        %p446 = scmp.lt.s32.totalorder %s32, 1
        %s447 = scalar_select %p446, %s32, 1
        %s448 = smul.addr %s445, 2
        %s449 = sadd.s32 %s447, %s448
        %s450 = smul.addr %s449, 8
        %s451 = scalar_lea.vmem %s0, %s450
        %v453 = vld [vmem:[%s451] sm:$0xff]
        %v454 = vld [vmem:[#allocation7] sm:$0x1]
        %v455 = vld [vmem:[%s2] sm:$0x1]
        %vm456 = vcmask 261120
        %v457 = vsel %vm456, %v453, 0.0
        %458 = vadd.xlane.f32.xlu0 %v457
        %v459 = vpop.xlane.xlu0 %458
        %v460 = vmul.f32 %v453, %v453
        %v461 = vsel %vm456, %v460, 0.0
        %462 = vadd.xlane.f32.xlu0 %v461
        %v463 = vpop.xlane.xlu0 %462
        %v464 = vmul.f32 %v459, 0.03125
        %v465 = vmul.f32 %v463, 0.03125
        %v466 = vmul.f32 %v464, %v464
        %v467 = vsub.f32 %v465, %v466
        %v468 = vmax.f32 %v467, 0.0
        %v469 = vsub.f32 %v453, %v464
        %v470 = vadd.f32 %v468, 1e-05
        %v471 = vrsqrt.pop %v470
        %v472 = vmul.f32 %v471, %v470
        %v473 = vmul.f32 %v472, %v471
        %v474 = vmul.f32 0.5, %v473
        %v475 = vsub.f32 1.5, %v474
        %v476 = vmul.f32 %v471, %v475
        %vm477 = vweird.f32 %v470
        %vm478 = vweird.f32 %v471
        %vm479 = vmor %vm477, %vm478
        %v480 = vsel %vm479, %v471, %v476
        %v481 = vmul.f32 %v469, %v480
        %v483 = vperm.slane %v454, 0
        %v485 = vmul.f32 %v481, %v483
        %v487 = vperm.slane %v455, 0
        %v489 = vadd.f32 %v485, %v487
        %v490 = vpack.c.bf16 %v489, %v489
        %v491 = vld [vmem:[%s3] sm:$0xf]
        %v492 = vld [vmem:[%s3 + $0x4] sm:$0xf]
        %v493 = vld [vmem:[%s3 + $0x8] sm:$0xf]
        %v494 = vld [vmem:[%s3 + $0xc] sm:$0xf]
        %v499 = vunpack.c.l.b16 %v491
        %v500 = vunpack.c.l.b16 %v492
        %v501 = vunpack.c.l.b16 %v493
        %v502 = vunpack.c.l.b16 %v494
        %v503 = vpack.c.b16 %v500, %v499
        %v504 = vpack.c.b16 %v502, %v501
        %v508 = vsel %vm456, %v490, 0
        %510 = vmatpush.bf16.msra.mxu0 0
        %511 = vmatpush.bf16.msra.mxu0 0
        %512 = vmatpush.bf16.msra.mxu0 0
        %513 = vmatpush.bf16.msra.mxu0 0
        %514 = vmatpush.bf16.msra.mxu0 0
        %515 = vmatpush.bf16.msra.mxu0 0
        %516 = vmatpush.bf16.msra.mxu0 %v504
        %517 = vmatpush.bf16.msra.mxu0 %v503
        %518 = vmatmul.bf16.gmra.mxu0 %v508
        %v519 = vpop.f32.mrf.mxu0
        %v520 = vadd.f32 0.0, %v519
        %v521 = vpop.f32.mrf.mxu0
        %522 = vdwg.mxu0
        %v523 = vpack.c.bf16 %v520, %v520
        %525 = vrot.lane.b32.xlu0 %v523, 120
        %v526 = vpop.permute.xlu0 %525
        %527 = vrot.lane.b32.xlu0 %v523, 112
        %v528 = vpop.permute.xlu0 %527
        %529 = vrot.lane.b32.xlu0 %v523, 104
        %v530 = vpop.permute.xlu0 %529
        %v533 = vpack.i.b16 %v526, %v523
        %v534 = vshrl.u32 %v523, 16
        %v535 = vshrl.u32 %v526, 16
        %v536 = vpack.i.b16 %v535, %v534
        %v539 = vpack.i.b16 %v530, %v528
        %v540 = vshrl.u32 %v528, 16
        %v541 = vshrl.u32 %v530, 16
        %v542 = vpack.i.b16 %v541, %v540
        %v545 = vunpack.c.l.s4 1983009808
        %v546 = vunpack.c.0.s8 %v545
        %v547 = vperm.slane %v533, %v546
        %v550 = vunpack.c.l.s4 1983009808
        %v551 = vunpack.c.0.s8 %v550
        %v552 = vperm.slane %v539, %v551
        %v553 = vrot.slane %v552, 4
        %vm554 = vcmask 1047556
        %v555 = vsel %vm554, %v553, %v547
        %v556 = vrot.slane %v547, 4
        %v557 = vsel %vm554, %v552, %v556
        %v559 = vunpack.c.l.s4 1934713408
        %v560 = vunpack.c.0.s8 %v559
        %v561 = vperm.slane %v555, %v560
        %v563 = vunpack.c.l.s4 1934713408
        %v564 = vunpack.c.0.s8 %v563
        %v565 = vperm.slane %v557, %v564
        %v566 = vrot.slane %v561, 4
        %v567 = vsel %vm554, 0, %v566
        %v568 = vrot.slane %v565, 4
        %v569 = vsel %vm554, 0, %v568
        %v572 = vunpack.c.l.s4 1983009808
        %v573 = vunpack.c.0.s8 %v572
        %v574 = vperm.slane %v536, %v573
        %v577 = vunpack.c.l.s4 1983009808
        %v578 = vunpack.c.0.s8 %v577
        %v579 = vperm.slane %v542, %v578
        %v580 = vrot.slane %v579, 4
        %v581 = vsel %vm554, %v580, %v574
        %v582 = vrot.slane %v574, 4
        %v583 = vsel %vm554, %v579, %v582
        %v585 = vunpack.c.l.s4 1934713408
        %v586 = vunpack.c.0.s8 %v585
        %v587 = vperm.slane %v581, %v586
        %v589 = vunpack.c.l.s4 1934713408
        %v590 = vunpack.c.0.s8 %v589
        %v591 = vperm.slane %v583, %v590
        %v592 = vrot.slane %v587, 4
        %v593 = vsel %vm554, 0, %v592
        %v594 = vrot.slane %v591, 4
        %v595 = vsel %vm554, 0, %v594
        %v596 = vsel %vm554, %v568, %v561
        %v598 = vunpack.c.l.s4 1983009808
        %v599 = vunpack.c.0.s8 %v598
        %v600 = vperm.slane %v596, %v599
        %v601 = vrot.slane %v569, 4
        %v602 = vsel %vm554, %v601, %v567
        %v604 = vunpack.c.l.s4 1983009808
        %v605 = vunpack.c.0.s8 %v604
        %v606 = vperm.slane %v602, %v605
        %v607 = vrot.slane %v606, 4
        %v608 = vsel %vm554, %v607, %v600
        %v610 = vunpack.c.l.s4 1934713408
        %v611 = vunpack.c.0.s8 %v610
        %v612 = vperm.slane %v608, %v611
        %v613 = vrot.slane %v612, 4
        %v614 = vsel %vm554, 0, %v613
        %v615 = vsel %vm554, %v594, %v587
        %v617 = vunpack.c.l.s4 1983009808
        %v618 = vunpack.c.0.s8 %v617
        %v619 = vperm.slane %v615, %v618
        %v620 = vrot.slane %v595, 4
        %v621 = vsel %vm554, %v620, %v593
        %v623 = vunpack.c.l.s4 1983009808
        %v624 = vunpack.c.0.s8 %v623
        %v625 = vperm.slane %v621, %v624
        %v626 = vrot.slane %v625, 4
        %v627 = vsel %vm554, %v626, %v619
        %v629 = vunpack.c.l.s4 1934713408
        %v630 = vunpack.c.0.s8 %v629
        %v631 = vperm.slane %v627, %v630
        %v632 = vrot.slane %v631, 4
        %v633 = vsel %vm554, 0, %v632
        %v636 = vpack.i.b16 %v631, %v612
        %v637 = vshrl.u32 %v612, 16
        %v638 = vshrl.u32 %v631, 16
        %v639 = vpack.i.b16 %v638, %v637
        %v642 = vpack.i.b16 %v633, %v614
        %v643 = vshrl.u32 %v614, 16
        %v644 = vshrl.u32 %v633, 16
        %v645 = vpack.i.b16 %v644, %v643
        %646 = vrot.lane.b32.xlu0 %v523, 96
        %v647 = vpop.permute.xlu0 %646
        %648 = vrot.lane.b32.xlu0 %v526, 96
        %v649 = vpop.permute.xlu0 %648
        %650 = vrot.lane.b32.xlu0 %v528, 96
        %v651 = vpop.permute.xlu0 %650
        %652 = vrot.lane.b32.xlu0 %v530, 96
        %v653 = vpop.permute.xlu0 %652
        %v656 = vpack.i.b16 %v649, %v647
        %v657 = vshrl.u32 %v647, 16
        %v658 = vshrl.u32 %v649, 16
        %v659 = vpack.i.b16 %v658, %v657
        %v662 = vpack.i.b16 %v653, %v651
        %v663 = vshrl.u32 %v651, 16
        %v664 = vshrl.u32 %v653, 16
        %v665 = vpack.i.b16 %v664, %v663
        %v668 = vunpack.c.l.s4 1983009808
        %v669 = vunpack.c.0.s8 %v668
        %v670 = vperm.slane %v656, %v669
        %v673 = vunpack.c.l.s4 1983009808
        %v674 = vunpack.c.0.s8 %v673
        %v675 = vperm.slane %v662, %v674
        %v676 = vrot.slane %v675, 4
        %v677 = vsel %vm554, %v676, %v670
        %v678 = vrot.slane %v670, 4
        %v679 = vsel %vm554, %v675, %v678
        %v681 = vunpack.c.l.s4 1934713408
        %v682 = vunpack.c.0.s8 %v681
        %v683 = vperm.slane %v677, %v682
        %v685 = vunpack.c.l.s4 1934713408
        %v686 = vunpack.c.0.s8 %v685
        %v687 = vperm.slane %v679, %v686
        %v688 = vrot.slane %v683, 4
        %v689 = vsel %vm554, 0, %v688
        %v690 = vrot.slane %v687, 4
        %v691 = vsel %vm554, 0, %v690
        %v694 = vunpack.c.l.s4 1983009808
        %v695 = vunpack.c.0.s8 %v694
        %v696 = vperm.slane %v659, %v695
        %v699 = vunpack.c.l.s4 1983009808
        %v700 = vunpack.c.0.s8 %v699
        %v701 = vperm.slane %v665, %v700
        %v702 = vrot.slane %v701, 4
        %v703 = vsel %vm554, %v702, %v696
        %v704 = vrot.slane %v696, 4
        %v705 = vsel %vm554, %v701, %v704
        %v707 = vunpack.c.l.s4 1934713408
        %v708 = vunpack.c.0.s8 %v707
        %v709 = vperm.slane %v703, %v708
        %v711 = vunpack.c.l.s4 1934713408
        %v712 = vunpack.c.0.s8 %v711
        %v713 = vperm.slane %v705, %v712
        %v714 = vrot.slane %v709, 4
        %v715 = vsel %vm554, 0, %v714
        %v716 = vrot.slane %v713, 4
        %v717 = vsel %vm554, 0, %v716
        %v718 = vsel %vm554, %v690, %v683
        %v720 = vunpack.c.l.s4 1983009808
        %v721 = vunpack.c.0.s8 %v720
        %v722 = vperm.slane %v718, %v721
        %v723 = vrot.slane %v691, 4
        %v724 = vsel %vm554, %v723, %v689
        %v726 = vunpack.c.l.s4 1983009808
        %v727 = vunpack.c.0.s8 %v726
        %v728 = vperm.slane %v724, %v727
        %v729 = vrot.slane %v728, 4
        %v730 = vsel %vm554, %v729, %v722
        %v732 = vunpack.c.l.s4 1934713408
        %v733 = vunpack.c.0.s8 %v732
        %v734 = vperm.slane %v730, %v733
        %v735 = vrot.slane %v734, 4
        %v736 = vsel %vm554, 0, %v735
        %v737 = vsel %vm554, %v716, %v709
        %v739 = vunpack.c.l.s4 1983009808
        %v740 = vunpack.c.0.s8 %v739
        %v741 = vperm.slane %v737, %v740
        %v742 = vrot.slane %v717, 4
        %v743 = vsel %vm554, %v742, %v715
        %v745 = vunpack.c.l.s4 1983009808
        %v746 = vunpack.c.0.s8 %v745
        %v747 = vperm.slane %v743, %v746
        %v748 = vrot.slane %v747, 4
        %v749 = vsel %vm554, %v748, %v741
        %v751 = vunpack.c.l.s4 1934713408
        %v752 = vunpack.c.0.s8 %v751
        %v753 = vperm.slane %v749, %v752
        %v754 = vrot.slane %v753, 4
        %v755 = vsel %vm554, 0, %v754
        %v758 = vpack.i.b16 %v753, %v734
        %v760 = vshrl.u32 %v734, 16
        %v761 = vshrl.u32 %v753, 16
        %v762 = vpack.i.b16 %v761, %v760
        %v766 = vpack.i.b16 %v755, %v736
        %v768 = vshrl.u32 %v736, 16
        %v769 = vshrl.u32 %v755, 16
        %v770 = vpack.i.b16 %v769, %v768
        %s772 = smul.u32 %s32, 4
        %s773 = smul.addr %s772, 4
        %s774 = scalar_lea.vmem [#allocation2], %s773
        %vm775 = vcmask 60416
        %776 = vst.msk [vmem:[%s774] sm:$0xf] %vm775, %v758
        %777 = vst.msk [vmem:[%s774 + $0x4] sm:$0xf] %vm775, %v762
        %778 = vst.msk [vmem:[%s774 + $0x8] sm:$0xf] %vm775, %v766
        %779 = vst.msk [vmem:[%s774 + $0xc] sm:$0xf] %vm775, %v770
        %780 = vrot.lane.b32.xlu0 %v523, 64
        %v781 = vpop.permute.xlu0 %780
        %782 = vrot.lane.b32.xlu0 %v526, 64
        %v783 = vpop.permute.xlu0 %782
        %784 = vrot.lane.b32.xlu0 %v528, 64
        %v785 = vpop.permute.xlu0 %784
        %786 = vrot.lane.b32.xlu0 %v530, 64
        %v787 = vpop.permute.xlu0 %786
        %v790 = vpack.i.b16 %v783, %v781
        %v791 = vshrl.u32 %v781, 16
        %v792 = vshrl.u32 %v783, 16
        %v793 = vpack.i.b16 %v792, %v791
        %v796 = vpack.i.b16 %v787, %v785
        %v797 = vshrl.u32 %v785, 16
        %v798 = vshrl.u32 %v787, 16
        %v799 = vpack.i.b16 %v798, %v797
        %v802 = vunpack.c.l.s4 1983009808
        %v803 = vunpack.c.0.s8 %v802
        %v804 = vperm.slane %v790, %v803
        %v807 = vunpack.c.l.s4 1983009808
        %v808 = vunpack.c.0.s8 %v807
        %v809 = vperm.slane %v796, %v808
        %v810 = vrot.slane %v809, 4
        %v811 = vsel %vm554, %v810, %v804
        %v812 = vrot.slane %v804, 4
        %v813 = vsel %vm554, %v809, %v812
        %v815 = vunpack.c.l.s4 1934713408
        %v816 = vunpack.c.0.s8 %v815
        %v817 = vperm.slane %v811, %v816
        %v819 = vunpack.c.l.s4 1934713408
        %v820 = vunpack.c.0.s8 %v819
        %v821 = vperm.slane %v813, %v820
        %v822 = vrot.slane %v817, 4
        %v823 = vsel %vm554, 0, %v822
        %v824 = vrot.slane %v821, 4
        %v825 = vsel %vm554, 0, %v824
        %v828 = vunpack.c.l.s4 1983009808
        %v829 = vunpack.c.0.s8 %v828
        %v830 = vperm.slane %v793, %v829
        %v833 = vunpack.c.l.s4 1983009808
        %v834 = vunpack.c.0.s8 %v833
        %v835 = vperm.slane %v799, %v834
        %v836 = vrot.slane %v835, 4
        %v837 = vsel %vm554, %v836, %v830
        %v838 = vrot.slane %v830, 4
        %v839 = vsel %vm554, %v835, %v838
        %v841 = vunpack.c.l.s4 1934713408
        %v842 = vunpack.c.0.s8 %v841
        %v843 = vperm.slane %v837, %v842
        %v845 = vunpack.c.l.s4 1934713408
        %v846 = vunpack.c.0.s8 %v845
        %v847 = vperm.slane %v839, %v846
        %v848 = vrot.slane %v843, 4
        %v849 = vsel %vm554, 0, %v848
        %v850 = vrot.slane %v847, 4
        %v851 = vsel %vm554, 0, %v850
        %v852 = vsel %vm554, %v824, %v817
        %v854 = vunpack.c.l.s4 1983009808
        %v855 = vunpack.c.0.s8 %v854
        %v856 = vperm.slane %v852, %v855
        %v857 = vrot.slane %v825, 4
        %v858 = vsel %vm554, %v857, %v823
        %v860 = vunpack.c.l.s4 1983009808
        %v861 = vunpack.c.0.s8 %v860
        %v862 = vperm.slane %v858, %v861
        %v863 = vrot.slane %v862, 4
        %v864 = vsel %vm554, %v863, %v856
        %v866 = vunpack.c.l.s4 1934713408
        %v867 = vunpack.c.0.s8 %v866
        %v868 = vperm.slane %v864, %v867
        %v869 = vrot.slane %v868, 4
        %v870 = vsel %vm554, 0, %v869
        %v871 = vsel %vm554, %v850, %v843
        %v873 = vunpack.c.l.s4 1983009808
        %v874 = vunpack.c.0.s8 %v873
        %v875 = vperm.slane %v871, %v874
        %v876 = vrot.slane %v851, 4
        %v877 = vsel %vm554, %v876, %v849
        %v879 = vunpack.c.l.s4 1983009808
        %v880 = vunpack.c.0.s8 %v879
        %v881 = vperm.slane %v877, %v880
        %v882 = vrot.slane %v881, 4
        %v883 = vsel %vm554, %v882, %v875
        %v885 = vunpack.c.l.s4 1934713408
        %v886 = vunpack.c.0.s8 %v885
        %v887 = vperm.slane %v883, %v886
        %v888 = vrot.slane %v887, 4
        %v889 = vsel %vm554, 0, %v888
        %v892 = vpack.i.b16 %v887, %v868
        %v894 = vshrl.u32 %v868, 16
        %v895 = vshrl.u32 %v887, 16
        %v896 = vpack.i.b16 %v895, %v894
        %v900 = vpack.i.b16 %v889, %v870
        %v902 = vshrl.u32 %v870, 16
        %v903 = vshrl.u32 %v889, 16
        %v904 = vpack.i.b16 %v903, %v902
        %s906 = smul.addr %s772, 4
        %s907 = scalar_lea.vmem [#allocation3], %s906
        %908 = vst.msk [vmem:[%s907] sm:$0xf] %vm775, %v892
        %909 = vst.msk [vmem:[%s907 + $0x4] sm:$0xf] %vm775, %v896
        %910 = vst.msk [vmem:[%s907 + $0x8] sm:$0xf] %vm775, %v900
        %911 = vst.msk [vmem:[%s907 + $0xc] sm:$0xf] %vm775, %v904
        %vm912 = vcmask 7168
        %913 = vst.msk [vmem:[#allocation4] sm:$0xff] %vm912, -1e+30
        %914 = vst.msk [vmem:[#allocation4 + $0x8] sm:$0xff] %vm912, -1e+30
        %915 = vst.msk [vmem:[#allocation4 + $0x10] sm:$0xff] %vm912, -1e+30
        %916 = vst.msk [vmem:[#allocation4 + $0x18] sm:$0xff] %vm912, -1e+30
        %917 = vst.msk [vmem:[#allocation5] sm:$0xff] %vm912, 0.0
        %918 = vst.msk [vmem:[#allocation5 + $0x8] sm:$0xff] %vm912, 0.0
        %919 = vst.msk [vmem:[#allocation5 + $0x10] sm:$0xff] %vm912, 0.0
        %920 = vst.msk [vmem:[#allocation5 + $0x18] sm:$0xff] %vm912, 0.0
        %vm921 = vcmask 64512
        %922 = vst.msk [vmem:[#allocation6] sm:$0xff] %vm921, 0.0
        %923 = vst.msk [vmem:[#allocation6 + $0x8] sm:$0xff] %vm921, 0.0
        %924 = vst.msk [vmem:[#allocation6 + $0x10] sm:$0xff] %vm921, 0.0
        %925 = vst.msk [vmem:[#allocation6 + $0x18] sm:$0xff] %vm921, 0.0
        // While loop
        $region73: #{tpu_custom_call.1} parent=67 // loop_pre_header
          _
        $region74: #{tpu_custom_call.1} parent=67 // loop_header
          %s927 = sphi 0, %s929
          %p928 = scmp.ge.s32.totalorder %s927, %s32
        $region75: #{tpu_custom_call.1} parent=67 // loop_header_branch
          %931 = sbr.rel (%p928) target = $region79
        $region76: #{tpu_custom_call.1} parent=67 // loop_body
          %s932 = smul.u32 %s927, 4
          %s933 = smul.addr %s932, 4
          %s934 = scalar_lea.vmem [#allocation2], %s933
          %v935 = vld [vmem:[%s934] sm:$0xf]
          %v936 = vld [vmem:[%s934 + $0x4] sm:$0xf]
          %v937 = vld [vmem:[%s934 + $0x8] sm:$0xf]
          %v938 = vld [vmem:[%s934 + $0xc] sm:$0xf]
          %v940 = vsel %vm921, %v636, 0
          %v943 = vsel %vm921, %v935, 0
          %945 = vmatpush.bf16.xpose.msra.mxu0 0
          %946 = vmatpush.bf16.xpose.msra.mxu0 0
          %947 = vmatpush.bf16.xpose.msra.mxu0 0
          %948 = vmatpush.bf16.xpose.msra.mxu0 0
          %949 = vmatpush.bf16.xpose.msra.mxu0 0
          %950 = vmatpush.bf16.xpose.msra.mxu0 0
          %951 = vmatpush.bf16.xpose.msra.mxu0 0
          %952 = vmatpush.bf16.xpose.msra.mxu0 %v943
          %953 = vmatmul.bf16.gmra.mxu0 %v940
          %v954 = vpop.f32.mrf.mxu0
          %v955 = vadd.f32 0.0, %v954
          %v956 = vpop.f32.mrf.mxu0
          %957 = vdwg.mxu0
          %v959 = vsel %vm921, %v639, 0
          %v962 = vsel %vm921, %v936, 0
          %964 = vmatpush.bf16.xpose.msra.mxu0 0
          %965 = vmatpush.bf16.xpose.msra.mxu0 0
          %966 = vmatpush.bf16.xpose.msra.mxu0 0
          %967 = vmatpush.bf16.xpose.msra.mxu0 0
          %968 = vmatpush.bf16.xpose.msra.mxu0 0
          %969 = vmatpush.bf16.xpose.msra.mxu0 0
          %970 = vmatpush.bf16.xpose.msra.mxu0 0
          %971 = vmatpush.bf16.xpose.msra.mxu0 %v962
          %972 = vmatmul.bf16.gmra.mxu0 %v959
          %v973 = vpop.f32.mrf.mxu0
          %v974 = vadd.f32 0.0, %v973
          %v975 = vpop.f32.mrf.mxu0
          %976 = vdwg.mxu0
          %v978 = vsel %vm921, %v642, 0
          %v981 = vsel %vm921, %v937, 0
          %983 = vmatpush.bf16.xpose.msra.mxu0 0
          %984 = vmatpush.bf16.xpose.msra.mxu0 0
          %985 = vmatpush.bf16.xpose.msra.mxu0 0
          %986 = vmatpush.bf16.xpose.msra.mxu0 0
          %987 = vmatpush.bf16.xpose.msra.mxu0 0
          %988 = vmatpush.bf16.xpose.msra.mxu0 0
          %989 = vmatpush.bf16.xpose.msra.mxu0 0
          %990 = vmatpush.bf16.xpose.msra.mxu0 %v981
          %991 = vmatmul.bf16.gmra.mxu0 %v978
          %v992 = vpop.f32.mrf.mxu0
          %v993 = vadd.f32 0.0, %v992
          %v994 = vpop.f32.mrf.mxu0
          %995 = vdwg.mxu0
          %v997 = vsel %vm921, %v645, 0
          %v1000 = vsel %vm921, %v938, 0
          %1002 = vmatpush.bf16.xpose.msra.mxu0 0
          %1003 = vmatpush.bf16.xpose.msra.mxu0 0
          %1004 = vmatpush.bf16.xpose.msra.mxu0 0
          %1005 = vmatpush.bf16.xpose.msra.mxu0 0
          %1006 = vmatpush.bf16.xpose.msra.mxu0 0
          %1007 = vmatpush.bf16.xpose.msra.mxu0 0
          %1008 = vmatpush.bf16.xpose.msra.mxu0 0
          %1009 = vmatpush.bf16.xpose.msra.mxu0 %v1000
          %1010 = vmatmul.bf16.gmra.mxu0 %v997
          %v1011 = vpop.f32.mrf.mxu0
          %v1012 = vadd.f32 0.0, %v1011
          %v1013 = vpop.f32.mrf.mxu0
          %1014 = vdwg.mxu0
          %s1015 = smul.addr %s932, 4
          %s1016 = scalar_lea.vmem [#allocation3], %s1015
          %v1017 = vld [vmem:[%s1016] sm:$0xf]
          %v1018 = vld [vmem:[%s1016 + $0x4] sm:$0xf]
          %v1019 = vld [vmem:[%s1016 + $0x8] sm:$0xf]
          %v1020 = vld [vmem:[%s1016 + $0xc] sm:$0xf]
          %v1021 = vld [vmem:[#allocation4] sm:$0xff]
          %v1022 = vld [vmem:[#allocation4 + $0x8] sm:$0xff]
          %v1023 = vld [vmem:[#allocation4 + $0x10] sm:$0xff]
          %v1024 = vld [vmem:[#allocation4 + $0x18] sm:$0xff]
          %v1025 = vsel %vm921, %v955, -inf
          %1026 = vmax.xlane.f32.xlu0 %v1025
          %v1027 = vpop.xlane.xlu0 %1026
          %v1028 = vsel %vm921, %v974, -inf
          %1029 = vmax.xlane.f32.xlu0 %v1028
          %v1030 = vpop.xlane.xlu0 %1029
          %v1031 = vsel %vm921, %v993, -inf
          %1032 = vmax.xlane.f32.xlu0 %v1031
          %v1033 = vpop.xlane.xlu0 %1032
          %v1034 = vsel %vm921, %v1012, -inf
          %1035 = vmax.xlane.f32.xlu0 %v1034
          %v1036 = vpop.xlane.xlu0 %1035
          %v1037 = vmax.f32 %v1021, %v1027
          %v1038 = vmax.f32 %v1022, %v1030
          %v1039 = vmax.f32 %v1023, %v1033
          %v1040 = vmax.f32 %v1024, %v1036
          %v1041 = vsub.f32 %v1021, %v1037
          %v1042 = vsub.f32 %v1022, %v1038
          %v1043 = vsub.f32 %v1023, %v1039
          %v1044 = vsub.f32 %v1024, %v1040
          %v1045 = vmul.f32 %v1041, 1.442695
          %v1046 = vpow.pop %v1045
          %v1047 = vmul.f32 %v1042, 1.442695
          %v1048 = vpow.pop %v1047
          %v1049 = vmul.f32 %v1043, 1.442695
          %v1050 = vpow.pop %v1049
          %v1051 = vmul.f32 %v1044, 1.442695
          %v1052 = vpow.pop %v1051
          %1054 = vset.pattern.permute.xlu0 0
          %1055 = vperm.xlu0 %1054, %v1037
          %v1056 = vpop.permute.xlu0 %1055
          %1059 = vset.pattern.permute.xlu0 0
          %1060 = vperm.xlu0 %1059, %v1038
          %v1061 = vpop.permute.xlu0 %1060
          %1064 = vset.pattern.permute.xlu0 0
          %1065 = vperm.xlu0 %1064, %v1039
          %v1066 = vpop.permute.xlu0 %1065
          %1069 = vset.pattern.permute.xlu0 0
          %1070 = vperm.xlu0 %1069, %v1040
          %v1071 = vpop.permute.xlu0 %1070
          %v1073 = vsub.f32 %v955, %v1056
          %v1074 = vsub.f32 %v974, %v1061
          %v1075 = vsub.f32 %v993, %v1066
          %v1076 = vsub.f32 %v1012, %v1071
          %v1077 = vmul.f32 %v1073, 1.442695
          %v1078 = vpow.pop %v1077
          %v1079 = vmul.f32 %v1074, 1.442695
          %v1080 = vpow.pop %v1079
          %v1081 = vmul.f32 %v1075, 1.442695
          %v1082 = vpow.pop %v1081
          %v1083 = vmul.f32 %v1076, 1.442695
          %v1084 = vpow.pop %v1083
          %v1085 = vsel %vm921, %v1078, 0.0
          %1086 = vadd.xlane.f32.xlu0 %v1085
          %v1087 = vpop.xlane.xlu0 %1086
          %v1088 = vsel %vm921, %v1080, 0.0
          %1089 = vadd.xlane.f32.xlu0 %v1088
          %v1090 = vpop.xlane.xlu0 %1089
          %v1091 = vsel %vm921, %v1082, 0.0
          %1092 = vadd.xlane.f32.xlu0 %v1091
          %v1093 = vpop.xlane.xlu0 %1092
          %v1094 = vsel %vm921, %v1084, 0.0
          %1095 = vadd.xlane.f32.xlu0 %v1094
          %v1096 = vpop.xlane.xlu0 %1095
          %v1097 = vld [vmem:[#allocation5] sm:$0xff]
          %v1098 = vld [vmem:[#allocation5 + $0x8] sm:$0xff]
          %v1099 = vld [vmem:[#allocation5 + $0x10] sm:$0xff]
          %v1100 = vld [vmem:[#allocation5 + $0x18] sm:$0xff]
          %v1101 = vmul.f32 %v1046, %v1097
          %v1102 = vmul.f32 %v1048, %v1098
          %v1103 = vmul.f32 %v1050, %v1099
          %v1104 = vmul.f32 %v1052, %v1100
          %v1105 = vadd.f32 %v1101, %v1087
          %v1106 = vadd.f32 %v1102, %v1090
          %v1107 = vadd.f32 %v1103, %v1093
          %v1108 = vadd.f32 %v1104, %v1096
          %1109 = vst.msk [vmem:[#allocation5] sm:$0xff] %vm912, %v1105
          %1110 = vst.msk [vmem:[#allocation5 + $0x8] sm:$0xff] %vm912, %v1106
          %1111 = vst.msk [vmem:[#allocation5 + $0x10] sm:$0xff] %vm912, %v1107
          %1112 = vst.msk [vmem:[#allocation5 + $0x18] sm:$0xff] %vm912, %v1108
          %v1113 = vld [vmem:[#allocation6] sm:$0xff]
          %v1114 = vld [vmem:[#allocation6 + $0x8] sm:$0xff]
          %v1115 = vld [vmem:[#allocation6 + $0x10] sm:$0xff]
          %v1116 = vld [vmem:[#allocation6 + $0x18] sm:$0xff]
          %1118 = vset.pattern.permute.xlu0 0
          %1119 = vperm.xlu0 %1118, %v1046
          %v1120 = vpop.permute.xlu0 %1119
          %1123 = vset.pattern.permute.xlu0 0
          %1124 = vperm.xlu0 %1123, %v1048
          %v1125 = vpop.permute.xlu0 %1124
          %1128 = vset.pattern.permute.xlu0 0
          %1129 = vperm.xlu0 %1128, %v1050
          %v1130 = vpop.permute.xlu0 %1129
          %1133 = vset.pattern.permute.xlu0 0
          %1134 = vperm.xlu0 %1133, %v1052
          %v1135 = vpop.permute.xlu0 %1134
          %v1137 = vmul.f32 %v1120, %v1113
          %v1138 = vmul.f32 %v1125, %v1114
          %v1139 = vmul.f32 %v1130, %v1115
          %v1140 = vmul.f32 %v1135, %v1116
          %v1141 = vpack.c.bf16 %v1078, %v1078
          %v1142 = vpack.c.bf16 %v1080, %v1080
          %v1143 = vpack.c.bf16 %v1082, %v1082
          %v1144 = vpack.c.bf16 %v1084, %v1084
          %v1146 = vsel %vm921, %v1141, 0
          %vm1148 = vcmask 1043456
          %v1150 = vsel %vm1148, %v1017, 0
          %1152 = vmatpush.bf16.msra.mxu0 0
          %1153 = vmatpush.bf16.msra.mxu0 0
          %1154 = vmatpush.bf16.msra.mxu0 0
          %1155 = vmatpush.bf16.msra.mxu0 0
          %1156 = vmatpush.bf16.msra.mxu0 0
          %1157 = vmatpush.bf16.msra.mxu0 0
          %1158 = vmatpush.bf16.msra.mxu0 0
          %1159 = vmatpush.bf16.msra.mxu0 %v1150
          %1160 = vmatmul.bf16.gmra.mxu0 %v1146
          %v1161 = vpop.f32.mrf.mxu0
          %v1162 = vadd.f32 0.0, %v1161
          %v1163 = vpop.f32.mrf.mxu0
          %1164 = vdwg.mxu0
          %v1166 = vsel %vm921, %v1142, 0
          %v1169 = vsel %vm1148, %v1018, 0
          %1171 = vmatpush.bf16.msra.mxu0 0
          %1172 = vmatpush.bf16.msra.mxu0 0
          %1173 = vmatpush.bf16.msra.mxu0 0
          %1174 = vmatpush.bf16.msra.mxu0 0
          %1175 = vmatpush.bf16.msra.mxu0 0
          %1176 = vmatpush.bf16.msra.mxu0 0
          %1177 = vmatpush.bf16.msra.mxu0 0
          %1178 = vmatpush.bf16.msra.mxu0 %v1169
          %1179 = vmatmul.bf16.gmra.mxu0 %v1166
          %v1180 = vpop.f32.mrf.mxu0
          %v1181 = vadd.f32 0.0, %v1180
          %v1182 = vpop.f32.mrf.mxu0
          %1183 = vdwg.mxu0
          %v1185 = vsel %vm921, %v1143, 0
          %v1188 = vsel %vm1148, %v1019, 0
          %1190 = vmatpush.bf16.msra.mxu0 0
          %1191 = vmatpush.bf16.msra.mxu0 0
          %1192 = vmatpush.bf16.msra.mxu0 0
          %1193 = vmatpush.bf16.msra.mxu0 0
          %1194 = vmatpush.bf16.msra.mxu0 0
          %1195 = vmatpush.bf16.msra.mxu0 0
          %1196 = vmatpush.bf16.msra.mxu0 0
          %1197 = vmatpush.bf16.msra.mxu0 %v1188
          %1198 = vmatmul.bf16.gmra.mxu0 %v1185
          %v1199 = vpop.f32.mrf.mxu0
          %v1200 = vadd.f32 0.0, %v1199
          %v1201 = vpop.f32.mrf.mxu0
          %1202 = vdwg.mxu0
          %v1204 = vsel %vm921, %v1144, 0
          %v1207 = vsel %vm1148, %v1020, 0
          %1209 = vmatpush.bf16.msra.mxu0 0
          %1210 = vmatpush.bf16.msra.mxu0 0
          %1211 = vmatpush.bf16.msra.mxu0 0
          %1212 = vmatpush.bf16.msra.mxu0 0
          %1213 = vmatpush.bf16.msra.mxu0 0
          %1214 = vmatpush.bf16.msra.mxu0 0
          %1215 = vmatpush.bf16.msra.mxu0 0
          %1216 = vmatpush.bf16.msra.mxu0 %v1207
          %1217 = vmatmul.bf16.gmra.mxu0 %v1204
          %v1218 = vpop.f32.mrf.mxu0
          %v1219 = vadd.f32 0.0, %v1218
          %v1220 = vpop.f32.mrf.mxu0
          %1221 = vdwg.mxu0
          %v1222 = vadd.f32 %v1137, %v1162
          %v1223 = vadd.f32 %v1138, %v1181
          %v1224 = vadd.f32 %v1139, %v1200
          %v1225 = vadd.f32 %v1140, %v1219
          %1226 = vst.msk [vmem:[#allocation6] sm:$0xff] %vm921, %v1222
          %1227 = vst.msk [vmem:[#allocation6 + $0x8] sm:$0xff] %vm921, %v1223
          %1228 = vst.msk [vmem:[#allocation6 + $0x10] sm:$0xff] %vm921, %v1224
          %1229 = vst.msk [vmem:[#allocation6 + $0x18] sm:$0xff] %vm921, %v1225
          %1230 = vst.msk [vmem:[#allocation4] sm:$0xff] %vm912, %v1037
          %1231 = vst.msk [vmem:[#allocation4 + $0x8] sm:$0xff] %vm912, %v1038
          %1232 = vst.msk [vmem:[#allocation4 + $0x10] sm:$0xff] %vm912, %v1039
          %1233 = vst.msk [vmem:[#allocation4 + $0x18] sm:$0xff] %vm912, %v1040
        $region77: #{tpu_custom_call.1} parent=67 // loop_footer
          %s929 = sadd.s32 %s927, 1
        $region78: #{tpu_custom_call.1} parent=67 // loop_footer_branch
          %926 = sbr.rel target = $region74
        $region79: #{tpu_custom_call.1} parent=67 // loop_exit
          _
        %v1234 = vlaneseq
        %v1235 = vshrl.u32 %v1234, 7
        %v1236 = vlaneseq
        %v1237 = vand.u32 %v1236, 127
        %v1238 = vld [vmem:[%s774] sm:$0xf]
        %v1239 = vld [vmem:[%s774 + $0x4] sm:$0xf]
        %v1240 = vld [vmem:[%s774 + $0x8] sm:$0xf]
        %v1241 = vld [vmem:[%s774 + $0xc] sm:$0xf]
        %v1243 = vsel %vm921, %v636, 0
        %v1246 = vsel %vm921, %v1238, 0
        %1248 = vmatpush.bf16.xpose.msra.mxu0 0
        %1249 = vmatpush.bf16.xpose.msra.mxu0 0
        %1250 = vmatpush.bf16.xpose.msra.mxu0 0
        %1251 = vmatpush.bf16.xpose.msra.mxu0 0
        %1252 = vmatpush.bf16.xpose.msra.mxu0 0
        %1253 = vmatpush.bf16.xpose.msra.mxu0 0
        %1254 = vmatpush.bf16.xpose.msra.mxu0 0
        %1255 = vmatpush.bf16.xpose.msra.mxu0 %v1246
        %1256 = vmatmul.bf16.gmra.mxu0 %v1243
        %v1257 = vpop.f32.mrf.mxu0
        %v1258 = vadd.f32 0.0, %v1257
        %v1259 = vpop.f32.mrf.mxu0
        %1260 = vdwg.mxu0
        %v1262 = vsel %vm921, %v639, 0
        %v1265 = vsel %vm921, %v1239, 0
        %1267 = vmatpush.bf16.xpose.msra.mxu0 0
        %1268 = vmatpush.bf16.xpose.msra.mxu0 0
        %1269 = vmatpush.bf16.xpose.msra.mxu0 0
        %1270 = vmatpush.bf16.xpose.msra.mxu0 0
        %1271 = vmatpush.bf16.xpose.msra.mxu0 0
        %1272 = vmatpush.bf16.xpose.msra.mxu0 0
        %1273 = vmatpush.bf16.xpose.msra.mxu0 0
        %1274 = vmatpush.bf16.xpose.msra.mxu0 %v1265
        %1275 = vmatmul.bf16.gmra.mxu0 %v1262
        %v1276 = vpop.f32.mrf.mxu0
        %v1277 = vadd.f32 0.0, %v1276
        %v1278 = vpop.f32.mrf.mxu0
        %1279 = vdwg.mxu0
        %v1281 = vsel %vm921, %v642, 0
        %v1284 = vsel %vm921, %v1240, 0
        %1286 = vmatpush.bf16.xpose.msra.mxu0 0
        %1287 = vmatpush.bf16.xpose.msra.mxu0 0
        %1288 = vmatpush.bf16.xpose.msra.mxu0 0
        %1289 = vmatpush.bf16.xpose.msra.mxu0 0
        %1290 = vmatpush.bf16.xpose.msra.mxu0 0
        %1291 = vmatpush.bf16.xpose.msra.mxu0 0
        %1292 = vmatpush.bf16.xpose.msra.mxu0 0
        %1293 = vmatpush.bf16.xpose.msra.mxu0 %v1284
        %1294 = vmatmul.bf16.gmra.mxu0 %v1281
        %v1295 = vpop.f32.mrf.mxu0
        %v1296 = vadd.f32 0.0, %v1295
        %v1297 = vpop.f32.mrf.mxu0
        %1298 = vdwg.mxu0
        %v1300 = vsel %vm921, %v645, 0
        %v1303 = vsel %vm921, %v1241, 0
        %1305 = vmatpush.bf16.xpose.msra.mxu0 0
        %1306 = vmatpush.bf16.xpose.msra.mxu0 0
        %1307 = vmatpush.bf16.xpose.msra.mxu0 0
        %1308 = vmatpush.bf16.xpose.msra.mxu0 0
        %1309 = vmatpush.bf16.xpose.msra.mxu0 0
        %1310 = vmatpush.bf16.xpose.msra.mxu0 0
        %1311 = vmatpush.bf16.xpose.msra.mxu0 0
        %1312 = vmatpush.bf16.xpose.msra.mxu0 %v1303
        %1313 = vmatmul.bf16.gmra.mxu0 %v1300
        %v1314 = vpop.f32.mrf.mxu0
        %v1315 = vadd.f32 0.0, %v1314
        %v1316 = vpop.f32.mrf.mxu0
        %1317 = vdwg.mxu0
        %vm1318 = vcmp.le.s32.totalorder %v1237, %v1235
        %v1319 = vsel %vm1318, 1, 0
        %vm1320 = vcmp.eq.s32.totalorder %v1319, 1
        %v1321 = vsel %vm1320, %v1258, -1e+30
        %v1322 = vsel %vm1320, %v1277, -1e+30
        %v1323 = vsel %vm1320, %v1296, -1e+30
        %v1324 = vsel %vm1320, %v1315, -1e+30
        %v1325 = vld [vmem:[%s907] sm:$0xf]
        %v1326 = vld [vmem:[%s907 + $0x4] sm:$0xf]
        %v1327 = vld [vmem:[%s907 + $0x8] sm:$0xf]
        %v1328 = vld [vmem:[%s907 + $0xc] sm:$0xf]
        %v1329 = vld [vmem:[#allocation4] sm:$0xff]
        %v1330 = vld [vmem:[#allocation4 + $0x8] sm:$0xff]
        %v1331 = vld [vmem:[#allocation4 + $0x10] sm:$0xff]
        %v1332 = vld [vmem:[#allocation4 + $0x18] sm:$0xff]
        %v1333 = vsel %vm921, %v1321, -inf
        %1334 = vmax.xlane.f32.xlu0 %v1333
        %v1335 = vpop.xlane.xlu0 %1334
        %v1336 = vsel %vm921, %v1322, -inf
        %1337 = vmax.xlane.f32.xlu0 %v1336
        %v1338 = vpop.xlane.xlu0 %1337
        %v1339 = vsel %vm921, %v1323, -inf
        %1340 = vmax.xlane.f32.xlu0 %v1339
        %v1341 = vpop.xlane.xlu0 %1340
        %v1342 = vsel %vm921, %v1324, -inf
        %1343 = vmax.xlane.f32.xlu0 %v1342
        %v1344 = vpop.xlane.xlu0 %1343
        %v1345 = vmax.f32 %v1329, %v1335
        %v1346 = vmax.f32 %v1330, %v1338
        %v1347 = vmax.f32 %v1331, %v1341
        %v1348 = vmax.f32 %v1332, %v1344
        %v1349 = vsub.f32 %v1329, %v1345
        %v1350 = vsub.f32 %v1330, %v1346
        %v1351 = vsub.f32 %v1331, %v1347
        %v1352 = vsub.f32 %v1332, %v1348
        %v1353 = vmul.f32 %v1349, 1.442695
        %v1354 = vpow.pop %v1353
        %v1355 = vmul.f32 %v1350, 1.442695
        %v1356 = vpow.pop %v1355
        %v1357 = vmul.f32 %v1351, 1.442695
        %v1358 = vpow.pop %v1357
        %v1359 = vmul.f32 %v1352, 1.442695
        %v1360 = vpow.pop %v1359
        %1362 = vset.pattern.permute.xlu0 0
        %1363 = vperm.xlu0 %1362, %v1345
        %v1364 = vpop.permute.xlu0 %1363
        %1367 = vset.pattern.permute.xlu0 0
        %1368 = vperm.xlu0 %1367, %v1346
        %v1369 = vpop.permute.xlu0 %1368
        %1372 = vset.pattern.permute.xlu0 0
        %1373 = vperm.xlu0 %1372, %v1347
        %v1374 = vpop.permute.xlu0 %1373
        %1377 = vset.pattern.permute.xlu0 0
        %1378 = vperm.xlu0 %1377, %v1348
        %v1379 = vpop.permute.xlu0 %1378
        %v1381 = vsub.f32 %v1321, %v1364
        %v1382 = vsub.f32 %v1322, %v1369
        %v1383 = vsub.f32 %v1323, %v1374
        %v1384 = vsub.f32 %v1324, %v1379
        %v1385 = vmul.f32 %v1381, 1.442695
        %v1386 = vpow.pop %v1385
        %v1387 = vmul.f32 %v1382, 1.442695
        %v1388 = vpow.pop %v1387
        %v1389 = vmul.f32 %v1383, 1.442695
        %v1390 = vpow.pop %v1389
        %v1391 = vmul.f32 %v1384, 1.442695
        %v1392 = vpow.pop %v1391
        %v1393 = vsel %vm921, %v1386, 0.0
        %1394 = vadd.xlane.f32.xlu0 %v1393
        %v1395 = vpop.xlane.xlu0 %1394
        %v1396 = vsel %vm921, %v1388, 0.0
        %1397 = vadd.xlane.f32.xlu0 %v1396
        %v1398 = vpop.xlane.xlu0 %1397
        %v1399 = vsel %vm921, %v1390, 0.0
        %1400 = vadd.xlane.f32.xlu0 %v1399
        %v1401 = vpop.xlane.xlu0 %1400
        %v1402 = vsel %vm921, %v1392, 0.0
        %1403 = vadd.xlane.f32.xlu0 %v1402
        %v1404 = vpop.xlane.xlu0 %1403
        %v1405 = vld [vmem:[#allocation5] sm:$0xff]
        %v1406 = vld [vmem:[#allocation5 + $0x8] sm:$0xff]
        %v1407 = vld [vmem:[#allocation5 + $0x10] sm:$0xff]
        %v1408 = vld [vmem:[#allocation5 + $0x18] sm:$0xff]
        %v1409 = vmul.f32 %v1354, %v1405
        %v1410 = vmul.f32 %v1356, %v1406
        %v1411 = vmul.f32 %v1358, %v1407
        %v1412 = vmul.f32 %v1360, %v1408
        %v1413 = vadd.f32 %v1409, %v1395
        %v1414 = vadd.f32 %v1410, %v1398
        %v1415 = vadd.f32 %v1411, %v1401
        %v1416 = vadd.f32 %v1412, %v1404
        %1417 = vst.msk [vmem:[#allocation5] sm:$0xff] %vm912, %v1413
        %1418 = vst.msk [vmem:[#allocation5 + $0x8] sm:$0xff] %vm912, %v1414
        %1419 = vst.msk [vmem:[#allocation5 + $0x10] sm:$0xff] %vm912, %v1415
        %1420 = vst.msk [vmem:[#allocation5 + $0x18] sm:$0xff] %vm912, %v1416
        %v1421 = vld [vmem:[#allocation6] sm:$0xff]
        %v1422 = vld [vmem:[#allocation6 + $0x8] sm:$0xff]
        %v1423 = vld [vmem:[#allocation6 + $0x10] sm:$0xff]
        %v1424 = vld [vmem:[#allocation6 + $0x18] sm:$0xff]
        %1426 = vset.pattern.permute.xlu0 0
        %1427 = vperm.xlu0 %1426, %v1354
        %v1428 = vpop.permute.xlu0 %1427
        %1431 = vset.pattern.permute.xlu0 0
        %1432 = vperm.xlu0 %1431, %v1356
        %v1433 = vpop.permute.xlu0 %1432
        %1436 = vset.pattern.permute.xlu0 0
        %1437 = vperm.xlu0 %1436, %v1358
        %v1438 = vpop.permute.xlu0 %1437
        %1441 = vset.pattern.permute.xlu0 0
        %1442 = vperm.xlu0 %1441, %v1360
        %v1443 = vpop.permute.xlu0 %1442
        %v1445 = vmul.f32 %v1428, %v1421
        %v1446 = vmul.f32 %v1433, %v1422
        %v1447 = vmul.f32 %v1438, %v1423
        %v1448 = vmul.f32 %v1443, %v1424
        %v1449 = vpack.c.bf16 %v1386, %v1386
        %v1450 = vpack.c.bf16 %v1388, %v1388
        %v1451 = vpack.c.bf16 %v1390, %v1390
        %v1452 = vpack.c.bf16 %v1392, %v1392
        %v1454 = vsel %vm921, %v1449, 0
        %vm1456 = vcmask 1043456
        %v1458 = vsel %vm1456, %v1325, 0
        %1460 = vmatpush.bf16.msra.mxu0 0
        %1461 = vmatpush.bf16.msra.mxu0 0
        %1462 = vmatpush.bf16.msra.mxu0 0
        %1463 = vmatpush.bf16.msra.mxu0 0
        %1464 = vmatpush.bf16.msra.mxu0 0
        %1465 = vmatpush.bf16.msra.mxu0 0
        %1466 = vmatpush.bf16.msra.mxu0 0
        %1467 = vmatpush.bf16.msra.mxu0 %v1458
        %1468 = vmatmul.bf16.gmra.mxu0 %v1454
        %v1469 = vpop.f32.mrf.mxu0
        %v1470 = vadd.f32 0.0, %v1469
        %v1471 = vpop.f32.mrf.mxu0
        %1472 = vdwg.mxu0
        %v1474 = vsel %vm921, %v1450, 0
        %v1477 = vsel %vm1456, %v1326, 0
        %1479 = vmatpush.bf16.msra.mxu0 0
        %1480 = vmatpush.bf16.msra.mxu0 0
        %1481 = vmatpush.bf16.msra.mxu0 0
        %1482 = vmatpush.bf16.msra.mxu0 0
        %1483 = vmatpush.bf16.msra.mxu0 0
        %1484 = vmatpush.bf16.msra.mxu0 0
        %1485 = vmatpush.bf16.msra.mxu0 0
        %1486 = vmatpush.bf16.msra.mxu0 %v1477
        %1487 = vmatmul.bf16.gmra.mxu0 %v1474
        %v1488 = vpop.f32.mrf.mxu0
        %v1489 = vadd.f32 0.0, %v1488
        %v1490 = vpop.f32.mrf.mxu0
        %1491 = vdwg.mxu0
        %v1493 = vsel %vm921, %v1451, 0
        %v1496 = vsel %vm1456, %v1327, 0
        %1498 = vmatpush.bf16.msra.mxu0 0
        %1499 = vmatpush.bf16.msra.mxu0 0
        %1500 = vmatpush.bf16.msra.mxu0 0
        %1501 = vmatpush.bf16.msra.mxu0 0
        %1502 = vmatpush.bf16.msra.mxu0 0
        %1503 = vmatpush.bf16.msra.mxu0 0
        %1504 = vmatpush.bf16.msra.mxu0 0
        %1505 = vmatpush.bf16.msra.mxu0 %v1496
        %1506 = vmatmul.bf16.gmra.mxu0 %v1493
        %v1507 = vpop.f32.mrf.mxu0
        %v1508 = vadd.f32 0.0, %v1507
        %v1509 = vpop.f32.mrf.mxu0
        %1510 = vdwg.mxu0
        %v1512 = vsel %vm921, %v1452, 0
        %v1515 = vsel %vm1456, %v1328, 0
        %1517 = vmatpush.bf16.msra.mxu0 0
        %1518 = vmatpush.bf16.msra.mxu0 0
        %1519 = vmatpush.bf16.msra.mxu0 0
        %1520 = vmatpush.bf16.msra.mxu0 0
        %1521 = vmatpush.bf16.msra.mxu0 0
        %1522 = vmatpush.bf16.msra.mxu0 0
        %1523 = vmatpush.bf16.msra.mxu0 0
        %1524 = vmatpush.bf16.msra.mxu0 %v1515
        %1525 = vmatmul.bf16.gmra.mxu0 %v1512
        %v1526 = vpop.f32.mrf.mxu0
        %v1527 = vadd.f32 0.0, %v1526
        %v1528 = vpop.f32.mrf.mxu0
        %1529 = vdwg.mxu0
        %v1530 = vadd.f32 %v1445, %v1470
        %v1531 = vadd.f32 %v1446, %v1489
        %v1532 = vadd.f32 %v1447, %v1508
        %v1533 = vadd.f32 %v1448, %v1527
        %1534 = vst.msk [vmem:[#allocation6] sm:$0xff] %vm921, %v1530
        %1535 = vst.msk [vmem:[#allocation6 + $0x8] sm:$0xff] %vm921, %v1531
        %1536 = vst.msk [vmem:[#allocation6 + $0x10] sm:$0xff] %vm921, %v1532
        %1537 = vst.msk [vmem:[#allocation6 + $0x18] sm:$0xff] %vm921, %v1533
        %1538 = vst.msk [vmem:[#allocation4] sm:$0xff] %vm912, %v1345
        %1539 = vst.msk [vmem:[#allocation4 + $0x8] sm:$0xff] %vm912, %v1346
        %1540 = vst.msk [vmem:[#allocation4 + $0x10] sm:$0xff] %vm912, %v1347
        %1541 = vst.msk [vmem:[#allocation4 + $0x18] sm:$0xff] %vm912, %v1348
        %v1542 = vld [vmem:[#allocation6] sm:$0xff]
        %v1543 = vld [vmem:[#allocation6 + $0x8] sm:$0xff]
        %v1544 = vld [vmem:[#allocation6 + $0x10] sm:$0xff]
        %v1545 = vld [vmem:[#allocation6 + $0x18] sm:$0xff]
        %v1546 = vld [vmem:[#allocation5] sm:$0xff]
        %v1547 = vld [vmem:[#allocation5 + $0x8] sm:$0xff]
        %v1548 = vld [vmem:[#allocation5 + $0x10] sm:$0xff]
        %v1549 = vld [vmem:[#allocation5 + $0x18] sm:$0xff]
        %v1550 = vrcp.pop %v1546
        %v1551 = vrcp.pop %v1547
        %v1552 = vrcp.pop %v1548
        %v1553 = vrcp.pop %v1549
        %1555 = vset.pattern.permute.xlu0 0
        %1556 = vperm.xlu0 %1555, %v1550
        %v1557 = vpop.permute.xlu0 %1556
        %1560 = vset.pattern.permute.xlu0 0
        %1561 = vperm.xlu0 %1560, %v1551
        %v1562 = vpop.permute.xlu0 %1561
        %1565 = vset.pattern.permute.xlu0 0
        %1566 = vperm.xlu0 %1565, %v1552
        %v1567 = vpop.permute.xlu0 %1566
        %1570 = vset.pattern.permute.xlu0 0
        %1571 = vperm.xlu0 %1570, %v1553
        %v1572 = vpop.permute.xlu0 %1571
        %v1574 = vmul.f32 %v1542, %v1557
        %v1575 = vmul.f32 %v1543, %v1562
        %v1576 = vmul.f32 %v1544, %v1567
        %v1577 = vmul.f32 %v1545, %v1572
        %v1578 = vpack.c.bf16 %v1574, %v1574
        %v1579 = vpack.c.bf16 %v1575, %v1575
        %v1580 = vpack.c.bf16 %v1576, %v1576
        %v1581 = vpack.c.bf16 %v1577, %v1577
        %v1584 = vpack.i.b16 %v1579, %v1578
        %v1585 = vshrl.u32 %v1578, 16
        %v1586 = vshrl.u32 %v1579, 16
        %v1587 = vpack.i.b16 %v1586, %v1585
        %v1590 = vpack.i.b16 %v1581, %v1580
        %v1591 = vshrl.u32 %v1580, 16
        %v1592 = vshrl.u32 %v1581, 16
        %v1593 = vpack.i.b16 %v1592, %v1591
        %v1596 = vunpack.c.l.s4 1983009808
        %v1597 = vunpack.c.0.s8 %v1596
        %v1598 = vperm.slane %v1584, %v1597
        %v1601 = vunpack.c.l.s4 1983009808
        %v1602 = vunpack.c.0.s8 %v1601
        %v1603 = vperm.slane %v1590, %v1602
        %v1604 = vrot.slane %v1603, 4
        %v1605 = vsel %vm554, %v1604, %v1598
        %v1606 = vrot.slane %v1598, 4
        %v1607 = vsel %vm554, %v1603, %v1606
        %v1609 = vunpack.c.l.s4 1934713408
        %v1610 = vunpack.c.0.s8 %v1609
        %v1611 = vperm.slane %v1605, %v1610
        %v1613 = vunpack.c.l.s4 1934713408
        %v1614 = vunpack.c.0.s8 %v1613
        %v1615 = vperm.slane %v1607, %v1614
        %v1616 = vrot.slane %v1611, 4
        %v1617 = vsel %vm554, 0, %v1616
        %v1618 = vrot.slane %v1615, 4
        %v1619 = vsel %vm554, 0, %v1618
        %v1622 = vunpack.c.l.s4 1983009808
        %v1623 = vunpack.c.0.s8 %v1622
        %v1624 = vperm.slane %v1587, %v1623
        %v1627 = vunpack.c.l.s4 1983009808
        %v1628 = vunpack.c.0.s8 %v1627
        %v1629 = vperm.slane %v1593, %v1628
        %v1630 = vrot.slane %v1629, 4
        %v1631 = vsel %vm554, %v1630, %v1624
        %v1632 = vrot.slane %v1624, 4
        %v1633 = vsel %vm554, %v1629, %v1632
        %v1635 = vunpack.c.l.s4 1934713408
        %v1636 = vunpack.c.0.s8 %v1635
        %v1637 = vperm.slane %v1631, %v1636
        %v1639 = vunpack.c.l.s4 1934713408
        %v1640 = vunpack.c.0.s8 %v1639
        %v1641 = vperm.slane %v1633, %v1640
        %v1642 = vrot.slane %v1637, 4
        %v1643 = vsel %vm554, 0, %v1642
        %v1644 = vrot.slane %v1641, 4
        %v1645 = vsel %vm554, 0, %v1644
        %v1646 = vsel %vm554, %v1618, %v1611
        %v1648 = vunpack.c.l.s4 1983009808
        %v1649 = vunpack.c.0.s8 %v1648
        %v1650 = vperm.slane %v1646, %v1649
        %v1651 = vrot.slane %v1619, 4
        %v1652 = vsel %vm554, %v1651, %v1617
        %v1654 = vunpack.c.l.s4 1983009808
        %v1655 = vunpack.c.0.s8 %v1654
        %v1656 = vperm.slane %v1652, %v1655
        %v1657 = vrot.slane %v1656, 4
        %v1658 = vsel %vm554, %v1657, %v1650
        %v1660 = vunpack.c.l.s4 1934713408
        %v1661 = vunpack.c.0.s8 %v1660
        %v1662 = vperm.slane %v1658, %v1661
        %v1663 = vrot.slane %v1662, 4
        %v1664 = vsel %vm554, 0, %v1663
        %v1665 = vsel %vm554, %v1644, %v1637
        %v1667 = vunpack.c.l.s4 1983009808
        %v1668 = vunpack.c.0.s8 %v1667
        %v1669 = vperm.slane %v1665, %v1668
        %v1670 = vrot.slane %v1645, 4
        %v1671 = vsel %vm554, %v1670, %v1643
        %v1673 = vunpack.c.l.s4 1983009808
        %v1674 = vunpack.c.0.s8 %v1673
        %v1675 = vperm.slane %v1671, %v1674
        %v1676 = vrot.slane %v1675, 4
        %v1677 = vsel %vm554, %v1676, %v1669
        %v1679 = vunpack.c.l.s4 1934713408
        %v1680 = vunpack.c.0.s8 %v1679
        %v1681 = vperm.slane %v1677, %v1680
        %v1682 = vrot.slane %v1681, 4
        %v1683 = vsel %vm554, 0, %v1682
        %v1686 = vpack.i.b16 %v1681, %v1662
        %v1687 = vshrl.u32 %v1662, 16
        %v1688 = vshrl.u32 %v1681, 16
        %v1689 = vpack.i.b16 %v1688, %v1687
        %v1692 = vpack.i.b16 %v1683, %v1664
        %v1693 = vshrl.u32 %v1664, 16
        %v1694 = vshrl.u32 %v1683, 16
        %v1695 = vpack.i.b16 %v1694, %v1693
        %v1696 = vunpack.c.l.b16 %v1689
        %v1697 = vpack.c.b16 %v1696, %v1696
        %1698 = vrot.lane.b32.xlu0 %v1697, 8
        %v1699 = vpop.permute.xlu0 %1698
        %v1700 = vunpack.c.l.b16 %v1692
        %v1701 = vpack.c.b16 %v1700, %v1700
        %1702 = vrot.lane.b32.xlu0 %v1701, 16
        %v1703 = vpop.permute.xlu0 %1702
        %v1704 = vunpack.c.l.b16 %v1695
        %v1705 = vpack.c.b16 %v1704, %v1704
        %1706 = vrot.lane.b32.xlu0 %v1705, 24
        %v1707 = vpop.permute.xlu0 %1706
        %v1710 = vsel %vm921, %v1686, %v1699
        %vm1711 = vcmask 130048
        %v1713 = vsel %vm1711, %v1710, %v1703
        %vm1714 = vcmask 195584
        %v1716 = vsel %vm1714, %v1713, %v1707
        %v1717 = vld [vmem:[%s4] sm:$0xf]
        %v1718 = vld [vmem:[%s4 + $0x4] sm:$0xf]
        %v1719 = vld [vmem:[%s4 + $0x8] sm:$0xf]
        %v1720 = vld [vmem:[%s4 + $0xc] sm:$0xf]
        %v1721 = vld [vmem:[%s5] sm:$0x1]
        %v1723 = vperm.slane %v1721, 0
        %v1729 = vunpack.c.l.b16 %v1717
        %v1730 = vunpack.c.l.b16 %v1718
        %v1731 = vunpack.c.l.b16 %v1719
        %v1732 = vunpack.c.l.b16 %v1720
        %v1733 = vpack.c.b16 %v1730, %v1729
        %v1734 = vpack.c.b16 %v1732, %v1731
        %v1737 = vsel %vm456, %v1716, 0
        %1739 = vmatpush.bf16.msra.mxu0 0
        %1740 = vmatpush.bf16.msra.mxu0 0
        %1741 = vmatpush.bf16.msra.mxu0 0
        %1742 = vmatpush.bf16.msra.mxu0 0
        %1743 = vmatpush.bf16.msra.mxu0 0
        %1744 = vmatpush.bf16.msra.mxu0 0
        %1745 = vmatpush.bf16.msra.mxu0 %v1734
        %1746 = vmatpush.bf16.msra.mxu0 %v1733
        %1747 = vmatmul.bf16.gmra.mxu0 %v1737
        %v1748 = vpop.f32.mrf.mxu0
        %v1749 = vadd.f32 %v1723, %v1748
        %v1750 = vpop.f32.mrf.mxu0
        %1751 = vdwg.mxu0
        %v1752 = vadd.f32 %v453, %v1749
        %v1753 = vld [vmem:[%s6] sm:$0x1]
        %v1754 = vld [vmem:[%s7] sm:$0x1]
        %v1755 = vsel %vm456, %v1752, 0.0
        %1756 = vadd.xlane.f32.xlu0 %v1755
        %v1757 = vpop.xlane.xlu0 %1756
        %v1758 = vmul.f32 %v1752, %v1752
        %v1759 = vsel %vm456, %v1758, 0.0
        %1760 = vadd.xlane.f32.xlu0 %v1759
        %v1761 = vpop.xlane.xlu0 %1760
        %v1762 = vmul.f32 %v1757, 0.03125
        %v1763 = vmul.f32 %v1761, 0.03125
        %v1764 = vmul.f32 %v1762, %v1762
        %v1765 = vsub.f32 %v1763, %v1764
        %v1766 = vmax.f32 %v1765, 0.0
        %v1767 = vsub.f32 %v1752, %v1762
        %v1768 = vadd.f32 %v1766, 1e-05
        %v1769 = vrsqrt.pop %v1768
        %v1770 = vmul.f32 %v1769, %v1768
        %v1771 = vmul.f32 %v1770, %v1769
        %v1772 = vmul.f32 0.5, %v1771
        %v1773 = vsub.f32 1.5, %v1772
        %v1774 = vmul.f32 %v1769, %v1773
        %vm1775 = vweird.f32 %v1768
        %vm1776 = vweird.f32 %v1769
        %vm1777 = vmor %vm1775, %vm1776
        %v1778 = vsel %vm1777, %v1769, %v1774
        %v1779 = vmul.f32 %v1767, %v1778
        %v1781 = vperm.slane %v1753, 0
        %v1783 = vmul.f32 %v1779, %v1781
        %v1785 = vperm.slane %v1754, 0
        %v1787 = vadd.f32 %v1783, %v1785
        %v1788 = vpack.c.bf16 %v1787, %v1787
        %v1789 = vld [vmem:[%s8] sm:$0xf]
        %v1790 = vld [vmem:[%s8 + $0x4] sm:$0xf]
        %v1791 = vld [vmem:[%s8 + $0x8] sm:$0xf]
        %v1792 = vld [vmem:[%s8 + $0xc] sm:$0xf]
        %v1793 = vld [vmem:[%s9] sm:$0x1]
        %v1795 = vperm.slane %v1793, 0
        %v1801 = vunpack.c.l.b16 %v1789
        %v1802 = vunpack.c.l.b16 %v1790
        %v1803 = vunpack.c.l.b16 %v1791
        %v1804 = vunpack.c.l.b16 %v1792
        %v1805 = vpack.c.b16 %v1802, %v1801
        %v1806 = vpack.c.b16 %v1804, %v1803
        %v1810 = vsel %vm456, %v1788, 0
        %1812 = vmatpush.bf16.msra.mxu0 0
        %1813 = vmatpush.bf16.msra.mxu0 0
        %1814 = vmatpush.bf16.msra.mxu0 0
        %1815 = vmatpush.bf16.msra.mxu0 0
        %1816 = vmatpush.bf16.msra.mxu0 0
        %1817 = vmatpush.bf16.msra.mxu0 0
        %1818 = vmatpush.bf16.msra.mxu0 %v1806
        %1819 = vmatpush.bf16.msra.mxu0 %v1805
        %1820 = vmatmul.bf16.gmra.mxu0 %v1810
        %v1821 = vpop.f32.mrf.mxu0
        %v1822 = vadd.f32 %v1795, %v1821
        %v1823 = vpop.f32.mrf.mxu0
        %1824 = vdwg.mxu0
        %v1825 = vmax.f32 %v1822, 0.0
        %v1826 = vpack.c.bf16 %v1825, %v1825
        %v1827 = vld [vmem:[%s10] sm:$0xf]
        %v1828 = vld [vmem:[%s10 + $0x4] sm:$0xf]
        %v1829 = vld [vmem:[%s10 + $0x8] sm:$0xf]
        %v1830 = vld [vmem:[%s10 + $0xc] sm:$0xf]
        %v1831 = vld [vmem:[%s10 + $0x10] sm:$0xf]
        %v1832 = vld [vmem:[%s10 + $0x14] sm:$0xf]
        %v1833 = vld [vmem:[%s10 + $0x18] sm:$0xf]
        %v1834 = vld [vmem:[%s10 + $0x1c] sm:$0xf]
        %v1835 = vld [vmem:[%s10 + $0x20] sm:$0xf]
        %v1836 = vld [vmem:[%s10 + $0x24] sm:$0xf]
        %v1837 = vld [vmem:[%s10 + $0x28] sm:$0xf]
        %v1838 = vld [vmem:[%s10 + $0x2c] sm:$0xf]
        %v1839 = vld [vmem:[%s10 + $0x30] sm:$0xf]
        %v1840 = vld [vmem:[%s10 + $0x34] sm:$0xf]
        %v1841 = vld [vmem:[%s10 + $0x38] sm:$0xf]
        %v1842 = vld [vmem:[%s10 + $0x3c] sm:$0xf]
        %v1843 = vld [vmem:[%s11] sm:$0x1]
        %v1845 = vperm.slane %v1843, 0
        %v1863 = vunpack.c.l.b16 %v1827
        %v1864 = vunpack.c.l.b16 %v1828
        %v1865 = vunpack.c.l.b16 %v1829
        %v1866 = vunpack.c.l.b16 %v1830
        %v1867 = vunpack.c.l.b16 %v1831
        %v1868 = vunpack.c.l.b16 %v1832
        %v1869 = vunpack.c.l.b16 %v1833
        %v1870 = vunpack.c.l.b16 %v1834
        %v1871 = vunpack.c.l.b16 %v1835
        %v1872 = vunpack.c.l.b16 %v1836
        %v1873 = vunpack.c.l.b16 %v1837
        %v1874 = vunpack.c.l.b16 %v1838
        %v1875 = vunpack.c.l.b16 %v1839
        %v1876 = vunpack.c.l.b16 %v1840
        %v1877 = vunpack.c.l.b16 %v1841
        %v1878 = vunpack.c.l.b16 %v1842
        %v1879 = vpack.c.b16 %v1864, %v1863
        %v1880 = vpack.c.b16 %v1866, %v1865
        %v1881 = vpack.c.b16 %v1868, %v1867
        %v1882 = vpack.c.b16 %v1870, %v1869
        %v1883 = vpack.c.b16 %v1872, %v1871
        %v1884 = vpack.c.b16 %v1874, %v1873
        %v1885 = vpack.c.b16 %v1876, %v1875
        %v1886 = vpack.c.b16 %v1878, %v1877
        %1895 = vmatpush.bf16.msra.mxu0 %v1886
        %1896 = vmatpush.bf16.msra.mxu0 %v1885
        %1897 = vmatpush.bf16.msra.mxu0 %v1884
        %1898 = vmatpush.bf16.msra.mxu0 %v1883
        %1899 = vmatpush.bf16.msra.mxu0 %v1882
        %1900 = vmatpush.bf16.msra.mxu0 %v1881
        %1901 = vmatpush.bf16.msra.mxu0 %v1880
        %1902 = vmatpush.bf16.msra.mxu0 %v1879
        %1903 = vmatmul.bf16.gmra.mxu0 %v1826
        %v1904 = vpop.f32.mrf.mxu0
        %v1905 = vadd.f32 %v1845, %v1904
        %v1906 = vpop.f32.mrf.mxu0
        %1907 = vdwg.mxu0
        %v1908 = vadd.f32 %v1752, %v1905
        %1909 = vst.msk [vmem:[%s443] sm:$0xff] %vm456, %v1908
        %s1910 = sand.u32 %s308, 1
        %s1911 = scalar_lea.sflag [#allocation9], %s1910
        %s1912 = sand.u32 %s308, 1
        %s1913 = smul.addr %s1912, 8
        %s1914 = scalar_lea.vmem [#allocation10], %s1913
        // Predicated region
        $region80: #{tpu_custom_call.1} parent=67 // pred_check
          %p1915 = pneg %p318
        $region81: #{tpu_custom_call.1} parent=67 // pred_check_branch
          %1917 = sbr.rel (%p1915) target = $region83
        $region82: #{tpu_custom_call.1} parent=67 // pred_region
          %1919 = vsyncadd %s1911, 0
          %s1920 = smul.addr %s31, 2
          %s1921 = sadd.s32 %s32, %s1920
          %s1922 = smul.addr %s1921, 8
          %s1923 = scalar_lea.hbm %s12, %s1922
          %s1925 = sshll.u32 %s1914, 4
          %s1926 = int_to_ptr.vmem [resolvable:$true] %s1925
          %s1927 = sshll.u32 %s1923, 4
          %s1928 = int_to_ptr.hbm [resolvable:$true] %s1927
          %1930 = dma.vmem_to_hbm [thread:$0]  %s1926, 128, %s1928, %s1911
        $region83: #{tpu_custom_call.1} parent=67 // pred_fallthru
          _
      $region68: #{tpu_custom_call.1} parent=5 // pred_fallthru
        _
      %p1931 = scmp.le.s32.totalorder 2, %s22
      // Predicated region
      $region84: #{tpu_custom_call.1} parent=5 // pred_check
        %p1932 = pneg %p1931
      $region85: #{tpu_custom_call.1} parent=5 // pred_check_branch
        %1934 = sbr.rel (%p1932) target = $region87
      $region86: #{tpu_custom_call.1} parent=5 // pred_region
        %s1935 = ssub.s32 %s22, 2
        // Predicated region
        $region88: #{tpu_custom_call.1} parent=86 // pred_check
          %p1936 = pneg %p324
        $region89: #{tpu_custom_call.1} parent=86 // pred_check_branch
          %1938 = sbr.rel (%p1936) target = $region91
        $region90: #{tpu_custom_call.1} parent=86 // pred_region
          %s1939 = sand.u32 %s309, 1
          %s1940 = scalar_lea.sflag [#allocation9], %s1939
          %s1941 = sand.u32 %s309, 1
          %s1942 = smul.addr %s1941, 8
          %s1943 = scalar_lea.vmem [#allocation10], %s1942
          %1945 = dma.done %s1940, 128
        $region91: #{tpu_custom_call.1} parent=86 // pred_fallthru
          _
      $region87: #{tpu_custom_call.1} parent=5 // pred_fallthru
        _
    $region6: #{tpu_custom_call.1} parent=1 // loop_footer
      %s26 = sadd.s32 1, %s22
    $region7: #{tpu_custom_call.1} parent=1 // loop_footer_branch
      %21 = sbr.rel target = $region3
    $region8: #{tpu_custom_call.1} parent=1 // loop_exit
      _
    %1946 = vsyncpa [#allocation8], 1
    %s1947 = scalar_lea.sflag [#allocation8], 1
    %1948 = vsyncpa %s1947, 1
    %1949 = vsyncpa [#allocation9], 1
    %s1950 = scalar_lea.sflag [#allocation9], 1
    %1951 = vsyncpa %s1950, 1

</llo_original>
